<compile_context>
chip_gen: v5e
topology: v5e:2x2
jax: 0.10.0
libtpu: 0.0.40
codegen_flags: <defaults>
</compile_context>

<pallas_src>
import functools

import jax
import jax.numpy as jnp
import numpy as np
from jax.experimental import pallas as pl
from jax.experimental.pallas import tpu as pltpu

LRELU_SLOPE = 0.2
BN_EPS = 1e-5
CPAD = 128            # lane-dense channel padding for all conv outputs
N_CLASSES = 11
KH = KW = 4

# per-layer static config: (stride, pad, has_bn)
CFGS = [(2, 1, False), (2, 1, True), (2, 1, True), (2, 1, True), (1, 0, False)]


def _round_up(x, m):
    return (x + m - 1) // m * m


# ----------------------------- Pallas kernel ------------------------------- #

def _conv_bn_lrelu_kernel(*refs, has_bn, slope, inv_m):
    """y = A @ B ; [BatchNorm(batch stats)] ; [LeakyReLU(slope)] -- fully fused.

    A block: (tm, K); B: (K, 128); gamma/beta: (1, 128); out: (tm, 128).
    """
    if has_bn:
        a_ref, b_ref, gamma_ref, beta_ref, o_ref = refs
    else:
        a_ref, b_ref, o_ref = refs

    y = jnp.dot(a_ref[...], b_ref[...], preferred_element_type=jnp.float32)

    if has_bn:
        # Training-mode BatchNorm over M = N*H*W, two-pass (numerically stable).
        # inv_m uses the true M, so zero-padded rows contribute nothing.
        mean = jnp.sum(y, axis=0, keepdims=True) * inv_m
        centered = y - mean
        var = jnp.sum(centered * centered, axis=0, keepdims=True) * inv_m
        scale = gamma_ref[...] * jax.lax.rsqrt(var + BN_EPS)
        y = centered * scale + beta_ref[...]

    if slope != 1.0:
        y = jnp.where(y >= 0.0, y, slope * y)

    o_ref[...] = y


def conv_bn_lrelu(a, b, gamma=None, beta=None, *, has_bn, slope, m_blocks=1):
    """One fused conv layer: (a @ b) [+ BN batch stats] [+ LeakyReLU]."""
    M, K = a.shape
    Cp = b.shape[1]
    assert not (has_bn and m_blocks != 1), "BN needs full-M statistics in one block"
    Mp = _round_up(M, 8 * m_blocks)
    a_p = jnp.pad(a, ((0, Mp - M), (0, 0))) if Mp != M else a
    tm = Mp // m_blocks

    kernel = functools.partial(
        _conv_bn_lrelu_kernel, has_bn=has_bn, slope=slope, inv_m=1.0 / M)

    in_specs = [pl.BlockSpec((tm, K), lambda i: (i, 0)),
                pl.BlockSpec((K, Cp), lambda i: (0, 0))]
    inputs = [a_p, b]
    if has_bn:
        in_specs += [pl.BlockSpec((1, Cp), lambda i: (0, 0)),
                     pl.BlockSpec((1, Cp), lambda i: (0, 0))]
        inputs += [gamma, beta]

    out = pl.pallas_call(
        kernel,
        out_shape=jax.ShapeDtypeStruct((Mp, Cp), jnp.float32),
        grid=(m_blocks,),
        in_specs=in_specs,
        out_specs=pl.BlockSpec((tm, Cp), lambda i: (i, 0)),
        compiler_params=pltpu.CompilerParams(
            dimension_semantics=("parallel",) if m_blocks > 1 else ("arbitrary",)),
    )(*inputs)
    return out[:M] if Mp != M else out


# ------------------------------- JAX glue ---------------------------------- #

def im2col_nhwc(h, cin, kh, kw, stride, pad):
    """h: (N, H, W, Cpad) channel-last. Returns (N*Ho*Wo, kh*kw*cin), Ho, Wo.

    K ordered (ky, kx, c) to match the packed weight layout below.
    """
    N, H, W, _ = h.shape
    x = h[..., :cin] if cin != h.shape[-1] else h
    if pad:
        x = jnp.pad(x, ((0, 0), (pad, pad), (pad, pad), (0, 0)))
    Ho = (H + 2 * pad - kh) // stride + 1
    Wo = (W + 2 * pad - kw) // stride + 1
    cols = []
    for ky in range(kh):
        for kx in range(kw):
            cols.append(x[:, ky:ky + stride * Ho:stride, kx:kx + stride * Wo:stride, :])
    cols = jnp.stack(cols, axis=3)                    # (N, Ho, Wo, kh*kw, cin)
    return cols.reshape(N * Ho * Wo, kh * kw * cin), Ho, Wo


def make_params(key, nc=1, ndf=8):
    chans = [(nc, ndf), (ndf, ndf * 2), (ndf * 2, ndf * 4), (ndf * 4, ndf * 8),
             (ndf * 8, N_CLASSES)]
    params = []
    for (cin, cout), (_, _, bn) in zip(chans, CFGS):
        key, kw_, kg, kb = jax.random.split(key, 4)
        p = {"w": 0.02 * jax.random.normal(kw_, (cout, cin, KH, KW), jnp.float32)}
        if bn:
            p["gamma"] = 1.0 + 0.1 * jax.random.normal(kg, (cout,), jnp.float32)
            p["beta"] = 0.1 * jax.random.normal(kb, (cout,), jnp.float32)
        params.append(p)
    return params


def pack_params(params):
    """Pre-pack weights for the lane-dense kernels: B=(K,128), gamma/beta=(1,128)."""
    packed = []
    for p, (_, _, has_bn) in zip(params, CFGS):
        cout, cin, kh, kw = p["w"].shape
        b = p["w"].transpose(2, 3, 1, 0).reshape(kh * kw * cin, cout)  # K=(ky,kx,c)
        q = {"b": jnp.pad(b, ((0, 0), (0, CPAD - cout)))}
        if has_bn:
            q["gamma"] = jnp.pad(p["gamma"], (0, CPAD - cout)).reshape(1, CPAD)
            q["beta"] = jnp.pad(p["beta"], (0, CPAD - cout)).reshape(1, CPAD)
        packed.append(q)
    return packed


def discriminator_forward(packed, x_nchw):
    """Matches PyTorch Discriminator.forward (fresh module => training-mode BN)."""
    N = x_nchw.shape[0]
    h = x_nchw.transpose(0, 2, 3, 1)                  # NHWC once, stay NHWC after
    n_layers = len(packed)
    for li, (q, (stride, pad, has_bn)) in enumerate(zip(packed, CFGS)):
        last = li == n_layers - 1
        cin = q["b"].shape[0] // (KH * KW)
        a, Ho, Wo = im2col_nhwc(h, cin, KH, KW, stride, pad)
        slope = 1.0 if last else LRELU_SLOPE
        # Expose a parallel M axis on the big non-BN layer so v7x's 2 TCs share it.
        m_blocks = 2 if (not has_bn and a.shape[0] >= 1024 and a.shape[0] % 16 == 0) else 1
        y = conv_bn_lrelu(a, q["b"], q.get("gamma"), q.get("beta"),
                          has_bn=has_bn, slope=slope, m_blocks=m_blocks)
        h = y.reshape(N, Ho, Wo, CPAD)                # channel-last, lane-padded
    return h.reshape(N, CPAD)[:, :N_CLASSES]          # final conv is 1x1 spatial; .view(-1, 11)


def reference_forward(params, x):
    """Plain-JAX reference mirroring the PyTorch module."""
    h = x
    n_layers = len(params)
    for li, (p, (stride, pad, has_bn)) in enumerate(zip(params, CFGS)):
        last = li == n_layers - 1
        h = jax.lax.conv_general_dilated(
            h, p["w"], window_strides=(stride, stride),
            padding=[(pad, pad), (pad, pad)],
            dimension_numbers=("NCHW", "OIHW", "NCHW"))
        if has_bn:
            mean = jnp.mean(h, axis=(0, 2, 3), keepdims=True)
            var = jnp.var(h, axis=(0, 2, 3), keepdims=True)
            h = (h - mean) / jnp.sqrt(var + BN_EPS)
            h = h * p["gamma"][None, :, None, None] + p["beta"][None, :, None, None]
        if not last:
            h = jnp.where(h >= 0.0, h, LRELU_SLOPE * h)
    return h.reshape(-1, N_CLASSES)


if __name__ == "__main__":
    key = jax.random.PRNGKey(0)
    kx, kp = jax.random.split(key)
    nc, ndf, batch = 1, 8, 2
    x = jax.random.normal(kx, (batch, nc, 64, 64), jnp.float32)
    params = make_params(kp, nc=nc, ndf=ndf)
    packed = pack_params(params)

    out = jax.jit(discriminator_forward)(packed, x)
    out = jax.block_until_ready(out)
    assert out.shape == (batch, N_CLASSES)

    ref = jax.block_until_ready(reference_forward(params, x))
    np.testing.assert_allclose(np.asarray(out), np.asarray(ref), rtol=2e-2, atol=2e-2)

    print("KERNEL_OK")
</pallas_src>

<mosaic_0001>
module attributes {stable_mosaic.version = 11 : i64} {
  func.func @_conv_bn_lrelu_kernel(%arg0: i32, %arg1: memref<1024x16xf32, #tpu.memory_space<vmem>>, %arg2: memref<16x128xf32, #tpu.memory_space<vmem>>, %arg3: memref<1024x128xf32, #tpu.memory_space<vmem>>) attributes {dimension_semantics = [#tpu.dimension_semantics<parallel>], iteration_bounds = array<i64: 2>, scalar_prefetch = 0 : i64, scratch_operands = 0 : i64, tpu.core_type = #tpu.core_type<tc>, window_params = [{transform_indices = @transform_0, window_bounds = array<i64: 1024, 16>}, {pipeline_mode = #tpu.pipeline_mode<synchronous>, transform_indices = @transform_1, window_bounds = array<i64: 16, 128>}, {transform_indices = @transform_2, window_bounds = array<i64: 1024, 128>}]} {
    %c0 = arith.constant 0 : index
    %c0_0 = arith.constant 0 : index
    %0 = vector.load %arg1[%c0, %c0_0] : memref<1024x16xf32, #tpu.memory_space<vmem>>, vector<1024x16xf32>
    %c0_1 = arith.constant 0 : index
    %c0_2 = arith.constant 0 : index
    %1 = vector.load %arg2[%c0_1, %c0_2] : memref<16x128xf32, #tpu.memory_space<vmem>>, vector<16x128xf32>
    %cst = arith.constant dense<0.000000e+00> : vector<1024x128xf32>
    %2 = tpu.matmul %0, %1, %cst {dimension_numbers = #tpu.dot_dimension_numbers<[1], [0], [0], [1], [0, 0, 1, 1], [], []>} : vector<1024x16xf32>, vector<16x128xf32>, vector<1024x128xf32> -> vector<1024x128xf32>
    %cst_3 = arith.constant 0.000000e+00 : f32
    %3 = vector.broadcast %cst_3 : f32 to vector<1024x128xf32>
    %4 = arith.cmpf oge, %2, %3 : vector<1024x128xf32>
    %cst_4 = arith.constant 2.000000e-01 : f32
    %5 = vector.broadcast %cst_4 : f32 to vector<1024x128xf32>
    %6 = arith.mulf %5, %2 : vector<1024x128xf32>
    %7 = arith.select %4, %2, %6 : vector<1024x128xi1>, vector<1024x128xf32>
    %c0_5 = arith.constant 0 : index
    %c0_6 = arith.constant 0 : index
    %8 = vector.load %arg3[%c0_5, %c0_6] : memref<1024x128xf32, #tpu.memory_space<vmem>>, vector<1024x128xf32>
    tpu.vector_store %arg3[%c0_5, %c0_6], %7 {strides = array<i32>} : memref<1024x128xf32, #tpu.memory_space<vmem>>, vector<1024x128xf32>,
    return
  }
  func.func @transform_0(%arg0: i32) -> (i32, i32) {
    %c0_i32 = arith.constant 0 : i32
    %c0_i32_0 = arith.constant 0 : i32
    return %arg0, %c0_i32 : i32, i32
  }
  func.func @transform_1(%arg0: i32) -> (i32, i32) {
    %c0_i32 = arith.constant 0 : i32
    %c0_i32_0 = arith.constant 0 : i32
    %c0_i32_1 = arith.constant 0 : i32
    return %c0_i32, %c0_i32_0 : i32, i32
  }
  func.func @transform_2(%arg0: i32) -> (i32, i32) {
    %c0_i32 = arith.constant 0 : i32
    %c0_i32_0 = arith.constant 0 : i32
    return %arg0, %c0_i32 : i32, i32
  }
}

module attributes {stable_mosaic.version = 11 : i64} {
  func.func @_conv_bn_lrelu_kernel(%arg0: i32, %arg1: memref<512x128xf32, #tpu.memory_space<vmem>>, %arg2: memref<128x128xf32, #tpu.memory_space<vmem>>, %arg3: memref<1x128xf32, #tpu.memory_space<vmem>>, %arg4: memref<1x128xf32, #tpu.memory_space<vmem>>, %arg5: memref<512x128xf32, #tpu.memory_space<vmem>>) attributes {dimension_semantics = [#tpu.dimension_semantics<arbitrary>], iteration_bounds = array<i64: 1>, scalar_prefetch = 0 : i64, scratch_operands = 0 : i64, tpu.core_type = #tpu.core_type<tc>, window_params = [{transform_indices = @transform_0, window_bounds = array<i64: 512, 128>}, {pipeline_mode = #tpu.pipeline_mode<synchronous>, transform_indices = @transform_1, window_bounds = array<i64: 128, 128>}, {pipeline_mode = #tpu.pipeline_mode<synchronous>, transform_indices = @transform_2, window_bounds = array<i64: 1, 128>}, {pipeline_mode = #tpu.pipeline_mode<synchronous>, transform_indices = @transform_3, window_bounds = array<i64: 1, 128>}, {transform_indices = @transform_4, window_bounds = array<i64: 512, 128>}]} {
    %c0 = arith.constant 0 : index
    %c0_0 = arith.constant 0 : index
    %0 = vector.load %arg1[%c0, %c0_0] : memref<512x128xf32, #tpu.memory_space<vmem>>, vector<512x128xf32>
    %c0_1 = arith.constant 0 : index
    %c0_2 = arith.constant 0 : index
    %1 = vector.load %arg2[%c0_1, %c0_2] : memref<128x128xf32, #tpu.memory_space<vmem>>, vector<128x128xf32>
    %cst = arith.constant dense<0.000000e+00> : vector<512x128xf32>
    %2 = tpu.matmul %0, %1, %cst {dimension_numbers = #tpu.dot_dimension_numbers<[1], [0], [0], [1], [0, 0, 1, 1], [], []>} : vector<512x128xf32>, vector<128x128xf32>, vector<512x128xf32> -> vector<512x128xf32>
    %cst_3 = arith.constant dense<0.000000e+00> : vector<128xf32>
    %3 = vector.multi_reduction <add>, %2, %cst_3 [0] : vector<512x128xf32> to vector<128xf32>
    %4 = vector.shape_cast %3 : vector<128xf32> to vector<1x128xf32>
    %cst_4 = arith.constant 0.001953125 : f32
    %5 = vector.broadcast %cst_4 : f32 to vector<1x128xf32>
    %6 = arith.mulf %4, %5 : vector<1x128xf32>
    %7 = vector.broadcast %6 : vector<1x128xf32> to vector<512x128xf32>
    %8 = arith.subf %2, %7 : vector<512x128xf32>
    %9 = arith.mulf %8, %8 : vector<512x128xf32>
    %cst_5 = arith.constant dense<0.000000e+00> : vector<128xf32>
    %10 = vector.multi_reduction <add>, %9, %cst_5 [0] : vector<512x128xf32> to vector<128xf32>
    %11 = vector.shape_cast %10 : vector<128xf32> to vector<1x128xf32>
    %cst_6 = arith.constant 0.001953125 : f32
    %12 = vector.broadcast %cst_6 : f32 to vector<1x128xf32>
    %13 = arith.mulf %11, %12 : vector<1x128xf32>
    %c0_7 = arith.constant 0 : index
    %c0_8 = arith.constant 0 : index
    %14 = vector.load %arg3[%c0_7, %c0_8] : memref<1x128xf32, #tpu.memory_space<vmem>>, vector<1x128xf32>
    %cst_9 = arith.constant 9.99999974E-6 : f32
    %15 = vector.broadcast %cst_9 : f32 to vector<1x128xf32>
    %16 = arith.addf %13, %15 : vector<1x128xf32>
    %17 = math.rsqrt %16 : vector<1x128xf32>
    %18 = arith.mulf %14, %17 : vector<1x128xf32>
    %19 = vector.broadcast %18 : vector<1x128xf32> to vector<512x128xf32>
    %20 = arith.mulf %8, %19 : vector<512x128xf32>
    %c0_10 = arith.constant 0 : index
    %c0_11 = arith.constant 0 : index
    %21 = vector.load %arg4[%c0_10, %c0_11] : memref<1x128xf32, #tpu.memory_space<vmem>>, vector<1x128xf32>
    %22 = vector.broadcast %21 : vector<1x128xf32> to vector<512x128xf32>
    %23 = arith.addf %20, %22 : vector<512x128xf32>
    %cst_12 = arith.constant 0.000000e+00 : f32
    %24 = vector.broadcast %cst_12 : f32 to vector<512x128xf32>
    %25 = arith.cmpf oge, %23, %24 : vector<512x128xf32>
    %cst_13 = arith.constant 2.000000e-01 : f32
    %26 = vector.broadcast %cst_13 : f32 to vector<512x128xf32>
    %27 = arith.mulf %26, %23 : vector<512x128xf32>
    %28 = arith.select %25, %23, %27 : vector<512x128xi1>, vector<512x128xf32>
    %c0_14 = arith.constant 0 : index
    %c0_15 = arith.constant 0 : index
    %29 = vector.load %arg5[%c0_14, %c0_15] : memref<512x128xf32, #tpu.memory_space<vmem>>, vector<512x128xf32>
    tpu.vector_store %arg5[%c0_14, %c0_15], %28 {strides = array<i32>} : memref<512x128xf32, #tpu.memory_space<vmem>>, vector<512x128xf32>,
    return
  }
  func.func @transform_0(%arg0: i32) -> (i32, i32) {
    %c0_i32 = arith.constant 0 : i32
    %c0_i32_0 = arith.constant 0 : i32
    return %arg0, %c0_i32 : i32, i32
  }
  func.func @transform_1(%arg0: i32) -> (i32, i32) {
    %c0_i32 = arith.constant 0 : i32
    %c0_i32_0 = arith.constant 0 : i32
    %c0_i32_1 = arith.constant 0 : i32
    return %c0_i32, %c0_i32_0 : i32, i32
  }
  func.func @transform_2(%arg0: i32) -> (i32, i32) {
    %c0_i32 = arith.constant 0 : i32
    %c0_i32_0 = arith.constant 0 : i32
    %c0_i32_1 = arith.constant 0 : i32
    return %c0_i32, %c0_i32_0 : i32, i32
  }
  func.func @transform_3(%arg0: i32) -> (i32, i32) {
    %c0_i32 = arith.constant 0 : i32
    %c0_i32_0 = arith.constant 0 : i32
    %c0_i32_1 = arith.constant 0 : i32
    return %c0_i32, %c0_i32_0 : i32, i32
  }
  func.func @transform_4(%arg0: i32) -> (i32, i32) {
    %c0_i32 = arith.constant 0 : i32
    %c0_i32_0 = arith.constant 0 : i32
    return %arg0, %c0_i32 : i32, i32
  }
}

module attributes {stable_mosaic.version = 11 : i64} {
  func.func @_conv_bn_lrelu_kernel(%arg0: i32, %arg1: memref<128x256xf32, #tpu.memory_space<vmem>>, %arg2: memref<256x128xf32, #tpu.memory_space<vmem>>, %arg3: memref<1x128xf32, #tpu.memory_space<vmem>>, %arg4: memref<1x128xf32, #tpu.memory_space<vmem>>, %arg5: memref<128x128xf32, #tpu.memory_space<vmem>>) attributes {dimension_semantics = [#tpu.dimension_semantics<arbitrary>], iteration_bounds = array<i64: 1>, scalar_prefetch = 0 : i64, scratch_operands = 0 : i64, tpu.core_type = #tpu.core_type<tc>, window_params = [{transform_indices = @transform_0, window_bounds = array<i64: 128, 256>}, {pipeline_mode = #tpu.pipeline_mode<synchronous>, transform_indices = @transform_1, window_bounds = array<i64: 256, 128>}, {pipeline_mode = #tpu.pipeline_mode<synchronous>, transform_indices = @transform_2, window_bounds = array<i64: 1, 128>}, {pipeline_mode = #tpu.pipeline_mode<synchronous>, transform_indices = @transform_3, window_bounds = array<i64: 1, 128>}, {transform_indices = @transform_4, window_bounds = array<i64: 128, 128>}]} {
    %c0 = arith.constant 0 : index
    %c0_0 = arith.constant 0 : index
    %0 = vector.load %arg1[%c0, %c0_0] : memref<128x256xf32, #tpu.memory_space<vmem>>, vector<128x256xf32>
    %c0_1 = arith.constant 0 : index
    %c0_2 = arith.constant 0 : index
    %1 = vector.load %arg2[%c0_1, %c0_2] : memref<256x128xf32, #tpu.memory_space<vmem>>, vector<256x128xf32>
    %cst = arith.constant dense<0.000000e+00> : vector<128x128xf32>
    %2 = tpu.matmul %0, %1, %cst {dimension_numbers = #tpu.dot_dimension_numbers<[1], [0], [0], [1], [0, 0, 1, 1], [], []>} : vector<128x256xf32>, vector<256x128xf32>, vector<128x128xf32> -> vector<128x128xf32>
    %cst_3 = arith.constant dense<0.000000e+00> : vector<128xf32>
    %3 = vector.multi_reduction <add>, %2, %cst_3 [0] : vector<128x128xf32> to vector<128xf32>
    %4 = vector.shape_cast %3 : vector<128xf32> to vector<1x128xf32>
    %cst_4 = arith.constant 7.812500e-03 : f32
    %5 = vector.broadcast %cst_4 : f32 to vector<1x128xf32>
    %6 = arith.mulf %4, %5 : vector<1x128xf32>
    %7 = vector.broadcast %6 : vector<1x128xf32> to vector<128x128xf32>
    %8 = arith.subf %2, %7 : vector<128x128xf32>
    %9 = arith.mulf %8, %8 : vector<128x128xf32>
    %cst_5 = arith.constant dense<0.000000e+00> : vector<128xf32>
    %10 = vector.multi_reduction <add>, %9, %cst_5 [0] : vector<128x128xf32> to vector<128xf32>
    %11 = vector.shape_cast %10 : vector<128xf32> to vector<1x128xf32>
    %cst_6 = arith.constant 7.812500e-03 : f32
    %12 = vector.broadcast %cst_6 : f32 to vector<1x128xf32>
    %13 = arith.mulf %11, %12 : vector<1x128xf32>
    %c0_7 = arith.constant 0 : index
    %c0_8 = arith.constant 0 : index
    %14 = vector.load %arg3[%c0_7, %c0_8] : memref<1x128xf32, #tpu.memory_space<vmem>>, vector<1x128xf32>
    %cst_9 = arith.constant 9.99999974E-6 : f32
    %15 = vector.broadcast %cst_9 : f32 to vector<1x128xf32>
    %16 = arith.addf %13, %15 : vector<1x128xf32>
    %17 = math.rsqrt %16 : vector<1x128xf32>
    %18 = arith.mulf %14, %17 : vector<1x128xf32>
    %19 = vector.broadcast %18 : vector<1x128xf32> to vector<128x128xf32>
    %20 = arith.mulf %8, %19 : vector<128x128xf32>
    %c0_10 = arith.constant 0 : index
    %c0_11 = arith.constant 0 : index
    %21 = vector.load %arg4[%c0_10, %c0_11] : memref<1x128xf32, #tpu.memory_space<vmem>>, vector<1x128xf32>
    %22 = vector.broadcast %21 : vector<1x128xf32> to vector<128x128xf32>
    %23 = arith.addf %20, %22 : vector<128x128xf32>
    %cst_12 = arith.constant 0.000000e+00 : f32
    %24 = vector.broadcast %cst_12 : f32 to vector<128x128xf32>
    %25 = arith.cmpf oge, %23, %24 : vector<128x128xf32>
    %cst_13 = arith.constant 2.000000e-01 : f32
    %26 = vector.broadcast %cst_13 : f32 to vector<128x128xf32>
    %27 = arith.mulf %26, %23 : vector<128x128xf32>
    %28 = arith.select %25, %23, %27 : vector<128x128xi1>, vector<128x128xf32>
    %c0_14 = arith.constant 0 : index
    %c0_15 = arith.constant 0 : index
    %29 = vector.load %arg5[%c0_14, %c0_15] : memref<128x128xf32, #tpu.memory_space<vmem>>, vector<128x128xf32>
    tpu.vector_store %arg5[%c0_14, %c0_15], %28 {strides = array<i32>} : memref<128x128xf32, #tpu.memory_space<vmem>>, vector<128x128xf32>,
    return
  }
  func.func @transform_0(%arg0: i32) -> (i32, i32) {
    %c0_i32 = arith.constant 0 : i32
    %c0_i32_0 = arith.constant 0 : i32
    return %arg0, %c0_i32 : i32, i32
  }
  func.func @transform_1(%arg0: i32) -> (i32, i32) {
    %c0_i32 = arith.constant 0 : i32
    %c0_i32_0 = arith.constant 0 : i32
    %c0_i32_1 = arith.constant 0 : i32
    return %c0_i32, %c0_i32_0 : i32, i32
  }
  func.func @transform_2(%arg0: i32) -> (i32, i32) {
    %c0_i32 = arith.constant 0 : i32
    %c0_i32_0 = arith.constant 0 : i32
    %c0_i32_1 = arith.constant 0 : i32
    return %c0_i32, %c0_i32_0 : i32, i32
  }
  func.func @transform_3(%arg0: i32) -> (i32, i32) {
    %c0_i32 = arith.constant 0 : i32
    %c0_i32_0 = arith.constant 0 : i32
    %c0_i32_1 = arith.constant 0 : i32
    return %c0_i32, %c0_i32_0 : i32, i32
  }
  func.func @transform_4(%arg0: i32) -> (i32, i32) {
    %c0_i32 = arith.constant 0 : i32
    %c0_i32_0 = arith.constant 0 : i32
    return %arg0, %c0_i32 : i32, i32
  }
}

module attributes {stable_mosaic.version = 11 : i64} {
  func.func @_conv_bn_lrelu_kernel(%arg0: i32, %arg1: memref<32x512xf32, #tpu.memory_space<vmem>>, %arg2: memref<512x128xf32, #tpu.memory_space<vmem>>, %arg3: memref<1x128xf32, #tpu.memory_space<vmem>>, %arg4: memref<1x128xf32, #tpu.memory_space<vmem>>, %arg5: memref<32x128xf32, #tpu.memory_space<vmem>>) attributes {dimension_semantics = [#tpu.dimension_semantics<arbitrary>], iteration_bounds = array<i64: 1>, scalar_prefetch = 0 : i64, scratch_operands = 0 : i64, tpu.core_type = #tpu.core_type<tc>, window_params = [{transform_indices = @transform_0, window_bounds = array<i64: 32, 512>}, {pipeline_mode = #tpu.pipeline_mode<synchronous>, transform_indices = @transform_1, window_bounds = array<i64: 512, 128>}, {pipeline_mode = #tpu.pipeline_mode<synchronous>, transform_indices = @transform_2, window_bounds = array<i64: 1, 128>}, {pipeline_mode = #tpu.pipeline_mode<synchronous>, transform_indices = @transform_3, window_bounds = array<i64: 1, 128>}, {transform_indices = @transform_4, window_bounds = array<i64: 32, 128>}]} {
    %c0 = arith.constant 0 : index
    %c0_0 = arith.constant 0 : index
    %0 = vector.load %arg1[%c0, %c0_0] : memref<32x512xf32, #tpu.memory_space<vmem>>, vector<32x512xf32>
    %c0_1 = arith.constant 0 : index
    %c0_2 = arith.constant 0 : index
    %1 = vector.load %arg2[%c0_1, %c0_2] : memref<512x128xf32, #tpu.memory_space<vmem>>, vector<512x128xf32>
    %cst = arith.constant dense<0.000000e+00> : vector<32x128xf32>
    %2 = tpu.matmul %0, %1, %cst {dimension_numbers = #tpu.dot_dimension_numbers<[1], [0], [0], [1], [0, 0, 1, 1], [], []>} : vector<32x512xf32>, vector<512x128xf32>, vector<32x128xf32> -> vector<32x128xf32>
    %cst_3 = arith.constant dense<0.000000e+00> : vector<128xf32>
    %3 = vector.multi_reduction <add>, %2, %cst_3 [0] : vector<32x128xf32> to vector<128xf32>
    %4 = vector.shape_cast %3 : vector<128xf32> to vector<1x128xf32>
    %cst_4 = arith.constant 3.125000e-02 : f32
    %5 = vector.broadcast %cst_4 : f32 to vector<1x128xf32>
    %6 = arith.mulf %4, %5 : vector<1x128xf32>
    %7 = vector.broadcast %6 : vector<1x128xf32> to vector<32x128xf32>
    %8 = arith.subf %2, %7 : vector<32x128xf32>
    %9 = arith.mulf %8, %8 : vector<32x128xf32>
    %cst_5 = arith.constant dense<0.000000e+00> : vector<128xf32>
    %10 = vector.multi_reduction <add>, %9, %cst_5 [0] : vector<32x128xf32> to vector<128xf32>
    %11 = vector.shape_cast %10 : vector<128xf32> to vector<1x128xf32>
    %cst_6 = arith.constant 3.125000e-02 : f32
    %12 = vector.broadcast %cst_6 : f32 to vector<1x128xf32>
    %13 = arith.mulf %11, %12 : vector<1x128xf32>
    %c0_7 = arith.constant 0 : index
    %c0_8 = arith.constant 0 : index
    %14 = vector.load %arg3[%c0_7, %c0_8] : memref<1x128xf32, #tpu.memory_space<vmem>>, vector<1x128xf32>
    %cst_9 = arith.constant 9.99999974E-6 : f32
    %15 = vector.broadcast %cst_9 : f32 to vector<1x128xf32>
    %16 = arith.addf %13, %15 : vector<1x128xf32>
    %17 = math.rsqrt %16 : vector<1x128xf32>
    %18 = arith.mulf %14, %17 : vector<1x128xf32>
    %19 = vector.broadcast %18 : vector<1x128xf32> to vector<32x128xf32>
    %20 = arith.mulf %8, %19 : vector<32x128xf32>
    %c0_10 = arith.constant 0 : index
    %c0_11 = arith.constant 0 : index
    %21 = vector.load %arg4[%c0_10, %c0_11] : memref<1x128xf32, #tpu.memory_space<vmem>>, vector<1x128xf32>
    %22 = vector.broadcast %21 : vector<1x128xf32> to vector<32x128xf32>
    %23 = arith.addf %20, %22 : vector<32x128xf32>
    %cst_12 = arith.constant 0.000000e+00 : f32
    %24 = vector.broadcast %cst_12 : f32 to vector<32x128xf32>
    %25 = arith.cmpf oge, %23, %24 : vector<32x128xf32>
    %cst_13 = arith.constant 2.000000e-01 : f32
    %26 = vector.broadcast %cst_13 : f32 to vector<32x128xf32>
    %27 = arith.mulf %26, %23 : vector<32x128xf32>
    %28 = arith.select %25, %23, %27 : vector<32x128xi1>, vector<32x128xf32>
    %c0_14 = arith.constant 0 : index
    %c0_15 = arith.constant 0 : index
    %29 = vector.load %arg5[%c0_14, %c0_15] : memref<32x128xf32, #tpu.memory_space<vmem>>, vector<32x128xf32>
    tpu.vector_store %arg5[%c0_14, %c0_15], %28 {strides = array<i32>} : memref<32x128xf32, #tpu.memory_space<vmem>>, vector<32x128xf32>,
    return
  }
  func.func @transform_0(%arg0: i32) -> (i32, i32) {
    %c0_i32 = arith.constant 0 : i32
    %c0_i32_0 = arith.constant 0 : i32
    return %arg0, %c0_i32 : i32, i32
  }
  func.func @transform_1(%arg0: i32) -> (i32, i32) {
    %c0_i32 = arith.constant 0 : i32
    %c0_i32_0 = arith.constant 0 : i32
    %c0_i32_1 = arith.constant 0 : i32
    return %c0_i32, %c0_i32_0 : i32, i32
  }
  func.func @transform_2(%arg0: i32) -> (i32, i32) {
    %c0_i32 = arith.constant 0 : i32
    %c0_i32_0 = arith.constant 0 : i32
    %c0_i32_1 = arith.constant 0 : i32
    return %c0_i32, %c0_i32_0 : i32, i32
  }
  func.func @transform_3(%arg0: i32) -> (i32, i32) {
    %c0_i32 = arith.constant 0 : i32
    %c0_i32_0 = arith.constant 0 : i32
    %c0_i32_1 = arith.constant 0 : i32
    return %c0_i32, %c0_i32_0 : i32, i32
  }
  func.func @transform_4(%arg0: i32) -> (i32, i32) {
    %c0_i32 = arith.constant 0 : i32
    %c0_i32_0 = arith.constant 0 : i32
    return %arg0, %c0_i32 : i32, i32
  }
}

module attributes {stable_mosaic.version = 11 : i64} {
  func.func @_conv_bn_lrelu_kernel(%arg0: i32, %arg1: memref<8x1024xf32, #tpu.memory_space<vmem>>, %arg2: memref<1024x128xf32, #tpu.memory_space<vmem>>, %arg3: memref<8x128xf32, #tpu.memory_space<vmem>>) attributes {dimension_semantics = [#tpu.dimension_semantics<arbitrary>], iteration_bounds = array<i64: 1>, scalar_prefetch = 0 : i64, scratch_operands = 0 : i64, tpu.core_type = #tpu.core_type<tc>, window_params = [{transform_indices = @transform_0, window_bounds = array<i64: 8, 1024>}, {pipeline_mode = #tpu.pipeline_mode<synchronous>, transform_indices = @transform_1, window_bounds = array<i64: 1024, 128>}, {transform_indices = @transform_2, window_bounds = array<i64: 8, 128>}]} {
    %c0 = arith.constant 0 : index
    %c0_0 = arith.constant 0 : index
    %0 = vector.load %arg1[%c0, %c0_0] : memref<8x1024xf32, #tpu.memory_space<vmem>>, vector<8x1024xf32>
    %c0_1 = arith.constant 0 : index
    %c0_2 = arith.constant 0 : index
    %1 = vector.load %arg2[%c0_1, %c0_2] : memref<1024x128xf32, #tpu.memory_space<vmem>>, vector<1024x128xf32>
    %cst = arith.constant dense<0.000000e+00> : vector<8x128xf32>
    %2 = tpu.matmul %0, %1, %cst {dimension_numbers = #tpu.dot_dimension_numbers<[1], [0], [0], [1], [0, 0, 1, 1], [], []>} : vector<8x1024xf32>, vector<1024x128xf32>, vector<8x128xf32> -> vector<8x128xf32>
    %c0_3 = arith.constant 0 : index
    %c0_4 = arith.constant 0 : index
    %3 = vector.load %arg3[%c0_3, %c0_4] : memref<8x128xf32, #tpu.memory_space<vmem>>, vector<8x128xf32>
    tpu.vector_store %arg3[%c0_3, %c0_4], %2 {strides = array<i32>} : memref<8x128xf32, #tpu.memory_space<vmem>>, vector<8x128xf32>,
    return
  }
  func.func @transform_0(%arg0: i32) -> (i32, i32) {
    %c0_i32 = arith.constant 0 : i32
    %c0_i32_0 = arith.constant 0 : i32
    return %arg0, %c0_i32 : i32, i32
  }
  func.func @transform_1(%arg0: i32) -> (i32, i32) {
    %c0_i32 = arith.constant 0 : i32
    %c0_i32_0 = arith.constant 0 : i32
    %c0_i32_1 = arith.constant 0 : i32
    return %c0_i32, %c0_i32_0 : i32, i32
  }
  func.func @transform_2(%arg0: i32) -> (i32, i32) {
    %c0_i32 = arith.constant 0 : i32
    %c0_i32_0 = arith.constant 0 : i32
    return %arg0, %c0_i32 : i32, i32
  }
}

</mosaic_0001>

<llo_original>
// kernel: discriminator_forward.5
$region0: #{discriminator_forward.5}
  #allocation0 [shape = 'u32[]', space=smem, size = 0x4, offset = 0x4, fixed_abs, tag = 'smem constant byte address 0x4 - core index']
  #allocation1 [shape = 'u32[72,128]{1,0:T(1,128)}', space=vmem, size = 0x9000, scoped, tag = 'internal scratch']
  %s0 = inlined_call_operand.vmem [shape: f32[2048,16], index: 0, kind: input, shape index: {}]
  %s1 = inlined_call_operand.vmem [shape: f32[16,128], index: 1, kind: input, shape index: {}]
  %s2 = inlined_call_operand.vmem [shape: f32[2048,128], index: 2, kind: output, shape index: {}]
  %s3 = sld [smem:[#allocation0]]
  $region41: #{discriminator_forward.5} parent=0
    _
  %s5 = ssub.s32 1, %s3
  %s6 = scalar_select 0, %s5, %s3
  loop: start=0, step=1, limit=4
  $region2: #{discriminator_forward.5} parent=0 // loop_pre_header
    _
  $region3: #{discriminator_forward.5} parent=0 // loop_header
    %s8 = sphi 0, %s12
    %p9 = scmp.ge.s32.totalorder %s8, 4
    %s18 = sphi 0, %s20
    %s21 = sphi 0, %s18
    %s22 = sphi 0, %s21
    %s38 = sphi 0, %s22
    %s42 = sphi 0, %s42
    %s44 = sphi 0, %s42
    %s45 = sphi 0, %s44
    %s59 = sphi 0, %s45
    %s65 = sphi 0, %s67
    %s68 = sphi 0, %s65
    %s69 = sphi 0, %s68
    %s85 = sphi 0, %s69
  $region4: #{discriminator_forward.5} parent=0 // loop_header_branch
    %11 = sbr.rel (%p9) target = $region8
  $region5: #{discriminator_forward.5} parent=0 // loop_body
    %s13 = ssub.s32 %s8, 1
    %s14 = ssub.s32 %s8, 2
    %s15 = sadd.s32 %s8, 1
    %s16 = ssub.s32 %s8, %s15
    %p17 = scmp.eq.s32.totalorder %s16, 0
    %s19 = sadd.s32 %s18, 1
    %s20 = scalar_select %p17, %s18, %s19
    %p23 = pneg %p17
    %p24 = scmp.eq.s32.totalorder %s8, 1
    %p25 = por %p23, %p24
    %p26 = scmp.ne.s32.totalorder %s18, %s21
    %p27 = scmp.eq.s32.totalorder %s8, 0
    %p28 = por %p26, %p27
    %p29 = scmp.ne.s32.totalorder %s18, %s21
    %p30 = scmp.eq.s32.totalorder %s13, 1
    %p31 = por %p29, %p30
    %p32 = scmp.ne.s32.totalorder %s21, %s22
    %p33 = scmp.eq.s32.totalorder %s13, 0
    %p34 = por %p32, %p33
    %p35 = scmp.ne.s32.totalorder %s21, %s22
    %p36 = scmp.eq.s32.totalorder %s14, 1
    %p37 = por %p35, %p36
    %p39 = scmp.ne.s32.totalorder %s22, %s38
    %p40 = scmp.eq.s32.totalorder %s14, 0
    %p41 = por %p39, %p40
    %s43 = sadd.s32 %s42, 1
    %p46 = scmp.eq.s32.totalorder %s8, 1
    %p47 = scmp.ne.s32.totalorder %s42, %s44
    %p48 = scmp.eq.s32.totalorder %s8, 0
    %p49 = por %p47, %p48
    %p50 = scmp.ne.s32.totalorder %s42, %s44
    %p51 = scmp.eq.s32.totalorder %s13, 1
    %p52 = por %p50, %p51
    %p53 = scmp.ne.s32.totalorder %s44, %s45
    %p54 = scmp.eq.s32.totalorder %s13, 0
    %p55 = por %p53, %p54
    %p56 = scmp.ne.s32.totalorder %s44, %s45
    %p57 = scmp.eq.s32.totalorder %s14, 1
    %p58 = por %p56, %p57
    %p60 = scmp.ne.s32.totalorder %s45, %s59
    %p61 = scmp.eq.s32.totalorder %s14, 0
    %p62 = por %p60, %p61
    %s63 = ssub.s32 %s8, %s15
    %p64 = scmp.eq.s32.totalorder %s63, 0
    %s66 = sadd.s32 %s65, 1
    %s67 = scalar_select %p64, %s65, %s66
    %p70 = pneg %p64
    %p71 = scmp.eq.s32.totalorder %s8, 1
    %p72 = por %p70, %p71
    %p73 = scmp.ne.s32.totalorder %s65, %s68
    %p74 = scmp.eq.s32.totalorder %s8, 0
    %p75 = por %p73, %p74
    %p76 = scmp.ne.s32.totalorder %s65, %s68
    %p77 = scmp.eq.s32.totalorder %s13, 1
    %p78 = por %p76, %p77
    %p79 = scmp.ne.s32.totalorder %s68, %s69
    %p80 = scmp.eq.s32.totalorder %s13, 0
    %p81 = por %p79, %p80
    %p82 = scmp.ne.s32.totalorder %s68, %s69
    %p83 = scmp.eq.s32.totalorder %s14, 1
    %p84 = por %p82, %p83
    %p86 = scmp.ne.s32.totalorder %s69, %s85
    %p87 = scmp.eq.s32.totalorder %s14, 0
    %p88 = por %p86, %p87
    %p89 = scmp.le.s32.totalorder 1, %s8
    %p90 = scmp.lt.s32.totalorder %s8, 3
    %p91 = pnand %p89, %p90
    %p92 = pneg %p91
    // Predicated region
    $region9: #{discriminator_forward.5} parent=5 // pred_check
      _
    $region10: #{discriminator_forward.5} parent=5 // pred_check_branch
      %94 = sbr.rel (%p91) target = $region12
    $region11: #{discriminator_forward.5} parent=5 // pred_region
      %s95 = ssub.s32 %s8, 1
      // Predicated region
      $region13: #{discriminator_forward.5} parent=11 // pred_check
        %p96 = pneg %p55
      $region14: #{discriminator_forward.5} parent=11 // pred_check_branch
        %98 = sbr.rel (%p96) target = $region16
      $region15: #{discriminator_forward.5} parent=11 // pred_region
        _
      $region16: #{discriminator_forward.5} parent=11 // pred_fallthru
        _
    $region12: #{discriminator_forward.5} parent=5 // pred_fallthru
      _
    %p99 = scmp.lt.s32.totalorder %s8, 2
    // Predicated region
    $region17: #{discriminator_forward.5} parent=5 // pred_check
      %p100 = pneg %p99
    $region18: #{discriminator_forward.5} parent=5 // pred_check_branch
      %102 = sbr.rel (%p100) target = $region20
    $region19: #{discriminator_forward.5} parent=5 // pred_region
      // Predicated region
      $region21: #{discriminator_forward.5} parent=19 // pred_check
        %p103 = pneg %p28
      $region22: #{discriminator_forward.5} parent=19 // pred_check_branch
        %105 = sbr.rel (%p103) target = $region24
      $region23: #{discriminator_forward.5} parent=19 // pred_region
        %s106 = smul.u32 128, %s8
        %p107 = scmp.lt.s32.totalorder %s106, 255
        %s108 = scalar_select %p107, %s106, 255
        %s109 = smul.addr %s108, 8
        %s110 = scalar_lea.vmem %s0, %s109
        %s111 = smul.u32 128, %s8
      $region24: #{discriminator_forward.5} parent=19 // pred_fallthru
        _
    $region20: #{discriminator_forward.5} parent=5 // pred_fallthru
      _
    %p112 = scmp.le.s32.totalorder 1, %s8
    %p113 = scmp.lt.s32.totalorder %s8, 3
    %p114 = pnand %p112, %p113
    %p115 = pneg %p114
    // Predicated region
    $region25: #{discriminator_forward.5} parent=5 // pred_check
      _
    $region26: #{discriminator_forward.5} parent=5 // pred_check_branch
      %117 = sbr.rel (%p114) target = $region28
    $region27: #{discriminator_forward.5} parent=5 // pred_region
      %s118 = ssub.s32 %s8, 1
      %s119 = smul.u32 128, %s13
      %p120 = scmp.lt.s32.totalorder %s119, 255
      %s121 = scalar_select %p120, %s119, 255
      %s122 = smul.addr %s121, 8
      %s123 = scalar_lea.vmem %s0, %s122
      %p124 = pneg %p34
      %p125 = pneg %p31
      %p126 = pneg %p55
      %p127 = pneg %p52
      %p128 = pneg %p81
      %p129 = pneg %p78
      %s130 = smul.u32 128, %s13
      %p131 = scmp.lt.s32.totalorder %s130, 255
      %s132 = scalar_select %p131, %s130, 255
      %s133 = smul.addr %s132, 8
      %s134 = scalar_lea.vmem %s2, %s133
      %s135 = smul.u32 128, %s13
      %p136 = scmp.lt.s32.totalorder %s135, 255
      %s137 = scalar_select %p136, %s135, 255
      %s138 = smul.addr %s137, 8
      %s139 = scalar_lea.vmem %s0, %s138
      %s140 = smul.u32 128, %s13
      %s141 = smul.u32 128, %s13
      %p142 = scmp.lt.s32.totalorder %s141, 255
      %s143 = scalar_select %p142, %s141, 255
      %s144 = smul.addr %s143, 8
      %s145 = scalar_lea.vmem %s2, %s144
      %s146 = smul.u32 128, %s13
      %v147 = vld [vmem:[%s139] sm:$0xff]
      %v148 = vld [vmem:[%s139 + $0x8] sm:$0xff]
      %v149 = vld [vmem:[%s139 + $0x10] sm:$0xff]
      %v150 = vld [vmem:[%s139 + $0x18] sm:$0xff]
      %v151 = vld [vmem:[%s139 + $0x20] sm:$0xff]
      %v152 = vld [vmem:[%s139 + $0x28] sm:$0xff]
      %v153 = vld [vmem:[%s139 + $0x30] sm:$0xff]
      %v154 = vld [vmem:[%s139 + $0x38] sm:$0xff]
      %v155 = vld [vmem:[%s139 + $0x40] sm:$0xff]
      %v156 = vld [vmem:[%s139 + $0x48] sm:$0xff]
      %v157 = vld [vmem:[%s139 + $0x50] sm:$0xff]
      %v158 = vld [vmem:[%s139 + $0x58] sm:$0xff]
      %v159 = vld [vmem:[%s139 + $0x60] sm:$0xff]
      %v160 = vld [vmem:[%s139 + $0x68] sm:$0xff]
      %v161 = vld [vmem:[%s139 + $0x70] sm:$0xff]
      %v162 = vld [vmem:[%s139 + $0x78] sm:$0xff]
      %v163 = vld [vmem:[%s139 + $0x80] sm:$0xff]
      %v164 = vld [vmem:[%s139 + $0x88] sm:$0xff]
      %v165 = vld [vmem:[%s139 + $0x90] sm:$0xff]
      %v166 = vld [vmem:[%s139 + $0x98] sm:$0xff]
      %v167 = vld [vmem:[%s139 + $0xa0] sm:$0xff]
      %v168 = vld [vmem:[%s139 + $0xa8] sm:$0xff]
      %v169 = vld [vmem:[%s139 + $0xb0] sm:$0xff]
      %v170 = vld [vmem:[%s139 + $0xb8] sm:$0xff]
      %v171 = vld [vmem:[%s139 + $0xc0] sm:$0xff]
      %v172 = vld [vmem:[%s139 + $0xc8] sm:$0xff]
      %v173 = vld [vmem:[%s139 + $0xd0] sm:$0xff]
      %v174 = vld [vmem:[%s139 + $0xd8] sm:$0xff]
      %v175 = vld [vmem:[%s139 + $0xe0] sm:$0xff]
      %v176 = vld [vmem:[%s139 + $0xe8] sm:$0xff]
      %v177 = vld [vmem:[%s139 + $0xf0] sm:$0xff]
      %v178 = vld [vmem:[%s139 + $0xf8] sm:$0xff]
      %v179 = vld [vmem:[%s139 + $0x100] sm:$0xff]
      %v180 = vld [vmem:[%s139 + $0x108] sm:$0xff]
      %v181 = vld [vmem:[%s139 + $0x110] sm:$0xff]
      %v182 = vld [vmem:[%s139 + $0x118] sm:$0xff]
      %v183 = vld [vmem:[%s139 + $0x120] sm:$0xff]
      %v184 = vld [vmem:[%s139 + $0x128] sm:$0xff]
      %v185 = vld [vmem:[%s139 + $0x130] sm:$0xff]
      %v186 = vld [vmem:[%s139 + $0x138] sm:$0xff]
      %v187 = vld [vmem:[%s139 + $0x140] sm:$0xff]
      %v188 = vld [vmem:[%s139 + $0x148] sm:$0xff]
      %v189 = vld [vmem:[%s139 + $0x150] sm:$0xff]
      %v190 = vld [vmem:[%s139 + $0x158] sm:$0xff]
      %v191 = vld [vmem:[%s139 + $0x160] sm:$0xff]
      %v192 = vld [vmem:[%s139 + $0x168] sm:$0xff]
      %v193 = vld [vmem:[%s139 + $0x170] sm:$0xff]
      %v194 = vld [vmem:[%s139 + $0x178] sm:$0xff]
      %v195 = vld [vmem:[%s139 + $0x180] sm:$0xff]
      %v196 = vld [vmem:[%s139 + $0x188] sm:$0xff]
      %v197 = vld [vmem:[%s139 + $0x190] sm:$0xff]
      %v198 = vld [vmem:[%s139 + $0x198] sm:$0xff]
      %v199 = vld [vmem:[%s139 + $0x1a0] sm:$0xff]
      %v200 = vld [vmem:[%s139 + $0x1a8] sm:$0xff]
      %v201 = vld [vmem:[%s139 + $0x1b0] sm:$0xff]
      %v202 = vld [vmem:[%s139 + $0x1b8] sm:$0xff]
      %v203 = vld [vmem:[%s139 + $0x1c0] sm:$0xff]
      %v204 = vld [vmem:[%s139 + $0x1c8] sm:$0xff]
      %v205 = vld [vmem:[%s139 + $0x1d0] sm:$0xff]
      %v206 = vld [vmem:[%s139 + $0x1d8] sm:$0xff]
      %v207 = vld [vmem:[%s139 + $0x1e0] sm:$0xff]
      %v208 = vld [vmem:[%s139 + $0x1e8] sm:$0xff]
      %v209 = vld [vmem:[%s139 + $0x1f0] sm:$0xff]
      %v210 = vld [vmem:[%s139 + $0x1f8] sm:$0xff]
      %v211 = vld [vmem:[%s139 + $0x200] sm:$0xff]
      %v212 = vld [vmem:[%s139 + $0x208] sm:$0xff]
      %v213 = vld [vmem:[%s139 + $0x210] sm:$0xff]
      %v214 = vld [vmem:[%s139 + $0x218] sm:$0xff]
      %v215 = vld [vmem:[%s139 + $0x220] sm:$0xff]
      %v216 = vld [vmem:[%s139 + $0x228] sm:$0xff]
      %v217 = vld [vmem:[%s139 + $0x230] sm:$0xff]
      %v218 = vld [vmem:[%s139 + $0x238] sm:$0xff]
      %v219 = vld [vmem:[%s139 + $0x240] sm:$0xff]
      %v220 = vld [vmem:[%s139 + $0x248] sm:$0xff]
      %v221 = vld [vmem:[%s139 + $0x250] sm:$0xff]
      %v222 = vld [vmem:[%s139 + $0x258] sm:$0xff]
      %v223 = vld [vmem:[%s139 + $0x260] sm:$0xff]
      %v224 = vld [vmem:[%s139 + $0x268] sm:$0xff]
      %v225 = vld [vmem:[%s139 + $0x270] sm:$0xff]
      %v226 = vld [vmem:[%s139 + $0x278] sm:$0xff]
      %v227 = vld [vmem:[%s139 + $0x280] sm:$0xff]
      %v228 = vld [vmem:[%s139 + $0x288] sm:$0xff]
      %v229 = vld [vmem:[%s139 + $0x290] sm:$0xff]
      %v230 = vld [vmem:[%s139 + $0x298] sm:$0xff]
      %v231 = vld [vmem:[%s139 + $0x2a0] sm:$0xff]
      %v232 = vld [vmem:[%s139 + $0x2a8] sm:$0xff]
      %v233 = vld [vmem:[%s139 + $0x2b0] sm:$0xff]
      %v234 = vld [vmem:[%s139 + $0x2b8] sm:$0xff]
      %v235 = vld [vmem:[%s139 + $0x2c0] sm:$0xff]
      %v236 = vld [vmem:[%s139 + $0x2c8] sm:$0xff]
      %v237 = vld [vmem:[%s139 + $0x2d0] sm:$0xff]
      %v238 = vld [vmem:[%s139 + $0x2d8] sm:$0xff]
      %v239 = vld [vmem:[%s139 + $0x2e0] sm:$0xff]
      %v240 = vld [vmem:[%s139 + $0x2e8] sm:$0xff]
      %v241 = vld [vmem:[%s139 + $0x2f0] sm:$0xff]
      %v242 = vld [vmem:[%s139 + $0x2f8] sm:$0xff]
      %v243 = vld [vmem:[%s139 + $0x300] sm:$0xff]
      %v244 = vld [vmem:[%s139 + $0x308] sm:$0xff]
      %v245 = vld [vmem:[%s139 + $0x310] sm:$0xff]
      %v246 = vld [vmem:[%s139 + $0x318] sm:$0xff]
      %v247 = vld [vmem:[%s139 + $0x320] sm:$0xff]
      %v248 = vld [vmem:[%s139 + $0x328] sm:$0xff]
      %v249 = vld [vmem:[%s139 + $0x330] sm:$0xff]
      %v250 = vld [vmem:[%s139 + $0x338] sm:$0xff]
      %v251 = vld [vmem:[%s139 + $0x340] sm:$0xff]
      %v252 = vld [vmem:[%s139 + $0x348] sm:$0xff]
      %v253 = vld [vmem:[%s139 + $0x350] sm:$0xff]
      %v254 = vld [vmem:[%s139 + $0x358] sm:$0xff]
      %v255 = vld [vmem:[%s139 + $0x360] sm:$0xff]
      %v256 = vld [vmem:[%s139 + $0x368] sm:$0xff]
      %v257 = vld [vmem:[%s139 + $0x370] sm:$0xff]
      %v258 = vld [vmem:[%s139 + $0x378] sm:$0xff]
      %v259 = vld [vmem:[%s139 + $0x380] sm:$0xff]
      %v260 = vld [vmem:[%s139 + $0x388] sm:$0xff]
      %v261 = vld [vmem:[%s139 + $0x390] sm:$0xff]
      %v262 = vld [vmem:[%s139 + $0x398] sm:$0xff]
      %v263 = vld [vmem:[%s139 + $0x3a0] sm:$0xff]
      %v264 = vld [vmem:[%s139 + $0x3a8] sm:$0xff]
      %v265 = vld [vmem:[%s139 + $0x3b0] sm:$0xff]
      %v266 = vld [vmem:[%s139 + $0x3b8] sm:$0xff]
      %v267 = vld [vmem:[%s139 + $0x3c0] sm:$0xff]
      %v268 = vld [vmem:[%s139 + $0x3c8] sm:$0xff]
      %v269 = vld [vmem:[%s139 + $0x3d0] sm:$0xff]
      %v270 = vld [vmem:[%s139 + $0x3d8] sm:$0xff]
      %v271 = vld [vmem:[%s139 + $0x3e0] sm:$0xff]
      %v272 = vld [vmem:[%s139 + $0x3e8] sm:$0xff]
      %v273 = vld [vmem:[%s139 + $0x3f0] sm:$0xff]
      %v274 = vld [vmem:[%s139 + $0x3f8] sm:$0xff]
      %v275 = vld [vmem:[%s1] sm:$0xff]
      %v276 = vld [vmem:[%s1 + $0x8] sm:$0xff]
      %vm277 = vcmask 130048
      %v279 = vsel %vm277, %v147, 0
      %v282 = vsel %vm277, %v148, 0
      %v285 = vsel %vm277, %v149, 0
      %v288 = vsel %vm277, %v150, 0
      %v291 = vsel %vm277, %v151, 0
      %v294 = vsel %vm277, %v152, 0
      %v297 = vsel %vm277, %v153, 0
      %v300 = vsel %vm277, %v154, 0
      %v303 = vsel %vm277, %v155, 0
      %v306 = vsel %vm277, %v156, 0
      %v309 = vsel %vm277, %v157, 0
      %v312 = vsel %vm277, %v158, 0
      %v315 = vsel %vm277, %v159, 0
      %v318 = vsel %vm277, %v160, 0
      %v321 = vsel %vm277, %v161, 0
      %v324 = vsel %vm277, %v162, 0
      %v327 = vsel %vm277, %v163, 0
      %v330 = vsel %vm277, %v164, 0
      %v333 = vsel %vm277, %v165, 0
      %v336 = vsel %vm277, %v166, 0
      %v339 = vsel %vm277, %v167, 0
      %v342 = vsel %vm277, %v168, 0
      %v345 = vsel %vm277, %v169, 0
      %v348 = vsel %vm277, %v170, 0
      %v351 = vsel %vm277, %v171, 0
      %v354 = vsel %vm277, %v172, 0
      %v357 = vsel %vm277, %v173, 0
      %v360 = vsel %vm277, %v174, 0
      %v363 = vsel %vm277, %v175, 0
      %v366 = vsel %vm277, %v176, 0
      %v369 = vsel %vm277, %v177, 0
      %v372 = vsel %vm277, %v178, 0
      %v375 = vsel %vm277, %v179, 0
      %v378 = vsel %vm277, %v180, 0
      %v381 = vsel %vm277, %v181, 0
      %v384 = vsel %vm277, %v182, 0
      %v387 = vsel %vm277, %v183, 0
      %v390 = vsel %vm277, %v184, 0
      %v393 = vsel %vm277, %v185, 0
      %v396 = vsel %vm277, %v186, 0
      %v399 = vsel %vm277, %v187, 0
      %v402 = vsel %vm277, %v188, 0
      %v405 = vsel %vm277, %v189, 0
      %v408 = vsel %vm277, %v190, 0
      %v411 = vsel %vm277, %v191, 0
      %v414 = vsel %vm277, %v192, 0
      %v417 = vsel %vm277, %v193, 0
      %v420 = vsel %vm277, %v194, 0
      %v423 = vsel %vm277, %v195, 0
      %v426 = vsel %vm277, %v196, 0
      %v429 = vsel %vm277, %v197, 0
      %v432 = vsel %vm277, %v198, 0
      %v435 = vsel %vm277, %v199, 0
      %v438 = vsel %vm277, %v200, 0
      %v441 = vsel %vm277, %v201, 0
      %v444 = vsel %vm277, %v202, 0
      %v447 = vsel %vm277, %v203, 0
      %v450 = vsel %vm277, %v204, 0
      %v453 = vsel %vm277, %v205, 0
      %v456 = vsel %vm277, %v206, 0
      %v459 = vsel %vm277, %v207, 0
      %v462 = vsel %vm277, %v208, 0
      %v465 = vsel %vm277, %v209, 0
      %v468 = vsel %vm277, %v210, 0
      %v471 = vsel %vm277, %v211, 0
      %v474 = vsel %vm277, %v212, 0
      %v477 = vsel %vm277, %v213, 0
      %v480 = vsel %vm277, %v214, 0
      %v483 = vsel %vm277, %v215, 0
      %v486 = vsel %vm277, %v216, 0
      %v489 = vsel %vm277, %v217, 0
      %v492 = vsel %vm277, %v218, 0
      %v495 = vsel %vm277, %v219, 0
      %v498 = vsel %vm277, %v220, 0
      %v501 = vsel %vm277, %v221, 0
      %v504 = vsel %vm277, %v222, 0
      %v507 = vsel %vm277, %v223, 0
      %v510 = vsel %vm277, %v224, 0
      %v513 = vsel %vm277, %v225, 0
      %v516 = vsel %vm277, %v226, 0
      %v519 = vsel %vm277, %v227, 0
      %v522 = vsel %vm277, %v228, 0
      %v525 = vsel %vm277, %v229, 0
      %v528 = vsel %vm277, %v230, 0
      %v531 = vsel %vm277, %v231, 0
      %v534 = vsel %vm277, %v232, 0
      %v537 = vsel %vm277, %v233, 0
      %v540 = vsel %vm277, %v234, 0
      %v543 = vsel %vm277, %v235, 0
      %v546 = vsel %vm277, %v236, 0
      %v549 = vsel %vm277, %v237, 0
      %v552 = vsel %vm277, %v238, 0
      %v555 = vsel %vm277, %v239, 0
      %v558 = vsel %vm277, %v240, 0
      %v561 = vsel %vm277, %v241, 0
      %v564 = vsel %vm277, %v242, 0
      %v567 = vsel %vm277, %v243, 0
      %v570 = vsel %vm277, %v244, 0
      %v573 = vsel %vm277, %v245, 0
      %v576 = vsel %vm277, %v246, 0
      %v579 = vsel %vm277, %v247, 0
      %v582 = vsel %vm277, %v248, 0
      %v585 = vsel %vm277, %v249, 0
      %v588 = vsel %vm277, %v250, 0
      %v591 = vsel %vm277, %v251, 0
      %v594 = vsel %vm277, %v252, 0
      %v597 = vsel %vm277, %v253, 0
      %v600 = vsel %vm277, %v254, 0
      %v603 = vsel %vm277, %v255, 0
      %v606 = vsel %vm277, %v256, 0
      %v609 = vsel %vm277, %v257, 0
      %v612 = vsel %vm277, %v258, 0
      %v615 = vsel %vm277, %v259, 0
      %v618 = vsel %vm277, %v260, 0
      %v621 = vsel %vm277, %v261, 0
      %v624 = vsel %vm277, %v262, 0
      %v627 = vsel %vm277, %v263, 0
      %v630 = vsel %vm277, %v264, 0
      %v633 = vsel %vm277, %v265, 0
      %v636 = vsel %vm277, %v266, 0
      %v639 = vsel %vm277, %v267, 0
      %v642 = vsel %vm277, %v268, 0
      %v645 = vsel %vm277, %v269, 0
      %v648 = vsel %vm277, %v270, 0
      %v651 = vsel %vm277, %v271, 0
      %v654 = vsel %vm277, %v272, 0
      %v657 = vsel %vm277, %v273, 0
      %v660 = vsel %vm277, %v274, 0
      %662 = vmatpush.msra.mxu0 0.0
      %663 = vmatpush.msra.mxu0 0.0
      %664 = vmatpush.msra.mxu0 0.0
      %665 = vmatpush.msra.mxu0 0.0
      %666 = vmatpush.msra.mxu0 0.0
      %667 = vmatpush.msra.mxu0 0.0
      %668 = vmatpush.msra.mxu0 0.0
      %669 = vmatpush.msra.mxu0 0.0
      %670 = vmatpush.msra.mxu0 0.0
      %671 = vmatpush.msra.mxu0 0.0
      %672 = vmatpush.msra.mxu0 0.0
      %673 = vmatpush.msra.mxu0 0.0
      %674 = vmatpush.msra.mxu0 0.0
      %675 = vmatpush.msra.mxu0 0.0
      %676 = vmatpush.msra.mxu0 %v276
      %677 = vmatpush.msra.mxu0 %v275
      %678 = vmatmul.f32.gmra.mxu0 %v279
      %v679 = vpop.f32.mrf.mxu0
      %v680 = vadd.f32 0.0, %v679
      %681 = vmatmul.f32.gmra.mxu0 %v282
      %v682 = vpop.f32.mrf.mxu0
      %v683 = vadd.f32 0.0, %v682
      %684 = vmatmul.f32.gmra.mxu0 %v285
      %v685 = vpop.f32.mrf.mxu0
      %v686 = vadd.f32 0.0, %v685
      %687 = vmatmul.f32.gmra.mxu0 %v288
      %v688 = vpop.f32.mrf.mxu0
      %v689 = vadd.f32 0.0, %v688
      %690 = vmatmul.f32.gmra.mxu0 %v291
      %v691 = vpop.f32.mrf.mxu0
      %v692 = vadd.f32 0.0, %v691
      %693 = vmatmul.f32.gmra.mxu0 %v294
      %v694 = vpop.f32.mrf.mxu0
      %v695 = vadd.f32 0.0, %v694
      %696 = vmatmul.f32.gmra.mxu0 %v297
      %v697 = vpop.f32.mrf.mxu0
      %v698 = vadd.f32 0.0, %v697
      %699 = vmatmul.f32.gmra.mxu0 %v300
      %v700 = vpop.f32.mrf.mxu0
      %v701 = vadd.f32 0.0, %v700
      %702 = vmatmul.f32.gmra.mxu0 %v303
      %v703 = vpop.f32.mrf.mxu0
      %v704 = vadd.f32 0.0, %v703
      %705 = vmatmul.f32.gmra.mxu0 %v306
      %v706 = vpop.f32.mrf.mxu0
      %v707 = vadd.f32 0.0, %v706
      %708 = vmatmul.f32.gmra.mxu0 %v309
      %v709 = vpop.f32.mrf.mxu0
      %v710 = vadd.f32 0.0, %v709
      %711 = vmatmul.f32.gmra.mxu0 %v312
      %v712 = vpop.f32.mrf.mxu0
      %v713 = vadd.f32 0.0, %v712
      %714 = vmatmul.f32.gmra.mxu0 %v315
      %v715 = vpop.f32.mrf.mxu0
      %v716 = vadd.f32 0.0, %v715
      %717 = vmatmul.f32.gmra.mxu0 %v318
      %v718 = vpop.f32.mrf.mxu0
      %v719 = vadd.f32 0.0, %v718
      %720 = vmatmul.f32.gmra.mxu0 %v321
      %v721 = vpop.f32.mrf.mxu0
      %v722 = vadd.f32 0.0, %v721
      %723 = vmatmul.f32.gmra.mxu0 %v324
      %v724 = vpop.f32.mrf.mxu0
      %v725 = vadd.f32 0.0, %v724
      %726 = vmatmul.f32.gmra.mxu0 %v327
      %v727 = vpop.f32.mrf.mxu0
      %v728 = vadd.f32 0.0, %v727
      %729 = vmatmul.f32.gmra.mxu0 %v330
      %v730 = vpop.f32.mrf.mxu0
      %v731 = vadd.f32 0.0, %v730
      %732 = vmatmul.f32.gmra.mxu0 %v333
      %v733 = vpop.f32.mrf.mxu0
      %v734 = vadd.f32 0.0, %v733
      %735 = vmatmul.f32.gmra.mxu0 %v336
      %v736 = vpop.f32.mrf.mxu0
      %v737 = vadd.f32 0.0, %v736
      %738 = vmatmul.f32.gmra.mxu0 %v339
      %v739 = vpop.f32.mrf.mxu0
      %v740 = vadd.f32 0.0, %v739
      %741 = vmatmul.f32.gmra.mxu0 %v342
      %v742 = vpop.f32.mrf.mxu0
      %v743 = vadd.f32 0.0, %v742
      %744 = vmatmul.f32.gmra.mxu0 %v345
      %v745 = vpop.f32.mrf.mxu0
      %v746 = vadd.f32 0.0, %v745
      %747 = vmatmul.f32.gmra.mxu0 %v348
      %v748 = vpop.f32.mrf.mxu0
      %v749 = vadd.f32 0.0, %v748
      %750 = vmatmul.f32.gmra.mxu0 %v351
      %v751 = vpop.f32.mrf.mxu0
      %v752 = vadd.f32 0.0, %v751
      %753 = vmatmul.f32.gmra.mxu0 %v354
      %v754 = vpop.f32.mrf.mxu0
      %v755 = vadd.f32 0.0, %v754
      %756 = vmatmul.f32.gmra.mxu0 %v357
      %v757 = vpop.f32.mrf.mxu0
      %v758 = vadd.f32 0.0, %v757
      %759 = vmatmul.f32.gmra.mxu0 %v360
      %v760 = vpop.f32.mrf.mxu0
      %v761 = vadd.f32 0.0, %v760
      %762 = vmatmul.f32.gmra.mxu0 %v363
      %v763 = vpop.f32.mrf.mxu0
      %v764 = vadd.f32 0.0, %v763
      %765 = vmatmul.f32.gmra.mxu0 %v366
      %v766 = vpop.f32.mrf.mxu0
      %v767 = vadd.f32 0.0, %v766
      %768 = vmatmul.f32.gmra.mxu0 %v369
      %v769 = vpop.f32.mrf.mxu0
      %v770 = vadd.f32 0.0, %v769
      %771 = vmatmul.f32.gmra.mxu0 %v372
      %v772 = vpop.f32.mrf.mxu0
      %v773 = vadd.f32 0.0, %v772
      %774 = vmatmul.f32.gmra.mxu0 %v375
      %v775 = vpop.f32.mrf.mxu0
      %v776 = vadd.f32 0.0, %v775
      %777 = vmatmul.f32.gmra.mxu0 %v378
      %v778 = vpop.f32.mrf.mxu0
      %v779 = vadd.f32 0.0, %v778
      %780 = vmatmul.f32.gmra.mxu0 %v381
      %v781 = vpop.f32.mrf.mxu0
      %v782 = vadd.f32 0.0, %v781
      %783 = vmatmul.f32.gmra.mxu0 %v384
      %v784 = vpop.f32.mrf.mxu0
      %v785 = vadd.f32 0.0, %v784
      %786 = vmatmul.f32.gmra.mxu0 %v387
      %v787 = vpop.f32.mrf.mxu0
      %v788 = vadd.f32 0.0, %v787
      %789 = vmatmul.f32.gmra.mxu0 %v390
      %v790 = vpop.f32.mrf.mxu0
      %v791 = vadd.f32 0.0, %v790
      %792 = vmatmul.f32.gmra.mxu0 %v393
      %v793 = vpop.f32.mrf.mxu0
      %v794 = vadd.f32 0.0, %v793
      %795 = vmatmul.f32.gmra.mxu0 %v396
      %v796 = vpop.f32.mrf.mxu0
      %v797 = vadd.f32 0.0, %v796
      %798 = vmatmul.f32.gmra.mxu0 %v399
      %v799 = vpop.f32.mrf.mxu0
      %v800 = vadd.f32 0.0, %v799
      %801 = vmatmul.f32.gmra.mxu0 %v402
      %v802 = vpop.f32.mrf.mxu0
      %v803 = vadd.f32 0.0, %v802
      %804 = vmatmul.f32.gmra.mxu0 %v405
      %v805 = vpop.f32.mrf.mxu0
      %v806 = vadd.f32 0.0, %v805
      %807 = vmatmul.f32.gmra.mxu0 %v408
      %v808 = vpop.f32.mrf.mxu0
      %v809 = vadd.f32 0.0, %v808
      %810 = vmatmul.f32.gmra.mxu0 %v411
      %v811 = vpop.f32.mrf.mxu0
      %v812 = vadd.f32 0.0, %v811
      %813 = vmatmul.f32.gmra.mxu0 %v414
      %v814 = vpop.f32.mrf.mxu0
      %v815 = vadd.f32 0.0, %v814
      %816 = vmatmul.f32.gmra.mxu0 %v417
      %v817 = vpop.f32.mrf.mxu0
      %v818 = vadd.f32 0.0, %v817
      %819 = vmatmul.f32.gmra.mxu0 %v420
      %v820 = vpop.f32.mrf.mxu0
      %v821 = vadd.f32 0.0, %v820
      %822 = vmatmul.f32.gmra.mxu0 %v423
      %v823 = vpop.f32.mrf.mxu0
      %v824 = vadd.f32 0.0, %v823
      %825 = vmatmul.f32.gmra.mxu0 %v426
      %v826 = vpop.f32.mrf.mxu0
      %v827 = vadd.f32 0.0, %v826
      %828 = vmatmul.f32.gmra.mxu0 %v429
      %v829 = vpop.f32.mrf.mxu0
      %v830 = vadd.f32 0.0, %v829
      %831 = vmatmul.f32.gmra.mxu0 %v432
      %v832 = vpop.f32.mrf.mxu0
      %v833 = vadd.f32 0.0, %v832
      %834 = vmatmul.f32.gmra.mxu0 %v435
      %v835 = vpop.f32.mrf.mxu0
      %v836 = vadd.f32 0.0, %v835
      %837 = vmatmul.f32.gmra.mxu0 %v438
      %v838 = vpop.f32.mrf.mxu0
      %v839 = vadd.f32 0.0, %v838
      %840 = vmatmul.f32.gmra.mxu0 %v441
      %v841 = vpop.f32.mrf.mxu0
      %v842 = vadd.f32 0.0, %v841
      %843 = vmatmul.f32.gmra.mxu0 %v444
      %v844 = vpop.f32.mrf.mxu0
      %v845 = vadd.f32 0.0, %v844
      %846 = vmatmul.f32.gmra.mxu0 %v447
      %v847 = vpop.f32.mrf.mxu0
      %v848 = vadd.f32 0.0, %v847
      %849 = vmatmul.f32.gmra.mxu0 %v450
      %v850 = vpop.f32.mrf.mxu0
      %v851 = vadd.f32 0.0, %v850
      %852 = vmatmul.f32.gmra.mxu0 %v453
      %v853 = vpop.f32.mrf.mxu0
      %v854 = vadd.f32 0.0, %v853
      %855 = vmatmul.f32.gmra.mxu0 %v456
      %v856 = vpop.f32.mrf.mxu0
      %v857 = vadd.f32 0.0, %v856
      %858 = vmatmul.f32.gmra.mxu0 %v459
      %v859 = vpop.f32.mrf.mxu0
      %v860 = vadd.f32 0.0, %v859
      %861 = vmatmul.f32.gmra.mxu0 %v462
      %v862 = vpop.f32.mrf.mxu0
      %v863 = vadd.f32 0.0, %v862
      %864 = vmatmul.f32.gmra.mxu0 %v465
      %v865 = vpop.f32.mrf.mxu0
      %v866 = vadd.f32 0.0, %v865
      %867 = vmatmul.f32.gmra.mxu0 %v468
      %v868 = vpop.f32.mrf.mxu0
      %v869 = vadd.f32 0.0, %v868
      %870 = vmatmul.f32.gmra.mxu0 %v471
      %v871 = vpop.f32.mrf.mxu0
      %v872 = vadd.f32 0.0, %v871
      %873 = vmatmul.f32.gmra.mxu0 %v474
      %v874 = vpop.f32.mrf.mxu0
      %v875 = vadd.f32 0.0, %v874
      %876 = vmatmul.f32.gmra.mxu0 %v477
      %v877 = vpop.f32.mrf.mxu0
      %v878 = vadd.f32 0.0, %v877
      %879 = vmatmul.f32.gmra.mxu0 %v480
      %v880 = vpop.f32.mrf.mxu0
      %v881 = vadd.f32 0.0, %v880
      %882 = vmatmul.f32.gmra.mxu0 %v483
      %v883 = vpop.f32.mrf.mxu0
      %v884 = vadd.f32 0.0, %v883
      %885 = vmatmul.f32.gmra.mxu0 %v486
      %v886 = vpop.f32.mrf.mxu0
      %v887 = vadd.f32 0.0, %v886
      %888 = vmatmul.f32.gmra.mxu0 %v489
      %v889 = vpop.f32.mrf.mxu0
      %v890 = vadd.f32 0.0, %v889
      %891 = vmatmul.f32.gmra.mxu0 %v492
      %v892 = vpop.f32.mrf.mxu0
      %v893 = vadd.f32 0.0, %v892
      %894 = vmatmul.f32.gmra.mxu0 %v495
      %v895 = vpop.f32.mrf.mxu0
      %v896 = vadd.f32 0.0, %v895
      %897 = vmatmul.f32.gmra.mxu0 %v498
      %v898 = vpop.f32.mrf.mxu0
      %v899 = vadd.f32 0.0, %v898
      %900 = vmatmul.f32.gmra.mxu0 %v501
      %v901 = vpop.f32.mrf.mxu0
      %v902 = vadd.f32 0.0, %v901
      %903 = vmatmul.f32.gmra.mxu0 %v504
      %v904 = vpop.f32.mrf.mxu0
      %v905 = vadd.f32 0.0, %v904
      %906 = vmatmul.f32.gmra.mxu0 %v507
      %v907 = vpop.f32.mrf.mxu0
      %v908 = vadd.f32 0.0, %v907
      %909 = vmatmul.f32.gmra.mxu0 %v510
      %v910 = vpop.f32.mrf.mxu0
      %v911 = vadd.f32 0.0, %v910
      %912 = vmatmul.f32.gmra.mxu0 %v513
      %v913 = vpop.f32.mrf.mxu0
      %v914 = vadd.f32 0.0, %v913
      %915 = vmatmul.f32.gmra.mxu0 %v516
      %v916 = vpop.f32.mrf.mxu0
      %v917 = vadd.f32 0.0, %v916
      %918 = vmatmul.f32.gmra.mxu0 %v519
      %v919 = vpop.f32.mrf.mxu0
      %v920 = vadd.f32 0.0, %v919
      %921 = vmatmul.f32.gmra.mxu0 %v522
      %v922 = vpop.f32.mrf.mxu0
      %v923 = vadd.f32 0.0, %v922
      %924 = vmatmul.f32.gmra.mxu0 %v525
      %v925 = vpop.f32.mrf.mxu0
      %v926 = vadd.f32 0.0, %v925
      %927 = vmatmul.f32.gmra.mxu0 %v528
      %v928 = vpop.f32.mrf.mxu0
      %v929 = vadd.f32 0.0, %v928
      %930 = vmatmul.f32.gmra.mxu0 %v531
      %v931 = vpop.f32.mrf.mxu0
      %v932 = vadd.f32 0.0, %v931
      %933 = vmatmul.f32.gmra.mxu0 %v534
      %v934 = vpop.f32.mrf.mxu0
      %v935 = vadd.f32 0.0, %v934
      %936 = vmatmul.f32.gmra.mxu0 %v537
      %v937 = vpop.f32.mrf.mxu0
      %v938 = vadd.f32 0.0, %v937
      %939 = vmatmul.f32.gmra.mxu0 %v540
      %v940 = vpop.f32.mrf.mxu0
      %v941 = vadd.f32 0.0, %v940
      %942 = vmatmul.f32.gmra.mxu0 %v543
      %v943 = vpop.f32.mrf.mxu0
      %v944 = vadd.f32 0.0, %v943
      %945 = vmatmul.f32.gmra.mxu0 %v546
      %v946 = vpop.f32.mrf.mxu0
      %v947 = vadd.f32 0.0, %v946
      %948 = vmatmul.f32.gmra.mxu0 %v549
      %v949 = vpop.f32.mrf.mxu0
      %v950 = vadd.f32 0.0, %v949
      %951 = vmatmul.f32.gmra.mxu0 %v552
      %v952 = vpop.f32.mrf.mxu0
      %v953 = vadd.f32 0.0, %v952
      %954 = vmatmul.f32.gmra.mxu0 %v555
      %v955 = vpop.f32.mrf.mxu0
      %v956 = vadd.f32 0.0, %v955
      %957 = vmatmul.f32.gmra.mxu0 %v558
      %v958 = vpop.f32.mrf.mxu0
      %v959 = vadd.f32 0.0, %v958
      %960 = vmatmul.f32.gmra.mxu0 %v561
      %v961 = vpop.f32.mrf.mxu0
      %v962 = vadd.f32 0.0, %v961
      %963 = vmatmul.f32.gmra.mxu0 %v564
      %v964 = vpop.f32.mrf.mxu0
      %v965 = vadd.f32 0.0, %v964
      %966 = vmatmul.f32.gmra.mxu0 %v567
      %v967 = vpop.f32.mrf.mxu0
      %v968 = vadd.f32 0.0, %v967
      %969 = vmatmul.f32.gmra.mxu0 %v570
      %v970 = vpop.f32.mrf.mxu0
      %v971 = vadd.f32 0.0, %v970
      %972 = vmatmul.f32.gmra.mxu0 %v573
      %v973 = vpop.f32.mrf.mxu0
      %v974 = vadd.f32 0.0, %v973
      %975 = vmatmul.f32.gmra.mxu0 %v576
      %v976 = vpop.f32.mrf.mxu0
      %v977 = vadd.f32 0.0, %v976
      %978 = vmatmul.f32.gmra.mxu0 %v579
      %v979 = vpop.f32.mrf.mxu0
      %v980 = vadd.f32 0.0, %v979
      %981 = vmatmul.f32.gmra.mxu0 %v582
      %v982 = vpop.f32.mrf.mxu0
      %v983 = vadd.f32 0.0, %v982
      %984 = vmatmul.f32.gmra.mxu0 %v585
      %v985 = vpop.f32.mrf.mxu0
      %v986 = vadd.f32 0.0, %v985
      %987 = vmatmul.f32.gmra.mxu0 %v588
      %v988 = vpop.f32.mrf.mxu0
      %v989 = vadd.f32 0.0, %v988
      %990 = vmatmul.f32.gmra.mxu0 %v591
      %v991 = vpop.f32.mrf.mxu0
      %v992 = vadd.f32 0.0, %v991
      %993 = vmatmul.f32.gmra.mxu0 %v594
      %v994 = vpop.f32.mrf.mxu0
      %v995 = vadd.f32 0.0, %v994
      %996 = vmatmul.f32.gmra.mxu0 %v597
      %v997 = vpop.f32.mrf.mxu0
      %v998 = vadd.f32 0.0, %v997
      %999 = vmatmul.f32.gmra.mxu0 %v600
      %v1000 = vpop.f32.mrf.mxu0
      %v1001 = vadd.f32 0.0, %v1000
      %1002 = vmatmul.f32.gmra.mxu0 %v603
      %v1003 = vpop.f32.mrf.mxu0
      %v1004 = vadd.f32 0.0, %v1003
      %1005 = vmatmul.f32.gmra.mxu0 %v606
      %v1006 = vpop.f32.mrf.mxu0
      %v1007 = vadd.f32 0.0, %v1006
      %1008 = vmatmul.f32.gmra.mxu0 %v609
      %v1009 = vpop.f32.mrf.mxu0
      %v1010 = vadd.f32 0.0, %v1009
      %1011 = vmatmul.f32.gmra.mxu0 %v612
      %v1012 = vpop.f32.mrf.mxu0
      %v1013 = vadd.f32 0.0, %v1012
      %1014 = vmatmul.f32.gmra.mxu0 %v615
      %v1015 = vpop.f32.mrf.mxu0
      %v1016 = vadd.f32 0.0, %v1015
      %1017 = vmatmul.f32.gmra.mxu0 %v618
      %v1018 = vpop.f32.mrf.mxu0
      %v1019 = vadd.f32 0.0, %v1018
      %1020 = vmatmul.f32.gmra.mxu0 %v621
      %v1021 = vpop.f32.mrf.mxu0
      %v1022 = vadd.f32 0.0, %v1021
      %1023 = vmatmul.f32.gmra.mxu0 %v624
      %v1024 = vpop.f32.mrf.mxu0
      %v1025 = vadd.f32 0.0, %v1024
      %1026 = vmatmul.f32.gmra.mxu0 %v627
      %v1027 = vpop.f32.mrf.mxu0
      %v1028 = vadd.f32 0.0, %v1027
      %1029 = vmatmul.f32.gmra.mxu0 %v630
      %v1030 = vpop.f32.mrf.mxu0
      %v1031 = vadd.f32 0.0, %v1030
      %1032 = vmatmul.f32.gmra.mxu0 %v633
      %v1033 = vpop.f32.mrf.mxu0
      %v1034 = vadd.f32 0.0, %v1033
      %1035 = vmatmul.f32.gmra.mxu0 %v636
      %v1036 = vpop.f32.mrf.mxu0
      %v1037 = vadd.f32 0.0, %v1036
      %1038 = vmatmul.f32.gmra.mxu0 %v639
      %v1039 = vpop.f32.mrf.mxu0
      %v1040 = vadd.f32 0.0, %v1039
      %1041 = vmatmul.f32.gmra.mxu0 %v642
      %v1042 = vpop.f32.mrf.mxu0
      %v1043 = vadd.f32 0.0, %v1042
      %1044 = vmatmul.f32.gmra.mxu0 %v645
      %v1045 = vpop.f32.mrf.mxu0
      %v1046 = vadd.f32 0.0, %v1045
      %1047 = vmatmul.f32.gmra.mxu0 %v648
      %v1048 = vpop.f32.mrf.mxu0
      %v1049 = vadd.f32 0.0, %v1048
      %1050 = vmatmul.f32.gmra.mxu0 %v651
      %v1051 = vpop.f32.mrf.mxu0
      %v1052 = vadd.f32 0.0, %v1051
      %1053 = vmatmul.f32.gmra.mxu0 %v654
      %v1054 = vpop.f32.mrf.mxu0
      %v1055 = vadd.f32 0.0, %v1054
      %1056 = vmatmul.f32.gmra.mxu0 %v657
      %v1057 = vpop.f32.mrf.mxu0
      %v1058 = vadd.f32 0.0, %v1057
      %1059 = vmatmul.f32.gmra.mxu0 %v660
      %v1060 = vpop.f32.mrf.mxu0
      %v1061 = vadd.f32 0.0, %v1060
      %1062 = vdwg.mxu0
      %vm1063 = vcmp.ge.f32.partialorder %v680, 0.0
      %vm1064 = vcmp.ge.f32.partialorder %v683, 0.0
      %vm1065 = vcmp.ge.f32.partialorder %v686, 0.0
      %vm1066 = vcmp.ge.f32.partialorder %v689, 0.0
      %vm1067 = vcmp.ge.f32.partialorder %v692, 0.0
      %vm1068 = vcmp.ge.f32.partialorder %v695, 0.0
      %vm1069 = vcmp.ge.f32.partialorder %v698, 0.0
      %vm1070 = vcmp.ge.f32.partialorder %v701, 0.0
      %vm1071 = vcmp.ge.f32.partialorder %v704, 0.0
      %vm1072 = vcmp.ge.f32.partialorder %v707, 0.0
      %vm1073 = vcmp.ge.f32.partialorder %v710, 0.0
      %vm1074 = vcmp.ge.f32.partialorder %v713, 0.0
      %vm1075 = vcmp.ge.f32.partialorder %v716, 0.0
      %vm1076 = vcmp.ge.f32.partialorder %v719, 0.0
      %vm1077 = vcmp.ge.f32.partialorder %v722, 0.0
      %vm1078 = vcmp.ge.f32.partialorder %v725, 0.0
      %vm1079 = vcmp.ge.f32.partialorder %v728, 0.0
      %vm1080 = vcmp.ge.f32.partialorder %v731, 0.0
      %vm1081 = vcmp.ge.f32.partialorder %v734, 0.0
      %vm1082 = vcmp.ge.f32.partialorder %v737, 0.0
      %vm1083 = vcmp.ge.f32.partialorder %v740, 0.0
      %vm1084 = vcmp.ge.f32.partialorder %v743, 0.0
      %vm1085 = vcmp.ge.f32.partialorder %v746, 0.0
      %vm1086 = vcmp.ge.f32.partialorder %v749, 0.0
      %vm1087 = vcmp.ge.f32.partialorder %v752, 0.0
      %vm1088 = vcmp.ge.f32.partialorder %v755, 0.0
      %vm1089 = vcmp.ge.f32.partialorder %v758, 0.0
      %vm1090 = vcmp.ge.f32.partialorder %v761, 0.0
      %vm1091 = vcmp.ge.f32.partialorder %v764, 0.0
      %vm1092 = vcmp.ge.f32.partialorder %v767, 0.0
      %vm1093 = vcmp.ge.f32.partialorder %v770, 0.0
      %vm1094 = vcmp.ge.f32.partialorder %v773, 0.0
      %vm1095 = vcmp.ge.f32.partialorder %v776, 0.0
      %vm1096 = vcmp.ge.f32.partialorder %v779, 0.0
      %vm1097 = vcmp.ge.f32.partialorder %v782, 0.0
      %vm1098 = vcmp.ge.f32.partialorder %v785, 0.0
      %vm1099 = vcmp.ge.f32.partialorder %v788, 0.0
      %vm1100 = vcmp.ge.f32.partialorder %v791, 0.0
      %vm1101 = vcmp.ge.f32.partialorder %v794, 0.0
      %vm1102 = vcmp.ge.f32.partialorder %v797, 0.0
      %vm1103 = vcmp.ge.f32.partialorder %v800, 0.0
      %vm1104 = vcmp.ge.f32.partialorder %v803, 0.0
      %vm1105 = vcmp.ge.f32.partialorder %v806, 0.0
      %vm1106 = vcmp.ge.f32.partialorder %v809, 0.0
      %vm1107 = vcmp.ge.f32.partialorder %v812, 0.0
      %vm1108 = vcmp.ge.f32.partialorder %v815, 0.0
      %vm1109 = vcmp.ge.f32.partialorder %v818, 0.0
      %vm1110 = vcmp.ge.f32.partialorder %v821, 0.0
      %vm1111 = vcmp.ge.f32.partialorder %v824, 0.0
      %vm1112 = vcmp.ge.f32.partialorder %v827, 0.0
      %vm1113 = vcmp.ge.f32.partialorder %v830, 0.0
      %vm1114 = vcmp.ge.f32.partialorder %v833, 0.0
      %vm1115 = vcmp.ge.f32.partialorder %v836, 0.0
      %vm1116 = vcmp.ge.f32.partialorder %v839, 0.0
      %vm1117 = vcmp.ge.f32.partialorder %v842, 0.0
      %vm1118 = vcmp.ge.f32.partialorder %v845, 0.0
      %vm1119 = vcmp.ge.f32.partialorder %v848, 0.0
      %vm1120 = vcmp.ge.f32.partialorder %v851, 0.0
      %vm1121 = vcmp.ge.f32.partialorder %v854, 0.0
      %vm1122 = vcmp.ge.f32.partialorder %v857, 0.0
      %vm1123 = vcmp.ge.f32.partialorder %v860, 0.0
      %vm1124 = vcmp.ge.f32.partialorder %v863, 0.0
      %vm1125 = vcmp.ge.f32.partialorder %v866, 0.0
      %vm1126 = vcmp.ge.f32.partialorder %v869, 0.0
      %vm1127 = vcmp.ge.f32.partialorder %v872, 0.0
      %vm1128 = vcmp.ge.f32.partialorder %v875, 0.0
      %vm1129 = vcmp.ge.f32.partialorder %v878, 0.0
      %vm1130 = vcmp.ge.f32.partialorder %v881, 0.0
      %vm1131 = vcmp.ge.f32.partialorder %v884, 0.0
      %vm1132 = vcmp.ge.f32.partialorder %v887, 0.0
      %vm1133 = vcmp.ge.f32.partialorder %v890, 0.0
      %vm1134 = vcmp.ge.f32.partialorder %v893, 0.0
      %vm1135 = vcmp.ge.f32.partialorder %v896, 0.0
      %vm1136 = vcmp.ge.f32.partialorder %v899, 0.0
      %vm1137 = vcmp.ge.f32.partialorder %v902, 0.0
      %vm1138 = vcmp.ge.f32.partialorder %v905, 0.0
      %vm1139 = vcmp.ge.f32.partialorder %v908, 0.0
      %vm1140 = vcmp.ge.f32.partialorder %v911, 0.0
      %vm1141 = vcmp.ge.f32.partialorder %v914, 0.0
      %vm1142 = vcmp.ge.f32.partialorder %v917, 0.0
      %vm1143 = vcmp.ge.f32.partialorder %v920, 0.0
      %vm1144 = vcmp.ge.f32.partialorder %v923, 0.0
      %vm1145 = vcmp.ge.f32.partialorder %v926, 0.0
      %vm1146 = vcmp.ge.f32.partialorder %v929, 0.0
      %vm1147 = vcmp.ge.f32.partialorder %v932, 0.0
      %vm1148 = vcmp.ge.f32.partialorder %v935, 0.0
      %vm1149 = vcmp.ge.f32.partialorder %v938, 0.0
      %vm1150 = vcmp.ge.f32.partialorder %v941, 0.0
      %vm1151 = vcmp.ge.f32.partialorder %v944, 0.0
      %vm1152 = vcmp.ge.f32.partialorder %v947, 0.0
      %vm1153 = vcmp.ge.f32.partialorder %v950, 0.0
      %vm1154 = vcmp.ge.f32.partialorder %v953, 0.0
      %vm1155 = vcmp.ge.f32.partialorder %v956, 0.0
      %vm1156 = vcmp.ge.f32.partialorder %v959, 0.0
      %vm1157 = vcmp.ge.f32.partialorder %v962, 0.0
      %vm1158 = vcmp.ge.f32.partialorder %v965, 0.0
      %vm1159 = vcmp.ge.f32.partialorder %v968, 0.0
      %vm1160 = vcmp.ge.f32.partialorder %v971, 0.0
      %vm1161 = vcmp.ge.f32.partialorder %v974, 0.0
      %vm1162 = vcmp.ge.f32.partialorder %v977, 0.0
      %vm1163 = vcmp.ge.f32.partialorder %v980, 0.0
      %vm1164 = vcmp.ge.f32.partialorder %v983, 0.0
      %vm1165 = vcmp.ge.f32.partialorder %v986, 0.0
      %vm1166 = vcmp.ge.f32.partialorder %v989, 0.0
      %vm1167 = vcmp.ge.f32.partialorder %v992, 0.0
      %vm1168 = vcmp.ge.f32.partialorder %v995, 0.0
      %vm1169 = vcmp.ge.f32.partialorder %v998, 0.0
      %vm1170 = vcmp.ge.f32.partialorder %v1001, 0.0
      %vm1171 = vcmp.ge.f32.partialorder %v1004, 0.0
      %vm1172 = vcmp.ge.f32.partialorder %v1007, 0.0
      %vm1173 = vcmp.ge.f32.partialorder %v1010, 0.0
      %vm1174 = vcmp.ge.f32.partialorder %v1013, 0.0
      %vm1175 = vcmp.ge.f32.partialorder %v1016, 0.0
      %vm1176 = vcmp.ge.f32.partialorder %v1019, 0.0
      %vm1177 = vcmp.ge.f32.partialorder %v1022, 0.0
      %vm1178 = vcmp.ge.f32.partialorder %v1025, 0.0
      %vm1179 = vcmp.ge.f32.partialorder %v1028, 0.0
      %vm1180 = vcmp.ge.f32.partialorder %v1031, 0.0
      %vm1181 = vcmp.ge.f32.partialorder %v1034, 0.0
      %vm1182 = vcmp.ge.f32.partialorder %v1037, 0.0
      %vm1183 = vcmp.ge.f32.partialorder %v1040, 0.0
      %vm1184 = vcmp.ge.f32.partialorder %v1043, 0.0
      %vm1185 = vcmp.ge.f32.partialorder %v1046, 0.0
      %vm1186 = vcmp.ge.f32.partialorder %v1049, 0.0
      %vm1187 = vcmp.ge.f32.partialorder %v1052, 0.0
      %vm1188 = vcmp.ge.f32.partialorder %v1055, 0.0
      %vm1189 = vcmp.ge.f32.partialorder %v1058, 0.0
      %vm1190 = vcmp.ge.f32.partialorder %v1061, 0.0
      %v1191 = vmul.f32 %v680, 0.2
      %v1192 = vmul.f32 %v683, 0.2
      %v1193 = vmul.f32 %v686, 0.2
      %v1194 = vmul.f32 %v689, 0.2
      %v1195 = vmul.f32 %v692, 0.2
      %v1196 = vmul.f32 %v695, 0.2
      %v1197 = vmul.f32 %v698, 0.2
      %v1198 = vmul.f32 %v701, 0.2
      %v1199 = vmul.f32 %v704, 0.2
      %v1200 = vmul.f32 %v707, 0.2
      %v1201 = vmul.f32 %v710, 0.2
      %v1202 = vmul.f32 %v713, 0.2
      %v1203 = vmul.f32 %v716, 0.2
      %v1204 = vmul.f32 %v719, 0.2
      %v1205 = vmul.f32 %v722, 0.2
      %v1206 = vmul.f32 %v725, 0.2
      %v1207 = vmul.f32 %v728, 0.2
      %v1208 = vmul.f32 %v731, 0.2
      %v1209 = vmul.f32 %v734, 0.2
      %v1210 = vmul.f32 %v737, 0.2
      %v1211 = vmul.f32 %v740, 0.2
      %v1212 = vmul.f32 %v743, 0.2
      %v1213 = vmul.f32 %v746, 0.2
      %v1214 = vmul.f32 %v749, 0.2
      %v1215 = vmul.f32 %v752, 0.2
      %v1216 = vmul.f32 %v755, 0.2
      %v1217 = vmul.f32 %v758, 0.2
      %v1218 = vmul.f32 %v761, 0.2
      %v1219 = vmul.f32 %v764, 0.2
      %v1220 = vmul.f32 %v767, 0.2
      %v1221 = vmul.f32 %v770, 0.2
      %v1222 = vmul.f32 %v773, 0.2
      %v1223 = vmul.f32 %v776, 0.2
      %v1224 = vmul.f32 %v779, 0.2
      %v1225 = vmul.f32 %v782, 0.2
      %v1226 = vmul.f32 %v785, 0.2
      %v1227 = vmul.f32 %v788, 0.2
      %v1228 = vmul.f32 %v791, 0.2
      %v1229 = vmul.f32 %v794, 0.2
      %v1230 = vmul.f32 %v797, 0.2
      %v1231 = vmul.f32 %v800, 0.2
      %v1232 = vmul.f32 %v803, 0.2
      %v1233 = vmul.f32 %v806, 0.2
      %v1234 = vmul.f32 %v809, 0.2
      %v1235 = vmul.f32 %v812, 0.2
      %v1236 = vmul.f32 %v815, 0.2
      %v1237 = vmul.f32 %v818, 0.2
      %v1238 = vmul.f32 %v821, 0.2
      %v1239 = vmul.f32 %v824, 0.2
      %v1240 = vmul.f32 %v827, 0.2
      %v1241 = vmul.f32 %v830, 0.2
      %v1242 = vmul.f32 %v833, 0.2
      %v1243 = vmul.f32 %v836, 0.2
      %v1244 = vmul.f32 %v839, 0.2
      %v1245 = vmul.f32 %v842, 0.2
      %v1246 = vmul.f32 %v845, 0.2
      %v1247 = vmul.f32 %v848, 0.2
      %v1248 = vmul.f32 %v851, 0.2
      %v1249 = vmul.f32 %v854, 0.2
      %v1250 = vmul.f32 %v857, 0.2
      %v1251 = vmul.f32 %v860, 0.2
      %v1252 = vmul.f32 %v863, 0.2
      %v1253 = vmul.f32 %v866, 0.2
      %v1254 = vmul.f32 %v869, 0.2
      %v1255 = vmul.f32 %v872, 0.2
      %v1256 = vmul.f32 %v875, 0.2
      %v1257 = vmul.f32 %v878, 0.2
      %v1258 = vmul.f32 %v881, 0.2
      %v1259 = vmul.f32 %v884, 0.2
      %v1260 = vmul.f32 %v887, 0.2
      %v1261 = vmul.f32 %v890, 0.2
      %v1262 = vmul.f32 %v893, 0.2
      %v1263 = vmul.f32 %v896, 0.2
      %v1264 = vmul.f32 %v899, 0.2
      %v1265 = vmul.f32 %v902, 0.2
      %v1266 = vmul.f32 %v905, 0.2
      %v1267 = vmul.f32 %v908, 0.2
      %v1268 = vmul.f32 %v911, 0.2
      %v1269 = vmul.f32 %v914, 0.2
      %v1270 = vmul.f32 %v917, 0.2
      %v1271 = vmul.f32 %v920, 0.2
      %v1272 = vmul.f32 %v923, 0.2
      %v1273 = vmul.f32 %v926, 0.2
      %v1274 = vmul.f32 %v929, 0.2
      %v1275 = vmul.f32 %v932, 0.2
      %v1276 = vmul.f32 %v935, 0.2
      %v1277 = vmul.f32 %v938, 0.2
      %v1278 = vmul.f32 %v941, 0.2
      %v1279 = vmul.f32 %v944, 0.2
      %v1280 = vmul.f32 %v947, 0.2
      %v1281 = vmul.f32 %v950, 0.2
      %v1282 = vmul.f32 %v953, 0.2
      %v1283 = vmul.f32 %v956, 0.2
      %v1284 = vmul.f32 %v959, 0.2
      %v1285 = vmul.f32 %v962, 0.2
      %v1286 = vmul.f32 %v965, 0.2
      %v1287 = vmul.f32 %v968, 0.2
      %v1288 = vmul.f32 %v971, 0.2
      %v1289 = vmul.f32 %v974, 0.2
      %v1290 = vmul.f32 %v977, 0.2
      %v1291 = vmul.f32 %v980, 0.2
      %v1292 = vmul.f32 %v983, 0.2
      %v1293 = vmul.f32 %v986, 0.2
      %v1294 = vmul.f32 %v989, 0.2
      %v1295 = vmul.f32 %v992, 0.2
      %v1296 = vmul.f32 %v995, 0.2
      %v1297 = vmul.f32 %v998, 0.2
      %v1298 = vmul.f32 %v1001, 0.2
      %v1299 = vmul.f32 %v1004, 0.2
      %v1300 = vmul.f32 %v1007, 0.2
      %v1301 = vmul.f32 %v1010, 0.2
      %v1302 = vmul.f32 %v1013, 0.2
      %v1303 = vmul.f32 %v1016, 0.2
      %v1304 = vmul.f32 %v1019, 0.2
      %v1305 = vmul.f32 %v1022, 0.2
      %v1306 = vmul.f32 %v1025, 0.2
      %v1307 = vmul.f32 %v1028, 0.2
      %v1308 = vmul.f32 %v1031, 0.2
      %v1309 = vmul.f32 %v1034, 0.2
      %v1310 = vmul.f32 %v1037, 0.2
      %v1311 = vmul.f32 %v1040, 0.2
      %v1312 = vmul.f32 %v1043, 0.2
      %v1313 = vmul.f32 %v1046, 0.2
      %v1314 = vmul.f32 %v1049, 0.2
      %v1315 = vmul.f32 %v1052, 0.2
      %v1316 = vmul.f32 %v1055, 0.2
      %v1317 = vmul.f32 %v1058, 0.2
      %v1318 = vmul.f32 %v1061, 0.2
      %v1319 = vsel %vm1063, %v680, %v1191
      %v1320 = vsel %vm1064, %v683, %v1192
      %v1321 = vsel %vm1065, %v686, %v1193
      %v1322 = vsel %vm1066, %v689, %v1194
      %v1323 = vsel %vm1067, %v692, %v1195
      %v1324 = vsel %vm1068, %v695, %v1196
      %v1325 = vsel %vm1069, %v698, %v1197
      %v1326 = vsel %vm1070, %v701, %v1198
      %v1327 = vsel %vm1071, %v704, %v1199
      %v1328 = vsel %vm1072, %v707, %v1200
      %v1329 = vsel %vm1073, %v710, %v1201
      %v1330 = vsel %vm1074, %v713, %v1202
      %v1331 = vsel %vm1075, %v716, %v1203
      %v1332 = vsel %vm1076, %v719, %v1204
      %v1333 = vsel %vm1077, %v722, %v1205
      %v1334 = vsel %vm1078, %v725, %v1206
      %v1335 = vsel %vm1079, %v728, %v1207
      %v1336 = vsel %vm1080, %v731, %v1208
      %v1337 = vsel %vm1081, %v734, %v1209
      %v1338 = vsel %vm1082, %v737, %v1210
      %v1339 = vsel %vm1083, %v740, %v1211
      %v1340 = vsel %vm1084, %v743, %v1212
      %v1341 = vsel %vm1085, %v746, %v1213
      %v1342 = vsel %vm1086, %v749, %v1214
      %v1343 = vsel %vm1087, %v752, %v1215
      %v1344 = vsel %vm1088, %v755, %v1216
      %v1345 = vsel %vm1089, %v758, %v1217
      %v1346 = vsel %vm1090, %v761, %v1218
      %v1347 = vsel %vm1091, %v764, %v1219
      %v1348 = vsel %vm1092, %v767, %v1220
      %v1349 = vsel %vm1093, %v770, %v1221
      %v1350 = vsel %vm1094, %v773, %v1222
      %v1351 = vsel %vm1095, %v776, %v1223
      %v1352 = vsel %vm1096, %v779, %v1224
      %v1353 = vsel %vm1097, %v782, %v1225
      %v1354 = vsel %vm1098, %v785, %v1226
      %v1355 = vsel %vm1099, %v788, %v1227
      %v1356 = vsel %vm1100, %v791, %v1228
      %v1357 = vsel %vm1101, %v794, %v1229
      %v1358 = vsel %vm1102, %v797, %v1230
      %v1359 = vsel %vm1103, %v800, %v1231
      %v1360 = vsel %vm1104, %v803, %v1232
      %v1361 = vsel %vm1105, %v806, %v1233
      %v1362 = vsel %vm1106, %v809, %v1234
      %v1363 = vsel %vm1107, %v812, %v1235
      %v1364 = vsel %vm1108, %v815, %v1236
      %v1365 = vsel %vm1109, %v818, %v1237
      %v1366 = vsel %vm1110, %v821, %v1238
      %v1367 = vsel %vm1111, %v824, %v1239
      %v1368 = vsel %vm1112, %v827, %v1240
      %v1369 = vsel %vm1113, %v830, %v1241
      %v1370 = vsel %vm1114, %v833, %v1242
      %v1371 = vsel %vm1115, %v836, %v1243
      %v1372 = vsel %vm1116, %v839, %v1244
      %v1373 = vsel %vm1117, %v842, %v1245
      %v1374 = vsel %vm1118, %v845, %v1246
      %v1375 = vsel %vm1119, %v848, %v1247
      %v1376 = vsel %vm1120, %v851, %v1248
      %v1377 = vsel %vm1121, %v854, %v1249
      %v1378 = vsel %vm1122, %v857, %v1250
      %v1379 = vsel %vm1123, %v860, %v1251
      %v1380 = vsel %vm1124, %v863, %v1252
      %v1381 = vsel %vm1125, %v866, %v1253
      %v1382 = vsel %vm1126, %v869, %v1254
      %v1383 = vsel %vm1127, %v872, %v1255
      %v1384 = vsel %vm1128, %v875, %v1256
      %v1385 = vsel %vm1129, %v878, %v1257
      %v1386 = vsel %vm1130, %v881, %v1258
      %v1387 = vsel %vm1131, %v884, %v1259
      %v1388 = vsel %vm1132, %v887, %v1260
      %v1389 = vsel %vm1133, %v890, %v1261
      %v1390 = vsel %vm1134, %v893, %v1262
      %v1391 = vsel %vm1135, %v896, %v1263
      %v1392 = vsel %vm1136, %v899, %v1264
      %v1393 = vsel %vm1137, %v902, %v1265
      %v1394 = vsel %vm1138, %v905, %v1266
      %v1395 = vsel %vm1139, %v908, %v1267
      %v1396 = vsel %vm1140, %v911, %v1268
      %v1397 = vsel %vm1141, %v914, %v1269
      %v1398 = vsel %vm1142, %v917, %v1270
      %v1399 = vsel %vm1143, %v920, %v1271
      %v1400 = vsel %vm1144, %v923, %v1272
      %v1401 = vsel %vm1145, %v926, %v1273
      %v1402 = vsel %vm1146, %v929, %v1274
      %v1403 = vsel %vm1147, %v932, %v1275
      %v1404 = vsel %vm1148, %v935, %v1276
      %v1405 = vsel %vm1149, %v938, %v1277
      %v1406 = vsel %vm1150, %v941, %v1278
      %v1407 = vsel %vm1151, %v944, %v1279
      %v1408 = vsel %vm1152, %v947, %v1280
      %v1409 = vsel %vm1153, %v950, %v1281
      %v1410 = vsel %vm1154, %v953, %v1282
      %v1411 = vsel %vm1155, %v956, %v1283
      %v1412 = vsel %vm1156, %v959, %v1284
      %v1413 = vsel %vm1157, %v962, %v1285
      %v1414 = vsel %vm1158, %v965, %v1286
      %v1415 = vsel %vm1159, %v968, %v1287
      %v1416 = vsel %vm1160, %v971, %v1288
      %v1417 = vsel %vm1161, %v974, %v1289
      %v1418 = vsel %vm1162, %v977, %v1290
      %v1419 = vsel %vm1163, %v980, %v1291
      %v1420 = vsel %vm1164, %v983, %v1292
      %v1421 = vsel %vm1165, %v986, %v1293
      %v1422 = vsel %vm1166, %v989, %v1294
      %v1423 = vsel %vm1167, %v992, %v1295
      %v1424 = vsel %vm1168, %v995, %v1296
      %v1425 = vsel %vm1169, %v998, %v1297
      %v1426 = vsel %vm1170, %v1001, %v1298
      %v1427 = vsel %vm1171, %v1004, %v1299
      %v1428 = vsel %vm1172, %v1007, %v1300
      %v1429 = vsel %vm1173, %v1010, %v1301
      %v1430 = vsel %vm1174, %v1013, %v1302
      %v1431 = vsel %vm1175, %v1016, %v1303
      %v1432 = vsel %vm1176, %v1019, %v1304
      %v1433 = vsel %vm1177, %v1022, %v1305
      %v1434 = vsel %vm1178, %v1025, %v1306
      %v1435 = vsel %vm1179, %v1028, %v1307
      %v1436 = vsel %vm1180, %v1031, %v1308
      %v1437 = vsel %vm1181, %v1034, %v1309
      %v1438 = vsel %vm1182, %v1037, %v1310
      %v1439 = vsel %vm1183, %v1040, %v1311
      %v1440 = vsel %vm1184, %v1043, %v1312
      %v1441 = vsel %vm1185, %v1046, %v1313
      %v1442 = vsel %vm1186, %v1049, %v1314
      %v1443 = vsel %vm1187, %v1052, %v1315
      %v1444 = vsel %vm1188, %v1055, %v1316
      %v1445 = vsel %vm1189, %v1058, %v1317
      %v1446 = vsel %vm1190, %v1061, %v1318
      %1447 = vst [vmem:[%s145] sm:$0xff] %v1319
      %1448 = vst [vmem:[%s145 + $0x8] sm:$0xff] %v1320
      %1449 = vst [vmem:[%s145 + $0x10] sm:$0xff] %v1321
      %1450 = vst [vmem:[%s145 + $0x18] sm:$0xff] %v1322
      %1451 = vst [vmem:[%s145 + $0x20] sm:$0xff] %v1323
      %1452 = vst [vmem:[%s145 + $0x28] sm:$0xff] %v1324
      %1453 = vst [vmem:[%s145 + $0x30] sm:$0xff] %v1325
      %1454 = vst [vmem:[%s145 + $0x38] sm:$0xff] %v1326
      %1455 = vst [vmem:[%s145 + $0x40] sm:$0xff] %v1327
      %1456 = vst [vmem:[%s145 + $0x48] sm:$0xff] %v1328
      %1457 = vst [vmem:[%s145 + $0x50] sm:$0xff] %v1329
      %1458 = vst [vmem:[%s145 + $0x58] sm:$0xff] %v1330
      %1459 = vst [vmem:[%s145 + $0x60] sm:$0xff] %v1331
      %1460 = vst [vmem:[%s145 + $0x68] sm:$0xff] %v1332
      %1461 = vst [vmem:[%s145 + $0x70] sm:$0xff] %v1333
      %1462 = vst [vmem:[%s145 + $0x78] sm:$0xff] %v1334
      %1463 = vst [vmem:[%s145 + $0x80] sm:$0xff] %v1335
      %1464 = vst [vmem:[%s145 + $0x88] sm:$0xff] %v1336
      %1465 = vst [vmem:[%s145 + $0x90] sm:$0xff] %v1337
      %1466 = vst [vmem:[%s145 + $0x98] sm:$0xff] %v1338
      %1467 = vst [vmem:[%s145 + $0xa0] sm:$0xff] %v1339
      %1468 = vst [vmem:[%s145 + $0xa8] sm:$0xff] %v1340
      %1469 = vst [vmem:[%s145 + $0xb0] sm:$0xff] %v1341
      %1470 = vst [vmem:[%s145 + $0xb8] sm:$0xff] %v1342
      %1471 = vst [vmem:[%s145 + $0xc0] sm:$0xff] %v1343
      %1472 = vst [vmem:[%s145 + $0xc8] sm:$0xff] %v1344
      %1473 = vst [vmem:[%s145 + $0xd0] sm:$0xff] %v1345
      %1474 = vst [vmem:[%s145 + $0xd8] sm:$0xff] %v1346
      %1475 = vst [vmem:[%s145 + $0xe0] sm:$0xff] %v1347
      %1476 = vst [vmem:[%s145 + $0xe8] sm:$0xff] %v1348
      %1477 = vst [vmem:[%s145 + $0xf0] sm:$0xff] %v1349
      %1478 = vst [vmem:[%s145 + $0xf8] sm:$0xff] %v1350
      %1479 = vst [vmem:[%s145 + $0x100] sm:$0xff] %v1351
      %1480 = vst [vmem:[%s145 + $0x108] sm:$0xff] %v1352
      %1481 = vst [vmem:[%s145 + $0x110] sm:$0xff] %v1353
      %1482 = vst [vmem:[%s145 + $0x118] sm:$0xff] %v1354
      %1483 = vst [vmem:[%s145 + $0x120] sm:$0xff] %v1355
      %1484 = vst [vmem:[%s145 + $0x128] sm:$0xff] %v1356
      %1485 = vst [vmem:[%s145 + $0x130] sm:$0xff] %v1357
      %1486 = vst [vmem:[%s145 + $0x138] sm:$0xff] %v1358
      %1487 = vst [vmem:[%s145 + $0x140] sm:$0xff] %v1359
      %1488 = vst [vmem:[%s145 + $0x148] sm:$0xff] %v1360
      %1489 = vst [vmem:[%s145 + $0x150] sm:$0xff] %v1361
      %1490 = vst [vmem:[%s145 + $0x158] sm:$0xff] %v1362
      %1491 = vst [vmem:[%s145 + $0x160] sm:$0xff] %v1363
      %1492 = vst [vmem:[%s145 + $0x168] sm:$0xff] %v1364
      %1493 = vst [vmem:[%s145 + $0x170] sm:$0xff] %v1365
      %1494 = vst [vmem:[%s145 + $0x178] sm:$0xff] %v1366
      %1495 = vst [vmem:[%s145 + $0x180] sm:$0xff] %v1367
      %1496 = vst [vmem:[%s145 + $0x188] sm:$0xff] %v1368
      %1497 = vst [vmem:[%s145 + $0x190] sm:$0xff] %v1369
      %1498 = vst [vmem:[%s145 + $0x198] sm:$0xff] %v1370
      %1499 = vst [vmem:[%s145 + $0x1a0] sm:$0xff] %v1371
      %1500 = vst [vmem:[%s145 + $0x1a8] sm:$0xff] %v1372
      %1501 = vst [vmem:[%s145 + $0x1b0] sm:$0xff] %v1373
      %1502 = vst [vmem:[%s145 + $0x1b8] sm:$0xff] %v1374
      %1503 = vst [vmem:[%s145 + $0x1c0] sm:$0xff] %v1375
      %1504 = vst [vmem:[%s145 + $0x1c8] sm:$0xff] %v1376
      %1505 = vst [vmem:[%s145 + $0x1d0] sm:$0xff] %v1377
      %1506 = vst [vmem:[%s145 + $0x1d8] sm:$0xff] %v1378
      %1507 = vst [vmem:[%s145 + $0x1e0] sm:$0xff] %v1379
      %1508 = vst [vmem:[%s145 + $0x1e8] sm:$0xff] %v1380
      %1509 = vst [vmem:[%s145 + $0x1f0] sm:$0xff] %v1381
      %1510 = vst [vmem:[%s145 + $0x1f8] sm:$0xff] %v1382
      %1511 = vst [vmem:[%s145 + $0x200] sm:$0xff] %v1383
      %1512 = vst [vmem:[%s145 + $0x208] sm:$0xff] %v1384
      %1513 = vst [vmem:[%s145 + $0x210] sm:$0xff] %v1385
      %1514 = vst [vmem:[%s145 + $0x218] sm:$0xff] %v1386
      %1515 = vst [vmem:[%s145 + $0x220] sm:$0xff] %v1387
      %1516 = vst [vmem:[%s145 + $0x228] sm:$0xff] %v1388
      %1517 = vst [vmem:[%s145 + $0x230] sm:$0xff] %v1389
      %1518 = vst [vmem:[%s145 + $0x238] sm:$0xff] %v1390
      %1519 = vst [vmem:[%s145 + $0x240] sm:$0xff] %v1391
      %1520 = vst [vmem:[%s145 + $0x248] sm:$0xff] %v1392
      %1521 = vst [vmem:[%s145 + $0x250] sm:$0xff] %v1393
      %1522 = vst [vmem:[%s145 + $0x258] sm:$0xff] %v1394
      %1523 = vst [vmem:[%s145 + $0x260] sm:$0xff] %v1395
      %1524 = vst [vmem:[%s145 + $0x268] sm:$0xff] %v1396
      %1525 = vst [vmem:[%s145 + $0x270] sm:$0xff] %v1397
      %1526 = vst [vmem:[%s145 + $0x278] sm:$0xff] %v1398
      %1527 = vst [vmem:[%s145 + $0x280] sm:$0xff] %v1399
      %1528 = vst [vmem:[%s145 + $0x288] sm:$0xff] %v1400
      %1529 = vst [vmem:[%s145 + $0x290] sm:$0xff] %v1401
      %1530 = vst [vmem:[%s145 + $0x298] sm:$0xff] %v1402
      %1531 = vst [vmem:[%s145 + $0x2a0] sm:$0xff] %v1403
      %1532 = vst [vmem:[%s145 + $0x2a8] sm:$0xff] %v1404
      %1533 = vst [vmem:[%s145 + $0x2b0] sm:$0xff] %v1405
      %1534 = vst [vmem:[%s145 + $0x2b8] sm:$0xff] %v1406
      %1535 = vst [vmem:[%s145 + $0x2c0] sm:$0xff] %v1407
      %1536 = vst [vmem:[%s145 + $0x2c8] sm:$0xff] %v1408
      %1537 = vst [vmem:[%s145 + $0x2d0] sm:$0xff] %v1409
      %1538 = vst [vmem:[%s145 + $0x2d8] sm:$0xff] %v1410
      %1539 = vst [vmem:[%s145 + $0x2e0] sm:$0xff] %v1411
      %1540 = vst [vmem:[%s145 + $0x2e8] sm:$0xff] %v1412
      %1541 = vst [vmem:[%s145 + $0x2f0] sm:$0xff] %v1413
      %1542 = vst [vmem:[%s145 + $0x2f8] sm:$0xff] %v1414
      %1543 = vst [vmem:[%s145 + $0x300] sm:$0xff] %v1415
      %1544 = vst [vmem:[%s145 + $0x308] sm:$0xff] %v1416
      %1545 = vst [vmem:[%s145 + $0x310] sm:$0xff] %v1417
      %1546 = vst [vmem:[%s145 + $0x318] sm:$0xff] %v1418
      %1547 = vst [vmem:[%s145 + $0x320] sm:$0xff] %v1419
      %1548 = vst [vmem:[%s145 + $0x328] sm:$0xff] %v1420
      %1549 = vst [vmem:[%s145 + $0x330] sm:$0xff] %v1421
      %1550 = vst [vmem:[%s145 + $0x338] sm:$0xff] %v1422
      %1551 = vst [vmem:[%s145 + $0x340] sm:$0xff] %v1423
      %1552 = vst [vmem:[%s145 + $0x348] sm:$0xff] %v1424
      %1553 = vst [vmem:[%s145 + $0x350] sm:$0xff] %v1425
      %1554 = vst [vmem:[%s145 + $0x358] sm:$0xff] %v1426
      %1555 = vst [vmem:[%s145 + $0x360] sm:$0xff] %v1427
      %1556 = vst [vmem:[%s145 + $0x368] sm:$0xff] %v1428
      %1557 = vst [vmem:[%s145 + $0x370] sm:$0xff] %v1429
      %1558 = vst [vmem:[%s145 + $0x378] sm:$0xff] %v1430
      %1559 = vst [vmem:[%s145 + $0x380] sm:$0xff] %v1431
      %1560 = vst [vmem:[%s145 + $0x388] sm:$0xff] %v1432
      %1561 = vst [vmem:[%s145 + $0x390] sm:$0xff] %v1433
      %1562 = vst [vmem:[%s145 + $0x398] sm:$0xff] %v1434
      %1563 = vst [vmem:[%s145 + $0x3a0] sm:$0xff] %v1435
      %1564 = vst [vmem:[%s145 + $0x3a8] sm:$0xff] %v1436
      %1565 = vst [vmem:[%s145 + $0x3b0] sm:$0xff] %v1437
      %1566 = vst [vmem:[%s145 + $0x3b8] sm:$0xff] %v1438
      %1567 = vst [vmem:[%s145 + $0x3c0] sm:$0xff] %v1439
      %1568 = vst [vmem:[%s145 + $0x3c8] sm:$0xff] %v1440
      %1569 = vst [vmem:[%s145 + $0x3d0] sm:$0xff] %v1441
      %1570 = vst [vmem:[%s145 + $0x3d8] sm:$0xff] %v1442
      %1571 = vst [vmem:[%s145 + $0x3e0] sm:$0xff] %v1443
      %1572 = vst [vmem:[%s145 + $0x3e8] sm:$0xff] %v1444
      %1573 = vst [vmem:[%s145 + $0x3f0] sm:$0xff] %v1445
      %1574 = vst [vmem:[%s145 + $0x3f8] sm:$0xff] %v1446
      %s1575 = smul.u32 128, %s13
      %p1576 = scmp.lt.s32.totalorder %s1575, 255
      %s1577 = scalar_select %p1576, %s1575, 255
      %s1578 = smul.addr %s1577, 8
      %s1579 = scalar_lea.vmem %s2, %s1578
      // Predicated region
      $region29: #{discriminator_forward.5} parent=27 // pred_check
        %p1580 = pneg %p78
      $region30: #{discriminator_forward.5} parent=27 // pred_check_branch
        %1582 = sbr.rel (%p1580) target = $region32
      $region31: #{discriminator_forward.5} parent=27 // pred_region
        %s1583 = smul.u32 128, %s13
      $region32: #{discriminator_forward.5} parent=27 // pred_fallthru
        _
    $region28: #{discriminator_forward.5} parent=5 // pred_fallthru
      _
    %p1584 = scmp.le.s32.totalorder 2, %s8
    // Predicated region
    $region33: #{discriminator_forward.5} parent=5 // pred_check
      %p1585 = pneg %p1584
    $region34: #{discriminator_forward.5} parent=5 // pred_check_branch
      %1587 = sbr.rel (%p1585) target = $region36
    $region35: #{discriminator_forward.5} parent=5 // pred_region
      %s1588 = ssub.s32 %s8, 2
      // Predicated region
      $region37: #{discriminator_forward.5} parent=35 // pred_check
        %p1589 = pneg %p84
      $region38: #{discriminator_forward.5} parent=35 // pred_check_branch
        %1591 = sbr.rel (%p1589) target = $region40
      $region39: #{discriminator_forward.5} parent=35 // pred_region
        %s1592 = smul.u32 128, %s14
        %p1593 = scmp.lt.s32.totalorder %s1592, 255
        %s1594 = scalar_select %p1593, %s1592, 255
        %s1595 = smul.addr %s1594, 8
        %s1596 = scalar_lea.vmem %s2, %s1595
      $region40: #{discriminator_forward.5} parent=35 // pred_fallthru
        _
    $region36: #{discriminator_forward.5} parent=5 // pred_fallthru
      _
  $region6: #{discriminator_forward.5} parent=0 // loop_footer
    %s12 = sadd.s32 1, %s8
  $region7: #{discriminator_forward.5} parent=0 // loop_footer_branch
    %7 = sbr.rel target = $region3
  $region8: #{discriminator_forward.5} parent=0 // loop_exit
    _

// kernel: discriminator_forward.6
$region0: #{discriminator_forward.6}
  #allocation0 [shape = 'u32[]', space=smem, size = 0x4, offset = 0x4, fixed_abs, tag = 'smem constant byte address 0x4 - core index']
  #allocation1 [shape = 'u32[72,128]{1,0:T(1,128)}', space=vmem, size = 0x9000, scoped, tag = 'internal scratch']
  %s0 = inlined_call_operand.vmem [shape: f32[512,128], index: 0, kind: input, shape index: {}]
  %s1 = inlined_call_operand.vmem [shape: f32[128,128], index: 1, kind: input, shape index: {}]
  %s2 = inlined_call_operand.vmem [shape: f32[1,128], index: 2, kind: input, shape index: {}]
  %s3 = inlined_call_operand.vmem [shape: f32[1,128], index: 3, kind: input, shape index: {}]
  %s4 = inlined_call_operand.vmem [shape: f32[512,128], index: 4, kind: output, shape index: {}]
  %s5 = sld [smem:[#allocation0]]
  $region26: #{discriminator_forward.6} parent=0
    _
  %s7 = ssub.s32 1, %s5
  %s8 = scalar_select 0, %s7, %s5
  // Predicated region
  $region2: #{discriminator_forward.6} parent=0 // pred_check
    _
  $region3: #{discriminator_forward.6} parent=0 // pred_check_branch
    %10 = sbr.rel (0) target = $region5
  $region4: #{discriminator_forward.6} parent=0 // pred_region
    _
  $region5: #{discriminator_forward.6} parent=0 // pred_fallthru
    _
  // Predicated region
  $region6: #{discriminator_forward.6} parent=0 // pred_check
    _
  $region7: #{discriminator_forward.6} parent=0 // pred_check_branch
    %12 = sbr.rel (0) target = $region9
  $region8: #{discriminator_forward.6} parent=0 // pred_region
    _
  $region9: #{discriminator_forward.6} parent=0 // pred_fallthru
    _
  // Predicated region
  $region10: #{discriminator_forward.6} parent=0 // pred_check
    _
  $region11: #{discriminator_forward.6} parent=0 // pred_check_branch
    %14 = sbr.rel (0) target = $region13
  $region12: #{discriminator_forward.6} parent=0 // pred_region
    _
  $region13: #{discriminator_forward.6} parent=0 // pred_fallthru
    _
  // Predicated region
  $region14: #{discriminator_forward.6} parent=0 // pred_check
    _
  $region15: #{discriminator_forward.6} parent=0 // pred_check_branch
    %16 = sbr.rel (0) target = $region17
  $region16: #{discriminator_forward.6} parent=0 // pred_region
    _
  $region17: #{discriminator_forward.6} parent=0 // pred_fallthru
    _
  %v17 = vld [vmem:[%s0] sm:$0xff]
  %v18 = vld [vmem:[%s0 + $0x8] sm:$0xff]
  %v19 = vld [vmem:[%s0 + $0x10] sm:$0xff]
  %v20 = vld [vmem:[%s0 + $0x18] sm:$0xff]
  %v21 = vld [vmem:[%s0 + $0x20] sm:$0xff]
  %v22 = vld [vmem:[%s0 + $0x28] sm:$0xff]
  %v23 = vld [vmem:[%s0 + $0x30] sm:$0xff]
  %v24 = vld [vmem:[%s0 + $0x38] sm:$0xff]
  %v25 = vld [vmem:[%s0 + $0x40] sm:$0xff]
  %v26 = vld [vmem:[%s0 + $0x48] sm:$0xff]
  %v27 = vld [vmem:[%s0 + $0x50] sm:$0xff]
  %v28 = vld [vmem:[%s0 + $0x58] sm:$0xff]
  %v29 = vld [vmem:[%s0 + $0x60] sm:$0xff]
  %v30 = vld [vmem:[%s0 + $0x68] sm:$0xff]
  %v31 = vld [vmem:[%s0 + $0x70] sm:$0xff]
  %v32 = vld [vmem:[%s0 + $0x78] sm:$0xff]
  %v33 = vld [vmem:[%s0 + $0x80] sm:$0xff]
  %v34 = vld [vmem:[%s0 + $0x88] sm:$0xff]
  %v35 = vld [vmem:[%s0 + $0x90] sm:$0xff]
  %v36 = vld [vmem:[%s0 + $0x98] sm:$0xff]
  %v37 = vld [vmem:[%s0 + $0xa0] sm:$0xff]
  %v38 = vld [vmem:[%s0 + $0xa8] sm:$0xff]
  %v39 = vld [vmem:[%s0 + $0xb0] sm:$0xff]
  %v40 = vld [vmem:[%s0 + $0xb8] sm:$0xff]
  %v41 = vld [vmem:[%s0 + $0xc0] sm:$0xff]
  %v42 = vld [vmem:[%s0 + $0xc8] sm:$0xff]
  %v43 = vld [vmem:[%s0 + $0xd0] sm:$0xff]
  %v44 = vld [vmem:[%s0 + $0xd8] sm:$0xff]
  %v45 = vld [vmem:[%s0 + $0xe0] sm:$0xff]
  %v46 = vld [vmem:[%s0 + $0xe8] sm:$0xff]
  %v47 = vld [vmem:[%s0 + $0xf0] sm:$0xff]
  %v48 = vld [vmem:[%s0 + $0xf8] sm:$0xff]
  %v49 = vld [vmem:[%s0 + $0x100] sm:$0xff]
  %v50 = vld [vmem:[%s0 + $0x108] sm:$0xff]
  %v51 = vld [vmem:[%s0 + $0x110] sm:$0xff]
  %v52 = vld [vmem:[%s0 + $0x118] sm:$0xff]
  %v53 = vld [vmem:[%s0 + $0x120] sm:$0xff]
  %v54 = vld [vmem:[%s0 + $0x128] sm:$0xff]
  %v55 = vld [vmem:[%s0 + $0x130] sm:$0xff]
  %v56 = vld [vmem:[%s0 + $0x138] sm:$0xff]
  %v57 = vld [vmem:[%s0 + $0x140] sm:$0xff]
  %v58 = vld [vmem:[%s0 + $0x148] sm:$0xff]
  %v59 = vld [vmem:[%s0 + $0x150] sm:$0xff]
  %v60 = vld [vmem:[%s0 + $0x158] sm:$0xff]
  %v61 = vld [vmem:[%s0 + $0x160] sm:$0xff]
  %v62 = vld [vmem:[%s0 + $0x168] sm:$0xff]
  %v63 = vld [vmem:[%s0 + $0x170] sm:$0xff]
  %v64 = vld [vmem:[%s0 + $0x178] sm:$0xff]
  %v65 = vld [vmem:[%s0 + $0x180] sm:$0xff]
  %v66 = vld [vmem:[%s0 + $0x188] sm:$0xff]
  %v67 = vld [vmem:[%s0 + $0x190] sm:$0xff]
  %v68 = vld [vmem:[%s0 + $0x198] sm:$0xff]
  %v69 = vld [vmem:[%s0 + $0x1a0] sm:$0xff]
  %v70 = vld [vmem:[%s0 + $0x1a8] sm:$0xff]
  %v71 = vld [vmem:[%s0 + $0x1b0] sm:$0xff]
  %v72 = vld [vmem:[%s0 + $0x1b8] sm:$0xff]
  %v73 = vld [vmem:[%s0 + $0x1c0] sm:$0xff]
  %v74 = vld [vmem:[%s0 + $0x1c8] sm:$0xff]
  %v75 = vld [vmem:[%s0 + $0x1d0] sm:$0xff]
  %v76 = vld [vmem:[%s0 + $0x1d8] sm:$0xff]
  %v77 = vld [vmem:[%s0 + $0x1e0] sm:$0xff]
  %v78 = vld [vmem:[%s0 + $0x1e8] sm:$0xff]
  %v79 = vld [vmem:[%s0 + $0x1f0] sm:$0xff]
  %v80 = vld [vmem:[%s0 + $0x1f8] sm:$0xff]
  %v81 = vld [vmem:[%s1] sm:$0xff]
  %v82 = vld [vmem:[%s1 + $0x8] sm:$0xff]
  %v83 = vld [vmem:[%s1 + $0x10] sm:$0xff]
  %v84 = vld [vmem:[%s1 + $0x18] sm:$0xff]
  %v85 = vld [vmem:[%s1 + $0x20] sm:$0xff]
  %v86 = vld [vmem:[%s1 + $0x28] sm:$0xff]
  %v87 = vld [vmem:[%s1 + $0x30] sm:$0xff]
  %v88 = vld [vmem:[%s1 + $0x38] sm:$0xff]
  %v89 = vld [vmem:[%s1 + $0x40] sm:$0xff]
  %v90 = vld [vmem:[%s1 + $0x48] sm:$0xff]
  %v91 = vld [vmem:[%s1 + $0x50] sm:$0xff]
  %v92 = vld [vmem:[%s1 + $0x58] sm:$0xff]
  %v93 = vld [vmem:[%s1 + $0x60] sm:$0xff]
  %v94 = vld [vmem:[%s1 + $0x68] sm:$0xff]
  %v95 = vld [vmem:[%s1 + $0x70] sm:$0xff]
  %v96 = vld [vmem:[%s1 + $0x78] sm:$0xff]
  %97 = vmatpush.msra.mxu0 %v96
  %98 = vmatpush.msra.mxu0 %v95
  %99 = vmatpush.msra.mxu0 %v94
  %100 = vmatpush.msra.mxu0 %v93
  %101 = vmatpush.msra.mxu0 %v92
  %102 = vmatpush.msra.mxu0 %v91
  %103 = vmatpush.msra.mxu0 %v90
  %104 = vmatpush.msra.mxu0 %v89
  %105 = vmatpush.msra.mxu0 %v88
  %106 = vmatpush.msra.mxu0 %v87
  %107 = vmatpush.msra.mxu0 %v86
  %108 = vmatpush.msra.mxu0 %v85
  %109 = vmatpush.msra.mxu0 %v84
  %110 = vmatpush.msra.mxu0 %v83
  %111 = vmatpush.msra.mxu0 %v82
  %112 = vmatpush.msra.mxu0 %v81
  %113 = vmatmul.f32.gmra.mxu0 %v17
  %v114 = vpop.f32.mrf.mxu0
  %v115 = vadd.f32 0.0, %v114
  %116 = vmatmul.f32.gmra.mxu0 %v18
  %v117 = vpop.f32.mrf.mxu0
  %v118 = vadd.f32 0.0, %v117
  %119 = vmatmul.f32.gmra.mxu0 %v19
  %v120 = vpop.f32.mrf.mxu0
  %v121 = vadd.f32 0.0, %v120
  %122 = vmatmul.f32.gmra.mxu0 %v20
  %v123 = vpop.f32.mrf.mxu0
  %v124 = vadd.f32 0.0, %v123
  %125 = vmatmul.f32.gmra.mxu0 %v21
  %v126 = vpop.f32.mrf.mxu0
  %v127 = vadd.f32 0.0, %v126
  %128 = vmatmul.f32.gmra.mxu0 %v22
  %v129 = vpop.f32.mrf.mxu0
  %v130 = vadd.f32 0.0, %v129
  %131 = vmatmul.f32.gmra.mxu0 %v23
  %v132 = vpop.f32.mrf.mxu0
  %v133 = vadd.f32 0.0, %v132
  %134 = vmatmul.f32.gmra.mxu0 %v24
  %v135 = vpop.f32.mrf.mxu0
  %v136 = vadd.f32 0.0, %v135
  %137 = vmatmul.f32.gmra.mxu0 %v25
  %v138 = vpop.f32.mrf.mxu0
  %v139 = vadd.f32 0.0, %v138
  %140 = vmatmul.f32.gmra.mxu0 %v26
  %v141 = vpop.f32.mrf.mxu0
  %v142 = vadd.f32 0.0, %v141
  %143 = vmatmul.f32.gmra.mxu0 %v27
  %v144 = vpop.f32.mrf.mxu0
  %v145 = vadd.f32 0.0, %v144
  %146 = vmatmul.f32.gmra.mxu0 %v28
  %v147 = vpop.f32.mrf.mxu0
  %v148 = vadd.f32 0.0, %v147
  %149 = vmatmul.f32.gmra.mxu0 %v29
  %v150 = vpop.f32.mrf.mxu0
  %v151 = vadd.f32 0.0, %v150
  %152 = vmatmul.f32.gmra.mxu0 %v30
  %v153 = vpop.f32.mrf.mxu0
  %v154 = vadd.f32 0.0, %v153
  %155 = vmatmul.f32.gmra.mxu0 %v31
  %v156 = vpop.f32.mrf.mxu0
  %v157 = vadd.f32 0.0, %v156
  %158 = vmatmul.f32.gmra.mxu0 %v32
  %v159 = vpop.f32.mrf.mxu0
  %v160 = vadd.f32 0.0, %v159
  %161 = vmatmul.f32.gmra.mxu0 %v33
  %v162 = vpop.f32.mrf.mxu0
  %v163 = vadd.f32 0.0, %v162
  %164 = vmatmul.f32.gmra.mxu0 %v34
  %v165 = vpop.f32.mrf.mxu0
  %v166 = vadd.f32 0.0, %v165
  %167 = vmatmul.f32.gmra.mxu0 %v35
  %v168 = vpop.f32.mrf.mxu0
  %v169 = vadd.f32 0.0, %v168
  %170 = vmatmul.f32.gmra.mxu0 %v36
  %v171 = vpop.f32.mrf.mxu0
  %v172 = vadd.f32 0.0, %v171
  %173 = vmatmul.f32.gmra.mxu0 %v37
  %v174 = vpop.f32.mrf.mxu0
  %v175 = vadd.f32 0.0, %v174
  %176 = vmatmul.f32.gmra.mxu0 %v38
  %v177 = vpop.f32.mrf.mxu0
  %v178 = vadd.f32 0.0, %v177
  %179 = vmatmul.f32.gmra.mxu0 %v39
  %v180 = vpop.f32.mrf.mxu0
  %v181 = vadd.f32 0.0, %v180
  %182 = vmatmul.f32.gmra.mxu0 %v40
  %v183 = vpop.f32.mrf.mxu0
  %v184 = vadd.f32 0.0, %v183
  %185 = vmatmul.f32.gmra.mxu0 %v41
  %v186 = vpop.f32.mrf.mxu0
  %v187 = vadd.f32 0.0, %v186
  %188 = vmatmul.f32.gmra.mxu0 %v42
  %v189 = vpop.f32.mrf.mxu0
  %v190 = vadd.f32 0.0, %v189
  %191 = vmatmul.f32.gmra.mxu0 %v43
  %v192 = vpop.f32.mrf.mxu0
  %v193 = vadd.f32 0.0, %v192
  %194 = vmatmul.f32.gmra.mxu0 %v44
  %v195 = vpop.f32.mrf.mxu0
  %v196 = vadd.f32 0.0, %v195
  %197 = vmatmul.f32.gmra.mxu0 %v45
  %v198 = vpop.f32.mrf.mxu0
  %v199 = vadd.f32 0.0, %v198
  %200 = vmatmul.f32.gmra.mxu0 %v46
  %v201 = vpop.f32.mrf.mxu0
  %v202 = vadd.f32 0.0, %v201
  %203 = vmatmul.f32.gmra.mxu0 %v47
  %v204 = vpop.f32.mrf.mxu0
  %v205 = vadd.f32 0.0, %v204
  %206 = vmatmul.f32.gmra.mxu0 %v48
  %v207 = vpop.f32.mrf.mxu0
  %v208 = vadd.f32 0.0, %v207
  %209 = vmatmul.f32.gmra.mxu0 %v49
  %v210 = vpop.f32.mrf.mxu0
  %v211 = vadd.f32 0.0, %v210
  %212 = vmatmul.f32.gmra.mxu0 %v50
  %v213 = vpop.f32.mrf.mxu0
  %v214 = vadd.f32 0.0, %v213
  %215 = vmatmul.f32.gmra.mxu0 %v51
  %v216 = vpop.f32.mrf.mxu0
  %v217 = vadd.f32 0.0, %v216
  %218 = vmatmul.f32.gmra.mxu0 %v52
  %v219 = vpop.f32.mrf.mxu0
  %v220 = vadd.f32 0.0, %v219
  %221 = vmatmul.f32.gmra.mxu0 %v53
  %v222 = vpop.f32.mrf.mxu0
  %v223 = vadd.f32 0.0, %v222
  %224 = vmatmul.f32.gmra.mxu0 %v54
  %v225 = vpop.f32.mrf.mxu0
  %v226 = vadd.f32 0.0, %v225
  %227 = vmatmul.f32.gmra.mxu0 %v55
  %v228 = vpop.f32.mrf.mxu0
  %v229 = vadd.f32 0.0, %v228
  %230 = vmatmul.f32.gmra.mxu0 %v56
  %v231 = vpop.f32.mrf.mxu0
  %v232 = vadd.f32 0.0, %v231
  %233 = vmatmul.f32.gmra.mxu0 %v57
  %v234 = vpop.f32.mrf.mxu0
  %v235 = vadd.f32 0.0, %v234
  %236 = vmatmul.f32.gmra.mxu0 %v58
  %v237 = vpop.f32.mrf.mxu0
  %v238 = vadd.f32 0.0, %v237
  %239 = vmatmul.f32.gmra.mxu0 %v59
  %v240 = vpop.f32.mrf.mxu0
  %v241 = vadd.f32 0.0, %v240
  %242 = vmatmul.f32.gmra.mxu0 %v60
  %v243 = vpop.f32.mrf.mxu0
  %v244 = vadd.f32 0.0, %v243
  %245 = vmatmul.f32.gmra.mxu0 %v61
  %v246 = vpop.f32.mrf.mxu0
  %v247 = vadd.f32 0.0, %v246
  %248 = vmatmul.f32.gmra.mxu0 %v62
  %v249 = vpop.f32.mrf.mxu0
  %v250 = vadd.f32 0.0, %v249
  %251 = vmatmul.f32.gmra.mxu0 %v63
  %v252 = vpop.f32.mrf.mxu0
  %v253 = vadd.f32 0.0, %v252
  %254 = vmatmul.f32.gmra.mxu0 %v64
  %v255 = vpop.f32.mrf.mxu0
  %v256 = vadd.f32 0.0, %v255
  %257 = vmatmul.f32.gmra.mxu0 %v65
  %v258 = vpop.f32.mrf.mxu0
  %v259 = vadd.f32 0.0, %v258
  %260 = vmatmul.f32.gmra.mxu0 %v66
  %v261 = vpop.f32.mrf.mxu0
  %v262 = vadd.f32 0.0, %v261
  %263 = vmatmul.f32.gmra.mxu0 %v67
  %v264 = vpop.f32.mrf.mxu0
  %v265 = vadd.f32 0.0, %v264
  %266 = vmatmul.f32.gmra.mxu0 %v68
  %v267 = vpop.f32.mrf.mxu0
  %v268 = vadd.f32 0.0, %v267
  %269 = vmatmul.f32.gmra.mxu0 %v69
  %v270 = vpop.f32.mrf.mxu0
  %v271 = vadd.f32 0.0, %v270
  %272 = vmatmul.f32.gmra.mxu0 %v70
  %v273 = vpop.f32.mrf.mxu0
  %v274 = vadd.f32 0.0, %v273
  %275 = vmatmul.f32.gmra.mxu0 %v71
  %v276 = vpop.f32.mrf.mxu0
  %v277 = vadd.f32 0.0, %v276
  %278 = vmatmul.f32.gmra.mxu0 %v72
  %v279 = vpop.f32.mrf.mxu0
  %v280 = vadd.f32 0.0, %v279
  %281 = vmatmul.f32.gmra.mxu0 %v73
  %v282 = vpop.f32.mrf.mxu0
  %v283 = vadd.f32 0.0, %v282
  %284 = vmatmul.f32.gmra.mxu0 %v74
  %v285 = vpop.f32.mrf.mxu0
  %v286 = vadd.f32 0.0, %v285
  %287 = vmatmul.f32.gmra.mxu0 %v75
  %v288 = vpop.f32.mrf.mxu0
  %v289 = vadd.f32 0.0, %v288
  %290 = vmatmul.f32.gmra.mxu0 %v76
  %v291 = vpop.f32.mrf.mxu0
  %v292 = vadd.f32 0.0, %v291
  %293 = vmatmul.f32.gmra.mxu0 %v77
  %v294 = vpop.f32.mrf.mxu0
  %v295 = vadd.f32 0.0, %v294
  %296 = vmatmul.f32.gmra.mxu0 %v78
  %v297 = vpop.f32.mrf.mxu0
  %v298 = vadd.f32 0.0, %v297
  %299 = vmatmul.f32.gmra.mxu0 %v79
  %v300 = vpop.f32.mrf.mxu0
  %v301 = vadd.f32 0.0, %v300
  %302 = vmatmul.f32.gmra.mxu0 %v80
  %v303 = vpop.f32.mrf.mxu0
  %v304 = vadd.f32 0.0, %v303
  %305 = vdwg.mxu0
  %v306 = vadd.f32 %v115, %v118
  %v307 = vadd.f32 %v306, %v121
  %v308 = vadd.f32 %v307, %v124
  %v309 = vadd.f32 %v308, %v127
  %v310 = vadd.f32 %v309, %v130
  %v311 = vadd.f32 %v310, %v133
  %v312 = vadd.f32 %v311, %v136
  %v313 = vadd.f32 %v312, %v139
  %v314 = vadd.f32 %v313, %v142
  %v315 = vadd.f32 %v314, %v145
  %v316 = vadd.f32 %v315, %v148
  %v317 = vadd.f32 %v316, %v151
  %v318 = vadd.f32 %v317, %v154
  %v319 = vadd.f32 %v318, %v157
  %v320 = vadd.f32 %v319, %v160
  %v321 = vadd.f32 %v320, %v163
  %v322 = vadd.f32 %v321, %v166
  %v323 = vadd.f32 %v322, %v169
  %v324 = vadd.f32 %v323, %v172
  %v325 = vadd.f32 %v324, %v175
  %v326 = vadd.f32 %v325, %v178
  %v327 = vadd.f32 %v326, %v181
  %v328 = vadd.f32 %v327, %v184
  %v329 = vadd.f32 %v328, %v187
  %v330 = vadd.f32 %v329, %v190
  %v331 = vadd.f32 %v330, %v193
  %v332 = vadd.f32 %v331, %v196
  %v333 = vadd.f32 %v332, %v199
  %v334 = vadd.f32 %v333, %v202
  %v335 = vadd.f32 %v334, %v205
  %v336 = vadd.f32 %v335, %v208
  %v337 = vadd.f32 %v336, %v211
  %v338 = vadd.f32 %v337, %v214
  %v339 = vadd.f32 %v338, %v217
  %v340 = vadd.f32 %v339, %v220
  %v341 = vadd.f32 %v340, %v223
  %v342 = vadd.f32 %v341, %v226
  %v343 = vadd.f32 %v342, %v229
  %v344 = vadd.f32 %v343, %v232
  %v345 = vadd.f32 %v344, %v235
  %v346 = vadd.f32 %v345, %v238
  %v347 = vadd.f32 %v346, %v241
  %v348 = vadd.f32 %v347, %v244
  %v349 = vadd.f32 %v348, %v247
  %v350 = vadd.f32 %v349, %v250
  %v351 = vadd.f32 %v350, %v253
  %v352 = vadd.f32 %v351, %v256
  %v353 = vadd.f32 %v352, %v259
  %v354 = vadd.f32 %v353, %v262
  %v355 = vadd.f32 %v354, %v265
  %v356 = vadd.f32 %v355, %v268
  %v357 = vadd.f32 %v356, %v271
  %v358 = vadd.f32 %v357, %v274
  %v359 = vadd.f32 %v358, %v277
  %v360 = vadd.f32 %v359, %v280
  %v361 = vadd.f32 %v360, %v283
  %v362 = vadd.f32 %v361, %v286
  %v363 = vadd.f32 %v362, %v289
  %v364 = vadd.f32 %v363, %v292
  %v365 = vadd.f32 %v364, %v295
  %v366 = vadd.f32 %v365, %v298
  %v367 = vadd.f32 %v366, %v301
  %v368 = vadd.f32 %v367, %v304
  %v369 = vrot.slane %v368, 4
  %v370 = vadd.f32 %v368, %v369
  %v371 = vrot.slane %v370, 2
  %v372 = vadd.f32 %v370, %v371
  %v373 = vrot.slane %v372, 1
  %v374 = vadd.f32 %v372, %v373
  %v375 = vmul.f32 %v374, 0.001953125
  %v376 = vsub.f32 %v115, %v375
  %v377 = vsub.f32 %v118, %v375
  %v378 = vsub.f32 %v121, %v375
  %v379 = vsub.f32 %v124, %v375
  %v380 = vsub.f32 %v127, %v375
  %v381 = vsub.f32 %v130, %v375
  %v382 = vsub.f32 %v133, %v375
  %v383 = vsub.f32 %v136, %v375
  %v384 = vsub.f32 %v139, %v375
  %v385 = vsub.f32 %v142, %v375
  %v386 = vsub.f32 %v145, %v375
  %v387 = vsub.f32 %v148, %v375
  %v388 = vsub.f32 %v151, %v375
  %v389 = vsub.f32 %v154, %v375
  %v390 = vsub.f32 %v157, %v375
  %v391 = vsub.f32 %v160, %v375
  %v392 = vsub.f32 %v163, %v375
  %v393 = vsub.f32 %v166, %v375
  %v394 = vsub.f32 %v169, %v375
  %v395 = vsub.f32 %v172, %v375
  %v396 = vsub.f32 %v175, %v375
  %v397 = vsub.f32 %v178, %v375
  %v398 = vsub.f32 %v181, %v375
  %v399 = vsub.f32 %v184, %v375
  %v400 = vsub.f32 %v187, %v375
  %v401 = vsub.f32 %v190, %v375
  %v402 = vsub.f32 %v193, %v375
  %v403 = vsub.f32 %v196, %v375
  %v404 = vsub.f32 %v199, %v375
  %v405 = vsub.f32 %v202, %v375
  %v406 = vsub.f32 %v205, %v375
  %v407 = vsub.f32 %v208, %v375
  %v408 = vsub.f32 %v211, %v375
  %v409 = vsub.f32 %v214, %v375
  %v410 = vsub.f32 %v217, %v375
  %v411 = vsub.f32 %v220, %v375
  %v412 = vsub.f32 %v223, %v375
  %v413 = vsub.f32 %v226, %v375
  %v414 = vsub.f32 %v229, %v375
  %v415 = vsub.f32 %v232, %v375
  %v416 = vsub.f32 %v235, %v375
  %v417 = vsub.f32 %v238, %v375
  %v418 = vsub.f32 %v241, %v375
  %v419 = vsub.f32 %v244, %v375
  %v420 = vsub.f32 %v247, %v375
  %v421 = vsub.f32 %v250, %v375
  %v422 = vsub.f32 %v253, %v375
  %v423 = vsub.f32 %v256, %v375
  %v424 = vsub.f32 %v259, %v375
  %v425 = vsub.f32 %v262, %v375
  %v426 = vsub.f32 %v265, %v375
  %v427 = vsub.f32 %v268, %v375
  %v428 = vsub.f32 %v271, %v375
  %v429 = vsub.f32 %v274, %v375
  %v430 = vsub.f32 %v277, %v375
  %v431 = vsub.f32 %v280, %v375
  %v432 = vsub.f32 %v283, %v375
  %v433 = vsub.f32 %v286, %v375
  %v434 = vsub.f32 %v289, %v375
  %v435 = vsub.f32 %v292, %v375
  %v436 = vsub.f32 %v295, %v375
  %v437 = vsub.f32 %v298, %v375
  %v438 = vsub.f32 %v301, %v375
  %v439 = vsub.f32 %v304, %v375
  %v440 = vmul.f32 %v376, %v376
  %v441 = vmul.f32 %v377, %v377
  %v442 = vmul.f32 %v378, %v378
  %v443 = vmul.f32 %v379, %v379
  %v444 = vmul.f32 %v380, %v380
  %v445 = vmul.f32 %v381, %v381
  %v446 = vmul.f32 %v382, %v382
  %v447 = vmul.f32 %v383, %v383
  %v448 = vmul.f32 %v384, %v384
  %v449 = vmul.f32 %v385, %v385
  %v450 = vmul.f32 %v386, %v386
  %v451 = vmul.f32 %v387, %v387
  %v452 = vmul.f32 %v388, %v388
  %v453 = vmul.f32 %v389, %v389
  %v454 = vmul.f32 %v390, %v390
  %v455 = vmul.f32 %v391, %v391
  %v456 = vmul.f32 %v392, %v392
  %v457 = vmul.f32 %v393, %v393
  %v458 = vmul.f32 %v394, %v394
  %v459 = vmul.f32 %v395, %v395
  %v460 = vmul.f32 %v396, %v396
  %v461 = vmul.f32 %v397, %v397
  %v462 = vmul.f32 %v398, %v398
  %v463 = vmul.f32 %v399, %v399
  %v464 = vmul.f32 %v400, %v400
  %v465 = vmul.f32 %v401, %v401
  %v466 = vmul.f32 %v402, %v402
  %v467 = vmul.f32 %v403, %v403
  %v468 = vmul.f32 %v404, %v404
  %v469 = vmul.f32 %v405, %v405
  %v470 = vmul.f32 %v406, %v406
  %v471 = vmul.f32 %v407, %v407
  %v472 = vmul.f32 %v408, %v408
  %v473 = vmul.f32 %v409, %v409
  %v474 = vmul.f32 %v410, %v410
  %v475 = vmul.f32 %v411, %v411
  %v476 = vmul.f32 %v412, %v412
  %v477 = vmul.f32 %v413, %v413
  %v478 = vmul.f32 %v414, %v414
  %v479 = vmul.f32 %v415, %v415
  %v480 = vmul.f32 %v416, %v416
  %v481 = vmul.f32 %v417, %v417
  %v482 = vmul.f32 %v418, %v418
  %v483 = vmul.f32 %v419, %v419
  %v484 = vmul.f32 %v420, %v420
  %v485 = vmul.f32 %v421, %v421
  %v486 = vmul.f32 %v422, %v422
  %v487 = vmul.f32 %v423, %v423
  %v488 = vmul.f32 %v424, %v424
  %v489 = vmul.f32 %v425, %v425
  %v490 = vmul.f32 %v426, %v426
  %v491 = vmul.f32 %v427, %v427
  %v492 = vmul.f32 %v428, %v428
  %v493 = vmul.f32 %v429, %v429
  %v494 = vmul.f32 %v430, %v430
  %v495 = vmul.f32 %v431, %v431
  %v496 = vmul.f32 %v432, %v432
  %v497 = vmul.f32 %v433, %v433
  %v498 = vmul.f32 %v434, %v434
  %v499 = vmul.f32 %v435, %v435
  %v500 = vmul.f32 %v436, %v436
  %v501 = vmul.f32 %v437, %v437
  %v502 = vmul.f32 %v438, %v438
  %v503 = vmul.f32 %v439, %v439
  %v504 = vadd.f32 %v440, %v441
  %v505 = vadd.f32 %v504, %v442
  %v506 = vadd.f32 %v505, %v443
  %v507 = vadd.f32 %v506, %v444
  %v508 = vadd.f32 %v507, %v445
  %v509 = vadd.f32 %v508, %v446
  %v510 = vadd.f32 %v509, %v447
  %v511 = vadd.f32 %v510, %v448
  %v512 = vadd.f32 %v511, %v449
  %v513 = vadd.f32 %v512, %v450
  %v514 = vadd.f32 %v513, %v451
  %v515 = vadd.f32 %v514, %v452
  %v516 = vadd.f32 %v515, %v453
  %v517 = vadd.f32 %v516, %v454
  %v518 = vadd.f32 %v517, %v455
  %v519 = vadd.f32 %v518, %v456
  %v520 = vadd.f32 %v519, %v457
  %v521 = vadd.f32 %v520, %v458
  %v522 = vadd.f32 %v521, %v459
  %v523 = vadd.f32 %v522, %v460
  %v524 = vadd.f32 %v523, %v461
  %v525 = vadd.f32 %v524, %v462
  %v526 = vadd.f32 %v525, %v463
  %v527 = vadd.f32 %v526, %v464
  %v528 = vadd.f32 %v527, %v465
  %v529 = vadd.f32 %v528, %v466
  %v530 = vadd.f32 %v529, %v467
  %v531 = vadd.f32 %v530, %v468
  %v532 = vadd.f32 %v531, %v469
  %v533 = vadd.f32 %v532, %v470
  %v534 = vadd.f32 %v533, %v471
  %v535 = vadd.f32 %v534, %v472
  %v536 = vadd.f32 %v535, %v473
  %v537 = vadd.f32 %v536, %v474
  %v538 = vadd.f32 %v537, %v475
  %v539 = vadd.f32 %v538, %v476
  %v540 = vadd.f32 %v539, %v477
  %v541 = vadd.f32 %v540, %v478
  %v542 = vadd.f32 %v541, %v479
  %v543 = vadd.f32 %v542, %v480
  %v544 = vadd.f32 %v543, %v481
  %v545 = vadd.f32 %v544, %v482
  %v546 = vadd.f32 %v545, %v483
  %v547 = vadd.f32 %v546, %v484
  %v548 = vadd.f32 %v547, %v485
  %v549 = vadd.f32 %v548, %v486
  %v550 = vadd.f32 %v549, %v487
  %v551 = vadd.f32 %v550, %v488
  %v552 = vadd.f32 %v551, %v489
  %v553 = vadd.f32 %v552, %v490
  %v554 = vadd.f32 %v553, %v491
  %v555 = vadd.f32 %v554, %v492
  %v556 = vadd.f32 %v555, %v493
  %v557 = vadd.f32 %v556, %v494
  %v558 = vadd.f32 %v557, %v495
  %v559 = vadd.f32 %v558, %v496
  %v560 = vadd.f32 %v559, %v497
  %v561 = vadd.f32 %v560, %v498
  %v562 = vadd.f32 %v561, %v499
  %v563 = vadd.f32 %v562, %v500
  %v564 = vadd.f32 %v563, %v501
  %v565 = vadd.f32 %v564, %v502
  %v566 = vadd.f32 %v565, %v503
  %v567 = vrot.slane %v566, 4
  %v568 = vadd.f32 %v566, %v567
  %v569 = vrot.slane %v568, 2
  %v570 = vadd.f32 %v568, %v569
  %v571 = vrot.slane %v570, 1
  %v572 = vadd.f32 %v570, %v571
  %v573 = vmul.f32 %v572, 0.001953125
  %v574 = vld [vmem:[%s2] sm:$0x1]
  %v575 = vadd.f32 %v573, 1e-05
  %v576 = vrsqrt.pop %v575
  %v577 = vmul.f32 %v576, %v575
  %v578 = vmul.f32 %v577, %v576
  %v579 = vmul.f32 0.5, %v578
  %v580 = vsub.f32 1.5, %v579
  %v581 = vmul.f32 %v576, %v580
  %vm582 = vweird.f32 %v575
  %vm583 = vweird.f32 %v576
  %vm584 = vmor %vm582, %vm583
  %v585 = vsel %vm584, %v576, %v581
  %v586 = vmul.f32 %v574, %v585
  %v588 = vperm.slane %v586, 0
  %v590 = vmul.f32 %v376, %v588
  %v591 = vmul.f32 %v377, %v588
  %v592 = vmul.f32 %v378, %v588
  %v593 = vmul.f32 %v379, %v588
  %v594 = vmul.f32 %v380, %v588
  %v595 = vmul.f32 %v381, %v588
  %v596 = vmul.f32 %v382, %v588
  %v597 = vmul.f32 %v383, %v588
  %v598 = vmul.f32 %v384, %v588
  %v599 = vmul.f32 %v385, %v588
  %v600 = vmul.f32 %v386, %v588
  %v601 = vmul.f32 %v387, %v588
  %v602 = vmul.f32 %v388, %v588
  %v603 = vmul.f32 %v389, %v588
  %v604 = vmul.f32 %v390, %v588
  %v605 = vmul.f32 %v391, %v588
  %v606 = vmul.f32 %v392, %v588
  %v607 = vmul.f32 %v393, %v588
  %v608 = vmul.f32 %v394, %v588
  %v609 = vmul.f32 %v395, %v588
  %v610 = vmul.f32 %v396, %v588
  %v611 = vmul.f32 %v397, %v588
  %v612 = vmul.f32 %v398, %v588
  %v613 = vmul.f32 %v399, %v588
  %v614 = vmul.f32 %v400, %v588
  %v615 = vmul.f32 %v401, %v588
  %v616 = vmul.f32 %v402, %v588
  %v617 = vmul.f32 %v403, %v588
  %v618 = vmul.f32 %v404, %v588
  %v619 = vmul.f32 %v405, %v588
  %v620 = vmul.f32 %v406, %v588
  %v621 = vmul.f32 %v407, %v588
  %v622 = vmul.f32 %v408, %v588
  %v623 = vmul.f32 %v409, %v588
  %v624 = vmul.f32 %v410, %v588
  %v625 = vmul.f32 %v411, %v588
  %v626 = vmul.f32 %v412, %v588
  %v627 = vmul.f32 %v413, %v588
  %v628 = vmul.f32 %v414, %v588
  %v629 = vmul.f32 %v415, %v588
  %v630 = vmul.f32 %v416, %v588
  %v631 = vmul.f32 %v417, %v588
  %v632 = vmul.f32 %v418, %v588
  %v633 = vmul.f32 %v419, %v588
  %v634 = vmul.f32 %v420, %v588
  %v635 = vmul.f32 %v421, %v588
  %v636 = vmul.f32 %v422, %v588
  %v637 = vmul.f32 %v423, %v588
  %v638 = vmul.f32 %v424, %v588
  %v639 = vmul.f32 %v425, %v588
  %v640 = vmul.f32 %v426, %v588
  %v641 = vmul.f32 %v427, %v588
  %v642 = vmul.f32 %v428, %v588
  %v643 = vmul.f32 %v429, %v588
  %v644 = vmul.f32 %v430, %v588
  %v645 = vmul.f32 %v431, %v588
  %v646 = vmul.f32 %v432, %v588
  %v647 = vmul.f32 %v433, %v588
  %v648 = vmul.f32 %v434, %v588
  %v649 = vmul.f32 %v435, %v588
  %v650 = vmul.f32 %v436, %v588
  %v651 = vmul.f32 %v437, %v588
  %v652 = vmul.f32 %v438, %v588
  %v653 = vmul.f32 %v439, %v588
  %v654 = vld [vmem:[%s3] sm:$0x1]
  %v656 = vperm.slane %v654, 0
  %v658 = vadd.f32 %v590, %v656
  %v659 = vadd.f32 %v591, %v656
  %v660 = vadd.f32 %v592, %v656
  %v661 = vadd.f32 %v593, %v656
  %v662 = vadd.f32 %v594, %v656
  %v663 = vadd.f32 %v595, %v656
  %v664 = vadd.f32 %v596, %v656
  %v665 = vadd.f32 %v597, %v656
  %v666 = vadd.f32 %v598, %v656
  %v667 = vadd.f32 %v599, %v656
  %v668 = vadd.f32 %v600, %v656
  %v669 = vadd.f32 %v601, %v656
  %v670 = vadd.f32 %v602, %v656
  %v671 = vadd.f32 %v603, %v656
  %v672 = vadd.f32 %v604, %v656
  %v673 = vadd.f32 %v605, %v656
  %v674 = vadd.f32 %v606, %v656
  %v675 = vadd.f32 %v607, %v656
  %v676 = vadd.f32 %v608, %v656
  %v677 = vadd.f32 %v609, %v656
  %v678 = vadd.f32 %v610, %v656
  %v679 = vadd.f32 %v611, %v656
  %v680 = vadd.f32 %v612, %v656
  %v681 = vadd.f32 %v613, %v656
  %v682 = vadd.f32 %v614, %v656
  %v683 = vadd.f32 %v615, %v656
  %v684 = vadd.f32 %v616, %v656
  %v685 = vadd.f32 %v617, %v656
  %v686 = vadd.f32 %v618, %v656
  %v687 = vadd.f32 %v619, %v656
  %v688 = vadd.f32 %v620, %v656
  %v689 = vadd.f32 %v621, %v656
  %v690 = vadd.f32 %v622, %v656
  %v691 = vadd.f32 %v623, %v656
  %v692 = vadd.f32 %v624, %v656
  %v693 = vadd.f32 %v625, %v656
  %v694 = vadd.f32 %v626, %v656
  %v695 = vadd.f32 %v627, %v656
  %v696 = vadd.f32 %v628, %v656
  %v697 = vadd.f32 %v629, %v656
  %v698 = vadd.f32 %v630, %v656
  %v699 = vadd.f32 %v631, %v656
  %v700 = vadd.f32 %v632, %v656
  %v701 = vadd.f32 %v633, %v656
  %v702 = vadd.f32 %v634, %v656
  %v703 = vadd.f32 %v635, %v656
  %v704 = vadd.f32 %v636, %v656
  %v705 = vadd.f32 %v637, %v656
  %v706 = vadd.f32 %v638, %v656
  %v707 = vadd.f32 %v639, %v656
  %v708 = vadd.f32 %v640, %v656
  %v709 = vadd.f32 %v641, %v656
  %v710 = vadd.f32 %v642, %v656
  %v711 = vadd.f32 %v643, %v656
  %v712 = vadd.f32 %v644, %v656
  %v713 = vadd.f32 %v645, %v656
  %v714 = vadd.f32 %v646, %v656
  %v715 = vadd.f32 %v647, %v656
  %v716 = vadd.f32 %v648, %v656
  %v717 = vadd.f32 %v649, %v656
  %v718 = vadd.f32 %v650, %v656
  %v719 = vadd.f32 %v651, %v656
  %v720 = vadd.f32 %v652, %v656
  %v721 = vadd.f32 %v653, %v656
  %vm722 = vcmp.ge.f32.partialorder %v658, 0.0
  %vm723 = vcmp.ge.f32.partialorder %v659, 0.0
  %vm724 = vcmp.ge.f32.partialorder %v660, 0.0
  %vm725 = vcmp.ge.f32.partialorder %v661, 0.0
  %vm726 = vcmp.ge.f32.partialorder %v662, 0.0
  %vm727 = vcmp.ge.f32.partialorder %v663, 0.0
  %vm728 = vcmp.ge.f32.partialorder %v664, 0.0
  %vm729 = vcmp.ge.f32.partialorder %v665, 0.0
  %vm730 = vcmp.ge.f32.partialorder %v666, 0.0
  %vm731 = vcmp.ge.f32.partialorder %v667, 0.0
  %vm732 = vcmp.ge.f32.partialorder %v668, 0.0
  %vm733 = vcmp.ge.f32.partialorder %v669, 0.0
  %vm734 = vcmp.ge.f32.partialorder %v670, 0.0
  %vm735 = vcmp.ge.f32.partialorder %v671, 0.0
  %vm736 = vcmp.ge.f32.partialorder %v672, 0.0
  %vm737 = vcmp.ge.f32.partialorder %v673, 0.0
  %vm738 = vcmp.ge.f32.partialorder %v674, 0.0
  %vm739 = vcmp.ge.f32.partialorder %v675, 0.0
  %vm740 = vcmp.ge.f32.partialorder %v676, 0.0
  %vm741 = vcmp.ge.f32.partialorder %v677, 0.0
  %vm742 = vcmp.ge.f32.partialorder %v678, 0.0
  %vm743 = vcmp.ge.f32.partialorder %v679, 0.0
  %vm744 = vcmp.ge.f32.partialorder %v680, 0.0
  %vm745 = vcmp.ge.f32.partialorder %v681, 0.0
  %vm746 = vcmp.ge.f32.partialorder %v682, 0.0
  %vm747 = vcmp.ge.f32.partialorder %v683, 0.0
  %vm748 = vcmp.ge.f32.partialorder %v684, 0.0
  %vm749 = vcmp.ge.f32.partialorder %v685, 0.0
  %vm750 = vcmp.ge.f32.partialorder %v686, 0.0
  %vm751 = vcmp.ge.f32.partialorder %v687, 0.0
  %vm752 = vcmp.ge.f32.partialorder %v688, 0.0
  %vm753 = vcmp.ge.f32.partialorder %v689, 0.0
  %vm754 = vcmp.ge.f32.partialorder %v690, 0.0
  %vm755 = vcmp.ge.f32.partialorder %v691, 0.0
  %vm756 = vcmp.ge.f32.partialorder %v692, 0.0
  %vm757 = vcmp.ge.f32.partialorder %v693, 0.0
  %vm758 = vcmp.ge.f32.partialorder %v694, 0.0
  %vm759 = vcmp.ge.f32.partialorder %v695, 0.0
  %vm760 = vcmp.ge.f32.partialorder %v696, 0.0
  %vm761 = vcmp.ge.f32.partialorder %v697, 0.0
  %vm762 = vcmp.ge.f32.partialorder %v698, 0.0
  %vm763 = vcmp.ge.f32.partialorder %v699, 0.0
  %vm764 = vcmp.ge.f32.partialorder %v700, 0.0
  %vm765 = vcmp.ge.f32.partialorder %v701, 0.0
  %vm766 = vcmp.ge.f32.partialorder %v702, 0.0
  %vm767 = vcmp.ge.f32.partialorder %v703, 0.0
  %vm768 = vcmp.ge.f32.partialorder %v704, 0.0
  %vm769 = vcmp.ge.f32.partialorder %v705, 0.0
  %vm770 = vcmp.ge.f32.partialorder %v706, 0.0
  %vm771 = vcmp.ge.f32.partialorder %v707, 0.0
  %vm772 = vcmp.ge.f32.partialorder %v708, 0.0
  %vm773 = vcmp.ge.f32.partialorder %v709, 0.0
  %vm774 = vcmp.ge.f32.partialorder %v710, 0.0
  %vm775 = vcmp.ge.f32.partialorder %v711, 0.0
  %vm776 = vcmp.ge.f32.partialorder %v712, 0.0
  %vm777 = vcmp.ge.f32.partialorder %v713, 0.0
  %vm778 = vcmp.ge.f32.partialorder %v714, 0.0
  %vm779 = vcmp.ge.f32.partialorder %v715, 0.0
  %vm780 = vcmp.ge.f32.partialorder %v716, 0.0
  %vm781 = vcmp.ge.f32.partialorder %v717, 0.0
  %vm782 = vcmp.ge.f32.partialorder %v718, 0.0
  %vm783 = vcmp.ge.f32.partialorder %v719, 0.0
  %vm784 = vcmp.ge.f32.partialorder %v720, 0.0
  %vm785 = vcmp.ge.f32.partialorder %v721, 0.0
  %v786 = vmul.f32 %v658, 0.2
  %v787 = vmul.f32 %v659, 0.2
  %v788 = vmul.f32 %v660, 0.2
  %v789 = vmul.f32 %v661, 0.2
  %v790 = vmul.f32 %v662, 0.2
  %v791 = vmul.f32 %v663, 0.2
  %v792 = vmul.f32 %v664, 0.2
  %v793 = vmul.f32 %v665, 0.2
  %v794 = vmul.f32 %v666, 0.2
  %v795 = vmul.f32 %v667, 0.2
  %v796 = vmul.f32 %v668, 0.2
  %v797 = vmul.f32 %v669, 0.2
  %v798 = vmul.f32 %v670, 0.2
  %v799 = vmul.f32 %v671, 0.2
  %v800 = vmul.f32 %v672, 0.2
  %v801 = vmul.f32 %v673, 0.2
  %v802 = vmul.f32 %v674, 0.2
  %v803 = vmul.f32 %v675, 0.2
  %v804 = vmul.f32 %v676, 0.2
  %v805 = vmul.f32 %v677, 0.2
  %v806 = vmul.f32 %v678, 0.2
  %v807 = vmul.f32 %v679, 0.2
  %v808 = vmul.f32 %v680, 0.2
  %v809 = vmul.f32 %v681, 0.2
  %v810 = vmul.f32 %v682, 0.2
  %v811 = vmul.f32 %v683, 0.2
  %v812 = vmul.f32 %v684, 0.2
  %v813 = vmul.f32 %v685, 0.2
  %v814 = vmul.f32 %v686, 0.2
  %v815 = vmul.f32 %v687, 0.2
  %v816 = vmul.f32 %v688, 0.2
  %v817 = vmul.f32 %v689, 0.2
  %v818 = vmul.f32 %v690, 0.2
  %v819 = vmul.f32 %v691, 0.2
  %v820 = vmul.f32 %v692, 0.2
  %v821 = vmul.f32 %v693, 0.2
  %v822 = vmul.f32 %v694, 0.2
  %v823 = vmul.f32 %v695, 0.2
  %v824 = vmul.f32 %v696, 0.2
  %v825 = vmul.f32 %v697, 0.2
  %v826 = vmul.f32 %v698, 0.2
  %v827 = vmul.f32 %v699, 0.2
  %v828 = vmul.f32 %v700, 0.2
  %v829 = vmul.f32 %v701, 0.2
  %v830 = vmul.f32 %v702, 0.2
  %v831 = vmul.f32 %v703, 0.2
  %v832 = vmul.f32 %v704, 0.2
  %v833 = vmul.f32 %v705, 0.2
  %v834 = vmul.f32 %v706, 0.2
  %v835 = vmul.f32 %v707, 0.2
  %v836 = vmul.f32 %v708, 0.2
  %v837 = vmul.f32 %v709, 0.2
  %v838 = vmul.f32 %v710, 0.2
  %v839 = vmul.f32 %v711, 0.2
  %v840 = vmul.f32 %v712, 0.2
  %v841 = vmul.f32 %v713, 0.2
  %v842 = vmul.f32 %v714, 0.2
  %v843 = vmul.f32 %v715, 0.2
  %v844 = vmul.f32 %v716, 0.2
  %v845 = vmul.f32 %v717, 0.2
  %v846 = vmul.f32 %v718, 0.2
  %v847 = vmul.f32 %v719, 0.2
  %v848 = vmul.f32 %v720, 0.2
  %v849 = vmul.f32 %v721, 0.2
  %v850 = vsel %vm722, %v658, %v786
  %v851 = vsel %vm723, %v659, %v787
  %v852 = vsel %vm724, %v660, %v788
  %v853 = vsel %vm725, %v661, %v789
  %v854 = vsel %vm726, %v662, %v790
  %v855 = vsel %vm727, %v663, %v791
  %v856 = vsel %vm728, %v664, %v792
  %v857 = vsel %vm729, %v665, %v793
  %v858 = vsel %vm730, %v666, %v794
  %v859 = vsel %vm731, %v667, %v795
  %v860 = vsel %vm732, %v668, %v796
  %v861 = vsel %vm733, %v669, %v797
  %v862 = vsel %vm734, %v670, %v798
  %v863 = vsel %vm735, %v671, %v799
  %v864 = vsel %vm736, %v672, %v800
  %v865 = vsel %vm737, %v673, %v801
  %v866 = vsel %vm738, %v674, %v802
  %v867 = vsel %vm739, %v675, %v803
  %v868 = vsel %vm740, %v676, %v804
  %v869 = vsel %vm741, %v677, %v805
  %v870 = vsel %vm742, %v678, %v806
  %v871 = vsel %vm743, %v679, %v807
  %v872 = vsel %vm744, %v680, %v808
  %v873 = vsel %vm745, %v681, %v809
  %v874 = vsel %vm746, %v682, %v810
  %v875 = vsel %vm747, %v683, %v811
  %v876 = vsel %vm748, %v684, %v812
  %v877 = vsel %vm749, %v685, %v813
  %v878 = vsel %vm750, %v686, %v814
  %v879 = vsel %vm751, %v687, %v815
  %v880 = vsel %vm752, %v688, %v816
  %v881 = vsel %vm753, %v689, %v817
  %v882 = vsel %vm754, %v690, %v818
  %v883 = vsel %vm755, %v691, %v819
  %v884 = vsel %vm756, %v692, %v820
  %v885 = vsel %vm757, %v693, %v821
  %v886 = vsel %vm758, %v694, %v822
  %v887 = vsel %vm759, %v695, %v823
  %v888 = vsel %vm760, %v696, %v824
  %v889 = vsel %vm761, %v697, %v825
  %v890 = vsel %vm762, %v698, %v826
  %v891 = vsel %vm763, %v699, %v827
  %v892 = vsel %vm764, %v700, %v828
  %v893 = vsel %vm765, %v701, %v829
  %v894 = vsel %vm766, %v702, %v830
  %v895 = vsel %vm767, %v703, %v831
  %v896 = vsel %vm768, %v704, %v832
  %v897 = vsel %vm769, %v705, %v833
  %v898 = vsel %vm770, %v706, %v834
  %v899 = vsel %vm771, %v707, %v835
  %v900 = vsel %vm772, %v708, %v836
  %v901 = vsel %vm773, %v709, %v837
  %v902 = vsel %vm774, %v710, %v838
  %v903 = vsel %vm775, %v711, %v839
  %v904 = vsel %vm776, %v712, %v840
  %v905 = vsel %vm777, %v713, %v841
  %v906 = vsel %vm778, %v714, %v842
  %v907 = vsel %vm779, %v715, %v843
  %v908 = vsel %vm780, %v716, %v844
  %v909 = vsel %vm781, %v717, %v845
  %v910 = vsel %vm782, %v718, %v846
  %v911 = vsel %vm783, %v719, %v847
  %v912 = vsel %vm784, %v720, %v848
  %v913 = vsel %vm785, %v721, %v849
  %914 = vst [vmem:[%s4] sm:$0xff] %v850
  %915 = vst [vmem:[%s4 + $0x8] sm:$0xff] %v851
  %916 = vst [vmem:[%s4 + $0x10] sm:$0xff] %v852
  %917 = vst [vmem:[%s4 + $0x18] sm:$0xff] %v853
  %918 = vst [vmem:[%s4 + $0x20] sm:$0xff] %v854
  %919 = vst [vmem:[%s4 + $0x28] sm:$0xff] %v855
  %920 = vst [vmem:[%s4 + $0x30] sm:$0xff] %v856
  %921 = vst [vmem:[%s4 + $0x38] sm:$0xff] %v857
  %922 = vst [vmem:[%s4 + $0x40] sm:$0xff] %v858
  %923 = vst [vmem:[%s4 + $0x48] sm:$0xff] %v859
  %924 = vst [vmem:[%s4 + $0x50] sm:$0xff] %v860
  %925 = vst [vmem:[%s4 + $0x58] sm:$0xff] %v861
  %926 = vst [vmem:[%s4 + $0x60] sm:$0xff] %v862
  %927 = vst [vmem:[%s4 + $0x68] sm:$0xff] %v863
  %928 = vst [vmem:[%s4 + $0x70] sm:$0xff] %v864
  %929 = vst [vmem:[%s4 + $0x78] sm:$0xff] %v865
  %930 = vst [vmem:[%s4 + $0x80] sm:$0xff] %v866
  %931 = vst [vmem:[%s4 + $0x88] sm:$0xff] %v867
  %932 = vst [vmem:[%s4 + $0x90] sm:$0xff] %v868
  %933 = vst [vmem:[%s4 + $0x98] sm:$0xff] %v869
  %934 = vst [vmem:[%s4 + $0xa0] sm:$0xff] %v870
  %935 = vst [vmem:[%s4 + $0xa8] sm:$0xff] %v871
  %936 = vst [vmem:[%s4 + $0xb0] sm:$0xff] %v872
  %937 = vst [vmem:[%s4 + $0xb8] sm:$0xff] %v873
  %938 = vst [vmem:[%s4 + $0xc0] sm:$0xff] %v874
  %939 = vst [vmem:[%s4 + $0xc8] sm:$0xff] %v875
  %940 = vst [vmem:[%s4 + $0xd0] sm:$0xff] %v876
  %941 = vst [vmem:[%s4 + $0xd8] sm:$0xff] %v877
  %942 = vst [vmem:[%s4 + $0xe0] sm:$0xff] %v878
  %943 = vst [vmem:[%s4 + $0xe8] sm:$0xff] %v879
  %944 = vst [vmem:[%s4 + $0xf0] sm:$0xff] %v880
  %945 = vst [vmem:[%s4 + $0xf8] sm:$0xff] %v881
  %946 = vst [vmem:[%s4 + $0x100] sm:$0xff] %v882
  %947 = vst [vmem:[%s4 + $0x108] sm:$0xff] %v883
  %948 = vst [vmem:[%s4 + $0x110] sm:$0xff] %v884
  %949 = vst [vmem:[%s4 + $0x118] sm:$0xff] %v885
  %950 = vst [vmem:[%s4 + $0x120] sm:$0xff] %v886
  %951 = vst [vmem:[%s4 + $0x128] sm:$0xff] %v887
  %952 = vst [vmem:[%s4 + $0x130] sm:$0xff] %v888
  %953 = vst [vmem:[%s4 + $0x138] sm:$0xff] %v889
  %954 = vst [vmem:[%s4 + $0x140] sm:$0xff] %v890
  %955 = vst [vmem:[%s4 + $0x148] sm:$0xff] %v891
  %956 = vst [vmem:[%s4 + $0x150] sm:$0xff] %v892
  %957 = vst [vmem:[%s4 + $0x158] sm:$0xff] %v893
  %958 = vst [vmem:[%s4 + $0x160] sm:$0xff] %v894
  %959 = vst [vmem:[%s4 + $0x168] sm:$0xff] %v895
  %960 = vst [vmem:[%s4 + $0x170] sm:$0xff] %v896
  %961 = vst [vmem:[%s4 + $0x178] sm:$0xff] %v897
  %962 = vst [vmem:[%s4 + $0x180] sm:$0xff] %v898
  %963 = vst [vmem:[%s4 + $0x188] sm:$0xff] %v899
  %964 = vst [vmem:[%s4 + $0x190] sm:$0xff] %v900
  %965 = vst [vmem:[%s4 + $0x198] sm:$0xff] %v901
  %966 = vst [vmem:[%s4 + $0x1a0] sm:$0xff] %v902
  %967 = vst [vmem:[%s4 + $0x1a8] sm:$0xff] %v903
  %968 = vst [vmem:[%s4 + $0x1b0] sm:$0xff] %v904
  %969 = vst [vmem:[%s4 + $0x1b8] sm:$0xff] %v905
  %970 = vst [vmem:[%s4 + $0x1c0] sm:$0xff] %v906
  %971 = vst [vmem:[%s4 + $0x1c8] sm:$0xff] %v907
  %972 = vst [vmem:[%s4 + $0x1d0] sm:$0xff] %v908
  %973 = vst [vmem:[%s4 + $0x1d8] sm:$0xff] %v909
  %974 = vst [vmem:[%s4 + $0x1e0] sm:$0xff] %v910
  %975 = vst [vmem:[%s4 + $0x1e8] sm:$0xff] %v911
  %976 = vst [vmem:[%s4 + $0x1f0] sm:$0xff] %v912
  %977 = vst [vmem:[%s4 + $0x1f8] sm:$0xff] %v913
  // Predicated region
  $region18: #{discriminator_forward.6} parent=0 // pred_check
    _
  $region19: #{discriminator_forward.6} parent=0 // pred_check_branch
    %979 = sbr.rel (0) target = $region21
  $region20: #{discriminator_forward.6} parent=0 // pred_region
    _
  $region21: #{discriminator_forward.6} parent=0 // pred_fallthru
    _
  // Predicated region
  $region22: #{discriminator_forward.6} parent=0 // pred_check
    _
  $region23: #{discriminator_forward.6} parent=0 // pred_check_branch
    %981 = sbr.rel (0) target = $region25
  $region24: #{discriminator_forward.6} parent=0 // pred_region
    _
  $region25: #{discriminator_forward.6} parent=0 // pred_fallthru
    _

// kernel: discriminator_forward.7
$region0: #{discriminator_forward.7}
  #allocation0 [shape = 'u32[]', space=smem, size = 0x4, offset = 0x4, fixed_abs, tag = 'smem constant byte address 0x4 - core index']
  #allocation1 [shape = 'u32[72,128]{1,0:T(1,128)}', space=vmem, size = 0x9000, scoped, tag = 'internal scratch']
  %s0 = inlined_call_operand.vmem [shape: f32[128,256], index: 0, kind: input, shape index: {}]
  %s1 = inlined_call_operand.vmem [shape: f32[256,128], index: 1, kind: input, shape index: {}]
  %s2 = inlined_call_operand.vmem [shape: f32[1,128], index: 2, kind: input, shape index: {}]
  %s3 = inlined_call_operand.vmem [shape: f32[1,128], index: 3, kind: input, shape index: {}]
  %s4 = inlined_call_operand.vmem [shape: f32[128,128], index: 4, kind: output, shape index: {}]
  %s5 = sld [smem:[#allocation0]]
  $region26: #{discriminator_forward.7} parent=0
    _
  %s7 = ssub.s32 1, %s5
  %s8 = scalar_select 0, %s7, %s5
  // Predicated region
  $region2: #{discriminator_forward.7} parent=0 // pred_check
    _
  $region3: #{discriminator_forward.7} parent=0 // pred_check_branch
    %10 = sbr.rel (0) target = $region5
  $region4: #{discriminator_forward.7} parent=0 // pred_region
    _
  $region5: #{discriminator_forward.7} parent=0 // pred_fallthru
    _
  // Predicated region
  $region6: #{discriminator_forward.7} parent=0 // pred_check
    _
  $region7: #{discriminator_forward.7} parent=0 // pred_check_branch
    %12 = sbr.rel (0) target = $region9
  $region8: #{discriminator_forward.7} parent=0 // pred_region
    _
  $region9: #{discriminator_forward.7} parent=0 // pred_fallthru
    _
  // Predicated region
  $region10: #{discriminator_forward.7} parent=0 // pred_check
    _
  $region11: #{discriminator_forward.7} parent=0 // pred_check_branch
    %14 = sbr.rel (0) target = $region13
  $region12: #{discriminator_forward.7} parent=0 // pred_region
    _
  $region13: #{discriminator_forward.7} parent=0 // pred_fallthru
    _
  // Predicated region
  $region14: #{discriminator_forward.7} parent=0 // pred_check
    _
  $region15: #{discriminator_forward.7} parent=0 // pred_check_branch
    %16 = sbr.rel (0) target = $region17
  $region16: #{discriminator_forward.7} parent=0 // pred_region
    _
  $region17: #{discriminator_forward.7} parent=0 // pred_fallthru
    _
  %v17 = vld [vmem:[%s0] sm:$0xff]
  %v18 = vld [vmem:[%s0 + $0x8] sm:$0xff]
  %v19 = vld [vmem:[%s0 + $0x10] sm:$0xff]
  %v20 = vld [vmem:[%s0 + $0x18] sm:$0xff]
  %v21 = vld [vmem:[%s0 + $0x20] sm:$0xff]
  %v22 = vld [vmem:[%s0 + $0x28] sm:$0xff]
  %v23 = vld [vmem:[%s0 + $0x30] sm:$0xff]
  %v24 = vld [vmem:[%s0 + $0x38] sm:$0xff]
  %v25 = vld [vmem:[%s0 + $0x40] sm:$0xff]
  %v26 = vld [vmem:[%s0 + $0x48] sm:$0xff]
  %v27 = vld [vmem:[%s0 + $0x50] sm:$0xff]
  %v28 = vld [vmem:[%s0 + $0x58] sm:$0xff]
  %v29 = vld [vmem:[%s0 + $0x60] sm:$0xff]
  %v30 = vld [vmem:[%s0 + $0x68] sm:$0xff]
  %v31 = vld [vmem:[%s0 + $0x70] sm:$0xff]
  %v32 = vld [vmem:[%s0 + $0x78] sm:$0xff]
  %v33 = vld [vmem:[%s0 + $0x80] sm:$0xff]
  %v34 = vld [vmem:[%s0 + $0x88] sm:$0xff]
  %v35 = vld [vmem:[%s0 + $0x90] sm:$0xff]
  %v36 = vld [vmem:[%s0 + $0x98] sm:$0xff]
  %v37 = vld [vmem:[%s0 + $0xa0] sm:$0xff]
  %v38 = vld [vmem:[%s0 + $0xa8] sm:$0xff]
  %v39 = vld [vmem:[%s0 + $0xb0] sm:$0xff]
  %v40 = vld [vmem:[%s0 + $0xb8] sm:$0xff]
  %v41 = vld [vmem:[%s0 + $0xc0] sm:$0xff]
  %v42 = vld [vmem:[%s0 + $0xc8] sm:$0xff]
  %v43 = vld [vmem:[%s0 + $0xd0] sm:$0xff]
  %v44 = vld [vmem:[%s0 + $0xd8] sm:$0xff]
  %v45 = vld [vmem:[%s0 + $0xe0] sm:$0xff]
  %v46 = vld [vmem:[%s0 + $0xe8] sm:$0xff]
  %v47 = vld [vmem:[%s0 + $0xf0] sm:$0xff]
  %v48 = vld [vmem:[%s0 + $0xf8] sm:$0xff]
  %v49 = vld [vmem:[%s1] sm:$0xff]
  %v50 = vld [vmem:[%s1 + $0x8] sm:$0xff]
  %v51 = vld [vmem:[%s1 + $0x10] sm:$0xff]
  %v52 = vld [vmem:[%s1 + $0x18] sm:$0xff]
  %v53 = vld [vmem:[%s1 + $0x20] sm:$0xff]
  %v54 = vld [vmem:[%s1 + $0x28] sm:$0xff]
  %v55 = vld [vmem:[%s1 + $0x30] sm:$0xff]
  %v56 = vld [vmem:[%s1 + $0x38] sm:$0xff]
  %v57 = vld [vmem:[%s1 + $0x40] sm:$0xff]
  %v58 = vld [vmem:[%s1 + $0x48] sm:$0xff]
  %v59 = vld [vmem:[%s1 + $0x50] sm:$0xff]
  %v60 = vld [vmem:[%s1 + $0x58] sm:$0xff]
  %v61 = vld [vmem:[%s1 + $0x60] sm:$0xff]
  %v62 = vld [vmem:[%s1 + $0x68] sm:$0xff]
  %v63 = vld [vmem:[%s1 + $0x70] sm:$0xff]
  %v64 = vld [vmem:[%s1 + $0x78] sm:$0xff]
  %v65 = vld [vmem:[%s1 + $0x80] sm:$0xff]
  %v66 = vld [vmem:[%s1 + $0x88] sm:$0xff]
  %v67 = vld [vmem:[%s1 + $0x90] sm:$0xff]
  %v68 = vld [vmem:[%s1 + $0x98] sm:$0xff]
  %v69 = vld [vmem:[%s1 + $0xa0] sm:$0xff]
  %v70 = vld [vmem:[%s1 + $0xa8] sm:$0xff]
  %v71 = vld [vmem:[%s1 + $0xb0] sm:$0xff]
  %v72 = vld [vmem:[%s1 + $0xb8] sm:$0xff]
  %v73 = vld [vmem:[%s1 + $0xc0] sm:$0xff]
  %v74 = vld [vmem:[%s1 + $0xc8] sm:$0xff]
  %v75 = vld [vmem:[%s1 + $0xd0] sm:$0xff]
  %v76 = vld [vmem:[%s1 + $0xd8] sm:$0xff]
  %v77 = vld [vmem:[%s1 + $0xe0] sm:$0xff]
  %v78 = vld [vmem:[%s1 + $0xe8] sm:$0xff]
  %v79 = vld [vmem:[%s1 + $0xf0] sm:$0xff]
  %v80 = vld [vmem:[%s1 + $0xf8] sm:$0xff]
  %81 = vmatpush.msra.mxu0 %v64
  %82 = vmatpush.msra.mxu0 %v63
  %83 = vmatpush.msra.mxu0 %v62
  %84 = vmatpush.msra.mxu0 %v61
  %85 = vmatpush.msra.mxu0 %v60
  %86 = vmatpush.msra.mxu0 %v59
  %87 = vmatpush.msra.mxu0 %v58
  %88 = vmatpush.msra.mxu0 %v57
  %89 = vmatpush.msra.mxu0 %v56
  %90 = vmatpush.msra.mxu0 %v55
  %91 = vmatpush.msra.mxu0 %v54
  %92 = vmatpush.msra.mxu0 %v53
  %93 = vmatpush.msra.mxu0 %v52
  %94 = vmatpush.msra.mxu0 %v51
  %95 = vmatpush.msra.mxu0 %v50
  %96 = vmatpush.msra.mxu0 %v49
  %97 = vmatmul.f32.gmra.mxu0 %v17
  %v98 = vpop.f32.mrf.mxu0
  %v99 = vadd.f32 0.0, %v98
  %100 = vmatmul.f32.gmra.mxu0 %v19
  %v101 = vpop.f32.mrf.mxu0
  %v102 = vadd.f32 0.0, %v101
  %103 = vmatmul.f32.gmra.mxu0 %v21
  %v104 = vpop.f32.mrf.mxu0
  %v105 = vadd.f32 0.0, %v104
  %106 = vmatmul.f32.gmra.mxu0 %v23
  %v107 = vpop.f32.mrf.mxu0
  %v108 = vadd.f32 0.0, %v107
  %109 = vmatmul.f32.gmra.mxu0 %v25
  %v110 = vpop.f32.mrf.mxu0
  %v111 = vadd.f32 0.0, %v110
  %112 = vmatmul.f32.gmra.mxu0 %v27
  %v113 = vpop.f32.mrf.mxu0
  %v114 = vadd.f32 0.0, %v113
  %115 = vmatmul.f32.gmra.mxu0 %v29
  %v116 = vpop.f32.mrf.mxu0
  %v117 = vadd.f32 0.0, %v116
  %118 = vmatmul.f32.gmra.mxu0 %v31
  %v119 = vpop.f32.mrf.mxu0
  %v120 = vadd.f32 0.0, %v119
  %121 = vmatmul.f32.gmra.mxu0 %v33
  %v122 = vpop.f32.mrf.mxu0
  %v123 = vadd.f32 0.0, %v122
  %124 = vmatmul.f32.gmra.mxu0 %v35
  %v125 = vpop.f32.mrf.mxu0
  %v126 = vadd.f32 0.0, %v125
  %127 = vmatmul.f32.gmra.mxu0 %v37
  %v128 = vpop.f32.mrf.mxu0
  %v129 = vadd.f32 0.0, %v128
  %130 = vmatmul.f32.gmra.mxu0 %v39
  %v131 = vpop.f32.mrf.mxu0
  %v132 = vadd.f32 0.0, %v131
  %133 = vmatmul.f32.gmra.mxu0 %v41
  %v134 = vpop.f32.mrf.mxu0
  %v135 = vadd.f32 0.0, %v134
  %136 = vmatmul.f32.gmra.mxu0 %v43
  %v137 = vpop.f32.mrf.mxu0
  %v138 = vadd.f32 0.0, %v137
  %139 = vmatmul.f32.gmra.mxu0 %v45
  %v140 = vpop.f32.mrf.mxu0
  %v141 = vadd.f32 0.0, %v140
  %142 = vmatmul.f32.gmra.mxu0 %v47
  %v143 = vpop.f32.mrf.mxu0
  %v144 = vadd.f32 0.0, %v143
  %145 = vdwg.mxu0
  %146 = vmatpush.msra.mxu0 %v80
  %147 = vmatpush.msra.mxu0 %v79
  %148 = vmatpush.msra.mxu0 %v78
  %149 = vmatpush.msra.mxu0 %v77
  %150 = vmatpush.msra.mxu0 %v76
  %151 = vmatpush.msra.mxu0 %v75
  %152 = vmatpush.msra.mxu0 %v74
  %153 = vmatpush.msra.mxu0 %v73
  %154 = vmatpush.msra.mxu0 %v72
  %155 = vmatpush.msra.mxu0 %v71
  %156 = vmatpush.msra.mxu0 %v70
  %157 = vmatpush.msra.mxu0 %v69
  %158 = vmatpush.msra.mxu0 %v68
  %159 = vmatpush.msra.mxu0 %v67
  %160 = vmatpush.msra.mxu0 %v66
  %161 = vmatpush.msra.mxu0 %v65
  %162 = vmatmul.f32.gmra.mxu0 %v18
  %v163 = vpop.f32.mrf.mxu0
  %v164 = vadd.f32 %v99, %v163
  %165 = vmatmul.f32.gmra.mxu0 %v20
  %v166 = vpop.f32.mrf.mxu0
  %v167 = vadd.f32 %v102, %v166
  %168 = vmatmul.f32.gmra.mxu0 %v22
  %v169 = vpop.f32.mrf.mxu0
  %v170 = vadd.f32 %v105, %v169
  %171 = vmatmul.f32.gmra.mxu0 %v24
  %v172 = vpop.f32.mrf.mxu0
  %v173 = vadd.f32 %v108, %v172
  %174 = vmatmul.f32.gmra.mxu0 %v26
  %v175 = vpop.f32.mrf.mxu0
  %v176 = vadd.f32 %v111, %v175
  %177 = vmatmul.f32.gmra.mxu0 %v28
  %v178 = vpop.f32.mrf.mxu0
  %v179 = vadd.f32 %v114, %v178
  %180 = vmatmul.f32.gmra.mxu0 %v30
  %v181 = vpop.f32.mrf.mxu0
  %v182 = vadd.f32 %v117, %v181
  %183 = vmatmul.f32.gmra.mxu0 %v32
  %v184 = vpop.f32.mrf.mxu0
  %v185 = vadd.f32 %v120, %v184
  %186 = vmatmul.f32.gmra.mxu0 %v34
  %v187 = vpop.f32.mrf.mxu0
  %v188 = vadd.f32 %v123, %v187
  %189 = vmatmul.f32.gmra.mxu0 %v36
  %v190 = vpop.f32.mrf.mxu0
  %v191 = vadd.f32 %v126, %v190
  %192 = vmatmul.f32.gmra.mxu0 %v38
  %v193 = vpop.f32.mrf.mxu0
  %v194 = vadd.f32 %v129, %v193
  %195 = vmatmul.f32.gmra.mxu0 %v40
  %v196 = vpop.f32.mrf.mxu0
  %v197 = vadd.f32 %v132, %v196
  %198 = vmatmul.f32.gmra.mxu0 %v42
  %v199 = vpop.f32.mrf.mxu0
  %v200 = vadd.f32 %v135, %v199
  %201 = vmatmul.f32.gmra.mxu0 %v44
  %v202 = vpop.f32.mrf.mxu0
  %v203 = vadd.f32 %v138, %v202
  %204 = vmatmul.f32.gmra.mxu0 %v46
  %v205 = vpop.f32.mrf.mxu0
  %v206 = vadd.f32 %v141, %v205
  %207 = vmatmul.f32.gmra.mxu0 %v48
  %v208 = vpop.f32.mrf.mxu0
  %v209 = vadd.f32 %v144, %v208
  %210 = vdwg.mxu0
  %v211 = vadd.f32 %v164, %v167
  %v212 = vadd.f32 %v211, %v170
  %v213 = vadd.f32 %v212, %v173
  %v214 = vadd.f32 %v213, %v176
  %v215 = vadd.f32 %v214, %v179
  %v216 = vadd.f32 %v215, %v182
  %v217 = vadd.f32 %v216, %v185
  %v218 = vadd.f32 %v217, %v188
  %v219 = vadd.f32 %v218, %v191
  %v220 = vadd.f32 %v219, %v194
  %v221 = vadd.f32 %v220, %v197
  %v222 = vadd.f32 %v221, %v200
  %v223 = vadd.f32 %v222, %v203
  %v224 = vadd.f32 %v223, %v206
  %v225 = vadd.f32 %v224, %v209
  %v226 = vrot.slane %v225, 4
  %v227 = vadd.f32 %v225, %v226
  %v228 = vrot.slane %v227, 2
  %v229 = vadd.f32 %v227, %v228
  %v230 = vrot.slane %v229, 1
  %v231 = vadd.f32 %v229, %v230
  %v232 = vmul.f32 %v231, 0.0078125
  %v233 = vsub.f32 %v164, %v232
  %v234 = vsub.f32 %v167, %v232
  %v235 = vsub.f32 %v170, %v232
  %v236 = vsub.f32 %v173, %v232
  %v237 = vsub.f32 %v176, %v232
  %v238 = vsub.f32 %v179, %v232
  %v239 = vsub.f32 %v182, %v232
  %v240 = vsub.f32 %v185, %v232
  %v241 = vsub.f32 %v188, %v232
  %v242 = vsub.f32 %v191, %v232
  %v243 = vsub.f32 %v194, %v232
  %v244 = vsub.f32 %v197, %v232
  %v245 = vsub.f32 %v200, %v232
  %v246 = vsub.f32 %v203, %v232
  %v247 = vsub.f32 %v206, %v232
  %v248 = vsub.f32 %v209, %v232
  %v249 = vmul.f32 %v233, %v233
  %v250 = vmul.f32 %v234, %v234
  %v251 = vmul.f32 %v235, %v235
  %v252 = vmul.f32 %v236, %v236
  %v253 = vmul.f32 %v237, %v237
  %v254 = vmul.f32 %v238, %v238
  %v255 = vmul.f32 %v239, %v239
  %v256 = vmul.f32 %v240, %v240
  %v257 = vmul.f32 %v241, %v241
  %v258 = vmul.f32 %v242, %v242
  %v259 = vmul.f32 %v243, %v243
  %v260 = vmul.f32 %v244, %v244
  %v261 = vmul.f32 %v245, %v245
  %v262 = vmul.f32 %v246, %v246
  %v263 = vmul.f32 %v247, %v247
  %v264 = vmul.f32 %v248, %v248
  %v265 = vadd.f32 %v249, %v250
  %v266 = vadd.f32 %v265, %v251
  %v267 = vadd.f32 %v266, %v252
  %v268 = vadd.f32 %v267, %v253
  %v269 = vadd.f32 %v268, %v254
  %v270 = vadd.f32 %v269, %v255
  %v271 = vadd.f32 %v270, %v256
  %v272 = vadd.f32 %v271, %v257
  %v273 = vadd.f32 %v272, %v258
  %v274 = vadd.f32 %v273, %v259
  %v275 = vadd.f32 %v274, %v260
  %v276 = vadd.f32 %v275, %v261
  %v277 = vadd.f32 %v276, %v262
  %v278 = vadd.f32 %v277, %v263
  %v279 = vadd.f32 %v278, %v264
  %v280 = vrot.slane %v279, 4
  %v281 = vadd.f32 %v279, %v280
  %v282 = vrot.slane %v281, 2
  %v283 = vadd.f32 %v281, %v282
  %v284 = vrot.slane %v283, 1
  %v285 = vadd.f32 %v283, %v284
  %v286 = vmul.f32 %v285, 0.0078125
  %v287 = vld [vmem:[%s2] sm:$0x1]
  %v288 = vadd.f32 %v286, 1e-05
  %v289 = vrsqrt.pop %v288
  %v290 = vmul.f32 %v289, %v288
  %v291 = vmul.f32 %v290, %v289
  %v292 = vmul.f32 0.5, %v291
  %v293 = vsub.f32 1.5, %v292
  %v294 = vmul.f32 %v289, %v293
  %vm295 = vweird.f32 %v288
  %vm296 = vweird.f32 %v289
  %vm297 = vmor %vm295, %vm296
  %v298 = vsel %vm297, %v289, %v294
  %v299 = vmul.f32 %v287, %v298
  %v301 = vperm.slane %v299, 0
  %v303 = vmul.f32 %v233, %v301
  %v304 = vmul.f32 %v234, %v301
  %v305 = vmul.f32 %v235, %v301
  %v306 = vmul.f32 %v236, %v301
  %v307 = vmul.f32 %v237, %v301
  %v308 = vmul.f32 %v238, %v301
  %v309 = vmul.f32 %v239, %v301
  %v310 = vmul.f32 %v240, %v301
  %v311 = vmul.f32 %v241, %v301
  %v312 = vmul.f32 %v242, %v301
  %v313 = vmul.f32 %v243, %v301
  %v314 = vmul.f32 %v244, %v301
  %v315 = vmul.f32 %v245, %v301
  %v316 = vmul.f32 %v246, %v301
  %v317 = vmul.f32 %v247, %v301
  %v318 = vmul.f32 %v248, %v301
  %v319 = vld [vmem:[%s3] sm:$0x1]
  %v321 = vperm.slane %v319, 0
  %v323 = vadd.f32 %v303, %v321
  %v324 = vadd.f32 %v304, %v321
  %v325 = vadd.f32 %v305, %v321
  %v326 = vadd.f32 %v306, %v321
  %v327 = vadd.f32 %v307, %v321
  %v328 = vadd.f32 %v308, %v321
  %v329 = vadd.f32 %v309, %v321
  %v330 = vadd.f32 %v310, %v321
  %v331 = vadd.f32 %v311, %v321
  %v332 = vadd.f32 %v312, %v321
  %v333 = vadd.f32 %v313, %v321
  %v334 = vadd.f32 %v314, %v321
  %v335 = vadd.f32 %v315, %v321
  %v336 = vadd.f32 %v316, %v321
  %v337 = vadd.f32 %v317, %v321
  %v338 = vadd.f32 %v318, %v321
  %vm339 = vcmp.ge.f32.partialorder %v323, 0.0
  %vm340 = vcmp.ge.f32.partialorder %v324, 0.0
  %vm341 = vcmp.ge.f32.partialorder %v325, 0.0
  %vm342 = vcmp.ge.f32.partialorder %v326, 0.0
  %vm343 = vcmp.ge.f32.partialorder %v327, 0.0
  %vm344 = vcmp.ge.f32.partialorder %v328, 0.0
  %vm345 = vcmp.ge.f32.partialorder %v329, 0.0
  %vm346 = vcmp.ge.f32.partialorder %v330, 0.0
  %vm347 = vcmp.ge.f32.partialorder %v331, 0.0
  %vm348 = vcmp.ge.f32.partialorder %v332, 0.0
  %vm349 = vcmp.ge.f32.partialorder %v333, 0.0
  %vm350 = vcmp.ge.f32.partialorder %v334, 0.0
  %vm351 = vcmp.ge.f32.partialorder %v335, 0.0
  %vm352 = vcmp.ge.f32.partialorder %v336, 0.0
  %vm353 = vcmp.ge.f32.partialorder %v337, 0.0
  %vm354 = vcmp.ge.f32.partialorder %v338, 0.0
  %v355 = vmul.f32 %v323, 0.2
  %v356 = vmul.f32 %v324, 0.2
  %v357 = vmul.f32 %v325, 0.2
  %v358 = vmul.f32 %v326, 0.2
  %v359 = vmul.f32 %v327, 0.2
  %v360 = vmul.f32 %v328, 0.2
  %v361 = vmul.f32 %v329, 0.2
  %v362 = vmul.f32 %v330, 0.2
  %v363 = vmul.f32 %v331, 0.2
  %v364 = vmul.f32 %v332, 0.2
  %v365 = vmul.f32 %v333, 0.2
  %v366 = vmul.f32 %v334, 0.2
  %v367 = vmul.f32 %v335, 0.2
  %v368 = vmul.f32 %v336, 0.2
  %v369 = vmul.f32 %v337, 0.2
  %v370 = vmul.f32 %v338, 0.2
  %v371 = vsel %vm339, %v323, %v355
  %v372 = vsel %vm340, %v324, %v356
  %v373 = vsel %vm341, %v325, %v357
  %v374 = vsel %vm342, %v326, %v358
  %v375 = vsel %vm343, %v327, %v359
  %v376 = vsel %vm344, %v328, %v360
  %v377 = vsel %vm345, %v329, %v361
  %v378 = vsel %vm346, %v330, %v362
  %v379 = vsel %vm347, %v331, %v363
  %v380 = vsel %vm348, %v332, %v364
  %v381 = vsel %vm349, %v333, %v365
  %v382 = vsel %vm350, %v334, %v366
  %v383 = vsel %vm351, %v335, %v367
  %v384 = vsel %vm352, %v336, %v368
  %v385 = vsel %vm353, %v337, %v369
  %v386 = vsel %vm354, %v338, %v370
  %387 = vst [vmem:[%s4] sm:$0xff] %v371
  %388 = vst [vmem:[%s4 + $0x8] sm:$0xff] %v372
  %389 = vst [vmem:[%s4 + $0x10] sm:$0xff] %v373
  %390 = vst [vmem:[%s4 + $0x18] sm:$0xff] %v374
  %391 = vst [vmem:[%s4 + $0x20] sm:$0xff] %v375
  %392 = vst [vmem:[%s4 + $0x28] sm:$0xff] %v376
  %393 = vst [vmem:[%s4 + $0x30] sm:$0xff] %v377
  %394 = vst [vmem:[%s4 + $0x38] sm:$0xff] %v378
  %395 = vst [vmem:[%s4 + $0x40] sm:$0xff] %v379
  %396 = vst [vmem:[%s4 + $0x48] sm:$0xff] %v380
  %397 = vst [vmem:[%s4 + $0x50] sm:$0xff] %v381
  %398 = vst [vmem:[%s4 + $0x58] sm:$0xff] %v382
  %399 = vst [vmem:[%s4 + $0x60] sm:$0xff] %v383
  %400 = vst [vmem:[%s4 + $0x68] sm:$0xff] %v384
  %401 = vst [vmem:[%s4 + $0x70] sm:$0xff] %v385
  %402 = vst [vmem:[%s4 + $0x78] sm:$0xff] %v386
  // Predicated region
  $region18: #{discriminator_forward.7} parent=0 // pred_check
    _
  $region19: #{discriminator_forward.7} parent=0 // pred_check_branch
    %404 = sbr.rel (0) target = $region21
  $region20: #{discriminator_forward.7} parent=0 // pred_region
    _
  $region21: #{discriminator_forward.7} parent=0 // pred_fallthru
    _
  // Predicated region
  $region22: #{discriminator_forward.7} parent=0 // pred_check
    _
  $region23: #{discriminator_forward.7} parent=0 // pred_check_branch
    %406 = sbr.rel (0) target = $region25
  $region24: #{discriminator_forward.7} parent=0 // pred_region
    _
  $region25: #{discriminator_forward.7} parent=0 // pred_fallthru
    _

// kernel: discriminator_forward.8
$region0: #{discriminator_forward.8}
  #allocation0 [shape = 'u32[]', space=smem, size = 0x4, offset = 0x4, fixed_abs, tag = 'smem constant byte address 0x4 - core index']
  #allocation1 [shape = 'u32[72,128]{1,0:T(1,128)}', space=vmem, size = 0x9000, scoped, tag = 'internal scratch']
  %s0 = inlined_call_operand.vmem [shape: f32[32,512], index: 0, kind: input, shape index: {}]
  %s1 = inlined_call_operand.vmem [shape: f32[512,128], index: 1, kind: input, shape index: {}]
  %s2 = inlined_call_operand.vmem [shape: f32[1,128], index: 2, kind: input, shape index: {}]
  %s3 = inlined_call_operand.vmem [shape: f32[1,128], index: 3, kind: input, shape index: {}]
  %s4 = inlined_call_operand.vmem [shape: f32[32,128], index: 4, kind: output, shape index: {}]
  %s5 = sld [smem:[#allocation0]]
  $region26: #{discriminator_forward.8} parent=0
    _
  %s7 = ssub.s32 1, %s5
  %s8 = scalar_select 0, %s7, %s5
  // Predicated region
  $region2: #{discriminator_forward.8} parent=0 // pred_check
    _
  $region3: #{discriminator_forward.8} parent=0 // pred_check_branch
    %10 = sbr.rel (0) target = $region5
  $region4: #{discriminator_forward.8} parent=0 // pred_region
    _
  $region5: #{discriminator_forward.8} parent=0 // pred_fallthru
    _
  // Predicated region
  $region6: #{discriminator_forward.8} parent=0 // pred_check
    _
  $region7: #{discriminator_forward.8} parent=0 // pred_check_branch
    %12 = sbr.rel (0) target = $region9
  $region8: #{discriminator_forward.8} parent=0 // pred_region
    _
  $region9: #{discriminator_forward.8} parent=0 // pred_fallthru
    _
  // Predicated region
  $region10: #{discriminator_forward.8} parent=0 // pred_check
    _
  $region11: #{discriminator_forward.8} parent=0 // pred_check_branch
    %14 = sbr.rel (0) target = $region13
  $region12: #{discriminator_forward.8} parent=0 // pred_region
    _
  $region13: #{discriminator_forward.8} parent=0 // pred_fallthru
    _
  // Predicated region
  $region14: #{discriminator_forward.8} parent=0 // pred_check
    _
  $region15: #{discriminator_forward.8} parent=0 // pred_check_branch
    %16 = sbr.rel (0) target = $region17
  $region16: #{discriminator_forward.8} parent=0 // pred_region
    _
  $region17: #{discriminator_forward.8} parent=0 // pred_fallthru
    _
  %v17 = vld [vmem:[%s0] sm:$0xff]
  %v18 = vld [vmem:[%s0 + $0x8] sm:$0xff]
  %v19 = vld [vmem:[%s0 + $0x10] sm:$0xff]
  %v20 = vld [vmem:[%s0 + $0x18] sm:$0xff]
  %v21 = vld [vmem:[%s0 + $0x20] sm:$0xff]
  %v22 = vld [vmem:[%s0 + $0x28] sm:$0xff]
  %v23 = vld [vmem:[%s0 + $0x30] sm:$0xff]
  %v24 = vld [vmem:[%s0 + $0x38] sm:$0xff]
  %v25 = vld [vmem:[%s0 + $0x40] sm:$0xff]
  %v26 = vld [vmem:[%s0 + $0x48] sm:$0xff]
  %v27 = vld [vmem:[%s0 + $0x50] sm:$0xff]
  %v28 = vld [vmem:[%s0 + $0x58] sm:$0xff]
  %v29 = vld [vmem:[%s0 + $0x60] sm:$0xff]
  %v30 = vld [vmem:[%s0 + $0x68] sm:$0xff]
  %v31 = vld [vmem:[%s0 + $0x70] sm:$0xff]
  %v32 = vld [vmem:[%s0 + $0x78] sm:$0xff]
  %v33 = vld [vmem:[%s1] sm:$0xff]
  %v34 = vld [vmem:[%s1 + $0x8] sm:$0xff]
  %v35 = vld [vmem:[%s1 + $0x10] sm:$0xff]
  %v36 = vld [vmem:[%s1 + $0x18] sm:$0xff]
  %v37 = vld [vmem:[%s1 + $0x20] sm:$0xff]
  %v38 = vld [vmem:[%s1 + $0x28] sm:$0xff]
  %v39 = vld [vmem:[%s1 + $0x30] sm:$0xff]
  %v40 = vld [vmem:[%s1 + $0x38] sm:$0xff]
  %v41 = vld [vmem:[%s1 + $0x40] sm:$0xff]
  %v42 = vld [vmem:[%s1 + $0x48] sm:$0xff]
  %v43 = vld [vmem:[%s1 + $0x50] sm:$0xff]
  %v44 = vld [vmem:[%s1 + $0x58] sm:$0xff]
  %v45 = vld [vmem:[%s1 + $0x60] sm:$0xff]
  %v46 = vld [vmem:[%s1 + $0x68] sm:$0xff]
  %v47 = vld [vmem:[%s1 + $0x70] sm:$0xff]
  %v48 = vld [vmem:[%s1 + $0x78] sm:$0xff]
  %v49 = vld [vmem:[%s1 + $0x80] sm:$0xff]
  %v50 = vld [vmem:[%s1 + $0x88] sm:$0xff]
  %v51 = vld [vmem:[%s1 + $0x90] sm:$0xff]
  %v52 = vld [vmem:[%s1 + $0x98] sm:$0xff]
  %v53 = vld [vmem:[%s1 + $0xa0] sm:$0xff]
  %v54 = vld [vmem:[%s1 + $0xa8] sm:$0xff]
  %v55 = vld [vmem:[%s1 + $0xb0] sm:$0xff]
  %v56 = vld [vmem:[%s1 + $0xb8] sm:$0xff]
  %v57 = vld [vmem:[%s1 + $0xc0] sm:$0xff]
  %v58 = vld [vmem:[%s1 + $0xc8] sm:$0xff]
  %v59 = vld [vmem:[%s1 + $0xd0] sm:$0xff]
  %v60 = vld [vmem:[%s1 + $0xd8] sm:$0xff]
  %v61 = vld [vmem:[%s1 + $0xe0] sm:$0xff]
  %v62 = vld [vmem:[%s1 + $0xe8] sm:$0xff]
  %v63 = vld [vmem:[%s1 + $0xf0] sm:$0xff]
  %v64 = vld [vmem:[%s1 + $0xf8] sm:$0xff]
  %v65 = vld [vmem:[%s1 + $0x100] sm:$0xff]
  %v66 = vld [vmem:[%s1 + $0x108] sm:$0xff]
  %v67 = vld [vmem:[%s1 + $0x110] sm:$0xff]
  %v68 = vld [vmem:[%s1 + $0x118] sm:$0xff]
  %v69 = vld [vmem:[%s1 + $0x120] sm:$0xff]
  %v70 = vld [vmem:[%s1 + $0x128] sm:$0xff]
  %v71 = vld [vmem:[%s1 + $0x130] sm:$0xff]
  %v72 = vld [vmem:[%s1 + $0x138] sm:$0xff]
  %v73 = vld [vmem:[%s1 + $0x140] sm:$0xff]
  %v74 = vld [vmem:[%s1 + $0x148] sm:$0xff]
  %v75 = vld [vmem:[%s1 + $0x150] sm:$0xff]
  %v76 = vld [vmem:[%s1 + $0x158] sm:$0xff]
  %v77 = vld [vmem:[%s1 + $0x160] sm:$0xff]
  %v78 = vld [vmem:[%s1 + $0x168] sm:$0xff]
  %v79 = vld [vmem:[%s1 + $0x170] sm:$0xff]
  %v80 = vld [vmem:[%s1 + $0x178] sm:$0xff]
  %v81 = vld [vmem:[%s1 + $0x180] sm:$0xff]
  %v82 = vld [vmem:[%s1 + $0x188] sm:$0xff]
  %v83 = vld [vmem:[%s1 + $0x190] sm:$0xff]
  %v84 = vld [vmem:[%s1 + $0x198] sm:$0xff]
  %v85 = vld [vmem:[%s1 + $0x1a0] sm:$0xff]
  %v86 = vld [vmem:[%s1 + $0x1a8] sm:$0xff]
  %v87 = vld [vmem:[%s1 + $0x1b0] sm:$0xff]
  %v88 = vld [vmem:[%s1 + $0x1b8] sm:$0xff]
  %v89 = vld [vmem:[%s1 + $0x1c0] sm:$0xff]
  %v90 = vld [vmem:[%s1 + $0x1c8] sm:$0xff]
  %v91 = vld [vmem:[%s1 + $0x1d0] sm:$0xff]
  %v92 = vld [vmem:[%s1 + $0x1d8] sm:$0xff]
  %v93 = vld [vmem:[%s1 + $0x1e0] sm:$0xff]
  %v94 = vld [vmem:[%s1 + $0x1e8] sm:$0xff]
  %v95 = vld [vmem:[%s1 + $0x1f0] sm:$0xff]
  %v96 = vld [vmem:[%s1 + $0x1f8] sm:$0xff]
  %97 = vmatpush.msra.mxu0 %v48
  %98 = vmatpush.msra.mxu0 %v47
  %99 = vmatpush.msra.mxu0 %v46
  %100 = vmatpush.msra.mxu0 %v45
  %101 = vmatpush.msra.mxu0 %v44
  %102 = vmatpush.msra.mxu0 %v43
  %103 = vmatpush.msra.mxu0 %v42
  %104 = vmatpush.msra.mxu0 %v41
  %105 = vmatpush.msra.mxu0 %v40
  %106 = vmatpush.msra.mxu0 %v39
  %107 = vmatpush.msra.mxu0 %v38
  %108 = vmatpush.msra.mxu0 %v37
  %109 = vmatpush.msra.mxu0 %v36
  %110 = vmatpush.msra.mxu0 %v35
  %111 = vmatpush.msra.mxu0 %v34
  %112 = vmatpush.msra.mxu0 %v33
  %113 = vmatmul.f32.gmra.mxu0 %v17
  %v114 = vpop.f32.mrf.mxu0
  %v115 = vadd.f32 0.0, %v114
  %116 = vmatmul.f32.gmra.mxu0 %v21
  %v117 = vpop.f32.mrf.mxu0
  %v118 = vadd.f32 0.0, %v117
  %119 = vmatmul.f32.gmra.mxu0 %v25
  %v120 = vpop.f32.mrf.mxu0
  %v121 = vadd.f32 0.0, %v120
  %122 = vmatmul.f32.gmra.mxu0 %v29
  %v123 = vpop.f32.mrf.mxu0
  %v124 = vadd.f32 0.0, %v123
  %125 = vdwg.mxu0
  %126 = vmatpush.msra.mxu0 %v64
  %127 = vmatpush.msra.mxu0 %v63
  %128 = vmatpush.msra.mxu0 %v62
  %129 = vmatpush.msra.mxu0 %v61
  %130 = vmatpush.msra.mxu0 %v60
  %131 = vmatpush.msra.mxu0 %v59
  %132 = vmatpush.msra.mxu0 %v58
  %133 = vmatpush.msra.mxu0 %v57
  %134 = vmatpush.msra.mxu0 %v56
  %135 = vmatpush.msra.mxu0 %v55
  %136 = vmatpush.msra.mxu0 %v54
  %137 = vmatpush.msra.mxu0 %v53
  %138 = vmatpush.msra.mxu0 %v52
  %139 = vmatpush.msra.mxu0 %v51
  %140 = vmatpush.msra.mxu0 %v50
  %141 = vmatpush.msra.mxu0 %v49
  %142 = vmatmul.f32.gmra.mxu0 %v18
  %v143 = vpop.f32.mrf.mxu0
  %v144 = vadd.f32 %v115, %v143
  %145 = vmatmul.f32.gmra.mxu0 %v22
  %v146 = vpop.f32.mrf.mxu0
  %v147 = vadd.f32 %v118, %v146
  %148 = vmatmul.f32.gmra.mxu0 %v26
  %v149 = vpop.f32.mrf.mxu0
  %v150 = vadd.f32 %v121, %v149
  %151 = vmatmul.f32.gmra.mxu0 %v30
  %v152 = vpop.f32.mrf.mxu0
  %v153 = vadd.f32 %v124, %v152
  %154 = vdwg.mxu0
  %155 = vmatpush.msra.mxu0 %v80
  %156 = vmatpush.msra.mxu0 %v79
  %157 = vmatpush.msra.mxu0 %v78
  %158 = vmatpush.msra.mxu0 %v77
  %159 = vmatpush.msra.mxu0 %v76
  %160 = vmatpush.msra.mxu0 %v75
  %161 = vmatpush.msra.mxu0 %v74
  %162 = vmatpush.msra.mxu0 %v73
  %163 = vmatpush.msra.mxu0 %v72
  %164 = vmatpush.msra.mxu0 %v71
  %165 = vmatpush.msra.mxu0 %v70
  %166 = vmatpush.msra.mxu0 %v69
  %167 = vmatpush.msra.mxu0 %v68
  %168 = vmatpush.msra.mxu0 %v67
  %169 = vmatpush.msra.mxu0 %v66
  %170 = vmatpush.msra.mxu0 %v65
  %171 = vmatmul.f32.gmra.mxu0 %v19
  %v172 = vpop.f32.mrf.mxu0
  %v173 = vadd.f32 %v144, %v172
  %174 = vmatmul.f32.gmra.mxu0 %v23
  %v175 = vpop.f32.mrf.mxu0
  %v176 = vadd.f32 %v147, %v175
  %177 = vmatmul.f32.gmra.mxu0 %v27
  %v178 = vpop.f32.mrf.mxu0
  %v179 = vadd.f32 %v150, %v178
  %180 = vmatmul.f32.gmra.mxu0 %v31
  %v181 = vpop.f32.mrf.mxu0
  %v182 = vadd.f32 %v153, %v181
  %183 = vdwg.mxu0
  %184 = vmatpush.msra.mxu0 %v96
  %185 = vmatpush.msra.mxu0 %v95
  %186 = vmatpush.msra.mxu0 %v94
  %187 = vmatpush.msra.mxu0 %v93
  %188 = vmatpush.msra.mxu0 %v92
  %189 = vmatpush.msra.mxu0 %v91
  %190 = vmatpush.msra.mxu0 %v90
  %191 = vmatpush.msra.mxu0 %v89
  %192 = vmatpush.msra.mxu0 %v88
  %193 = vmatpush.msra.mxu0 %v87
  %194 = vmatpush.msra.mxu0 %v86
  %195 = vmatpush.msra.mxu0 %v85
  %196 = vmatpush.msra.mxu0 %v84
  %197 = vmatpush.msra.mxu0 %v83
  %198 = vmatpush.msra.mxu0 %v82
  %199 = vmatpush.msra.mxu0 %v81
  %200 = vmatmul.f32.gmra.mxu0 %v20
  %v201 = vpop.f32.mrf.mxu0
  %v202 = vadd.f32 %v173, %v201
  %203 = vmatmul.f32.gmra.mxu0 %v24
  %v204 = vpop.f32.mrf.mxu0
  %v205 = vadd.f32 %v176, %v204
  %206 = vmatmul.f32.gmra.mxu0 %v28
  %v207 = vpop.f32.mrf.mxu0
  %v208 = vadd.f32 %v179, %v207
  %209 = vmatmul.f32.gmra.mxu0 %v32
  %v210 = vpop.f32.mrf.mxu0
  %v211 = vadd.f32 %v182, %v210
  %212 = vdwg.mxu0
  %v213 = vadd.f32 %v202, %v205
  %v214 = vadd.f32 %v213, %v208
  %v215 = vadd.f32 %v214, %v211
  %v216 = vrot.slane %v215, 4
  %v217 = vadd.f32 %v215, %v216
  %v218 = vrot.slane %v217, 2
  %v219 = vadd.f32 %v217, %v218
  %v220 = vrot.slane %v219, 1
  %v221 = vadd.f32 %v219, %v220
  %v222 = vmul.f32 %v221, 0.03125
  %v223 = vsub.f32 %v202, %v222
  %v224 = vsub.f32 %v205, %v222
  %v225 = vsub.f32 %v208, %v222
  %v226 = vsub.f32 %v211, %v222
  %v227 = vmul.f32 %v223, %v223
  %v228 = vmul.f32 %v224, %v224
  %v229 = vmul.f32 %v225, %v225
  %v230 = vmul.f32 %v226, %v226
  %v231 = vadd.f32 %v227, %v228
  %v232 = vadd.f32 %v231, %v229
  %v233 = vadd.f32 %v232, %v230
  %v234 = vrot.slane %v233, 4
  %v235 = vadd.f32 %v233, %v234
  %v236 = vrot.slane %v235, 2
  %v237 = vadd.f32 %v235, %v236
  %v238 = vrot.slane %v237, 1
  %v239 = vadd.f32 %v237, %v238
  %v240 = vmul.f32 %v239, 0.03125
  %v241 = vld [vmem:[%s2] sm:$0x1]
  %v242 = vadd.f32 %v240, 1e-05
  %v243 = vrsqrt.pop %v242
  %v244 = vmul.f32 %v243, %v242
  %v245 = vmul.f32 %v244, %v243
  %v246 = vmul.f32 0.5, %v245
  %v247 = vsub.f32 1.5, %v246
  %v248 = vmul.f32 %v243, %v247
  %vm249 = vweird.f32 %v242
  %vm250 = vweird.f32 %v243
  %vm251 = vmor %vm249, %vm250
  %v252 = vsel %vm251, %v243, %v248
  %v253 = vmul.f32 %v241, %v252
  %v255 = vperm.slane %v253, 0
  %v257 = vmul.f32 %v223, %v255
  %v258 = vmul.f32 %v224, %v255
  %v259 = vmul.f32 %v225, %v255
  %v260 = vmul.f32 %v226, %v255
  %v261 = vld [vmem:[%s3] sm:$0x1]
  %v263 = vperm.slane %v261, 0
  %v265 = vadd.f32 %v257, %v263
  %v266 = vadd.f32 %v258, %v263
  %v267 = vadd.f32 %v259, %v263
  %v268 = vadd.f32 %v260, %v263
  %vm269 = vcmp.ge.f32.partialorder %v265, 0.0
  %vm270 = vcmp.ge.f32.partialorder %v266, 0.0
  %vm271 = vcmp.ge.f32.partialorder %v267, 0.0
  %vm272 = vcmp.ge.f32.partialorder %v268, 0.0
  %v273 = vmul.f32 %v265, 0.2
  %v274 = vmul.f32 %v266, 0.2
  %v275 = vmul.f32 %v267, 0.2
  %v276 = vmul.f32 %v268, 0.2
  %v277 = vsel %vm269, %v265, %v273
  %v278 = vsel %vm270, %v266, %v274
  %v279 = vsel %vm271, %v267, %v275
  %v280 = vsel %vm272, %v268, %v276
  %281 = vst [vmem:[%s4] sm:$0xff] %v277
  %282 = vst [vmem:[%s4 + $0x8] sm:$0xff] %v278
  %283 = vst [vmem:[%s4 + $0x10] sm:$0xff] %v279
  %284 = vst [vmem:[%s4 + $0x18] sm:$0xff] %v280
  // Predicated region
  $region18: #{discriminator_forward.8} parent=0 // pred_check
    _
  $region19: #{discriminator_forward.8} parent=0 // pred_check_branch
    %286 = sbr.rel (0) target = $region21
  $region20: #{discriminator_forward.8} parent=0 // pred_region
    _
  $region21: #{discriminator_forward.8} parent=0 // pred_fallthru
    _
  // Predicated region
  $region22: #{discriminator_forward.8} parent=0 // pred_check
    _
  $region23: #{discriminator_forward.8} parent=0 // pred_check_branch
    %288 = sbr.rel (0) target = $region25
  $region24: #{discriminator_forward.8} parent=0 // pred_region
    _
  $region25: #{discriminator_forward.8} parent=0 // pred_fallthru
    _

// kernel: discriminator_forward.9
$region0: #{discriminator_forward.9}
  #allocation0 [shape = 'u32[]', space=smem, size = 0x4, offset = 0x4, fixed_abs, tag = 'smem constant byte address 0x4 - core index']
  #allocation1 [shape = 'u32[72,128]{1,0:T(1,128)}', space=vmem, size = 0x9000, scoped, tag = 'internal scratch']
  %s0 = inlined_call_operand.vmem [shape: f32[8,1024], index: 0, kind: input, shape index: {}]
  %s1 = inlined_call_operand.vmem [shape: f32[1024,128], index: 1, kind: input, shape index: {}]
  %s2 = inlined_call_operand.vmem [shape: f32[8,128], index: 2, kind: output, shape index: {}]
  %s3 = sld [smem:[#allocation0]]
  $region18: #{discriminator_forward.9} parent=0
    _
  %s5 = ssub.s32 1, %s3
  %s6 = scalar_select 0, %s5, %s3
  // Predicated region
  $region2: #{discriminator_forward.9} parent=0 // pred_check
    _
  $region3: #{discriminator_forward.9} parent=0 // pred_check_branch
    %8 = sbr.rel (0) target = $region5
  $region4: #{discriminator_forward.9} parent=0 // pred_region
    _
  $region5: #{discriminator_forward.9} parent=0 // pred_fallthru
    _
  // Predicated region
  $region6: #{discriminator_forward.9} parent=0 // pred_check
    _
  $region7: #{discriminator_forward.9} parent=0 // pred_check_branch
    %10 = sbr.rel (0) target = $region9
  $region8: #{discriminator_forward.9} parent=0 // pred_region
    _
  $region9: #{discriminator_forward.9} parent=0 // pred_fallthru
    _
  %v11 = vld [vmem:[%s0] sm:$0xff]
  %v12 = vld [vmem:[%s0 + $0x8] sm:$0xff]
  %v13 = vld [vmem:[%s0 + $0x10] sm:$0xff]
  %v14 = vld [vmem:[%s0 + $0x18] sm:$0xff]
  %v15 = vld [vmem:[%s0 + $0x20] sm:$0xff]
  %v16 = vld [vmem:[%s0 + $0x28] sm:$0xff]
  %v17 = vld [vmem:[%s0 + $0x30] sm:$0xff]
  %v18 = vld [vmem:[%s0 + $0x38] sm:$0xff]
  %v19 = vld [vmem:[%s1] sm:$0xff]
  %v20 = vld [vmem:[%s1 + $0x8] sm:$0xff]
  %v21 = vld [vmem:[%s1 + $0x10] sm:$0xff]
  %v22 = vld [vmem:[%s1 + $0x18] sm:$0xff]
  %v23 = vld [vmem:[%s1 + $0x20] sm:$0xff]
  %v24 = vld [vmem:[%s1 + $0x28] sm:$0xff]
  %v25 = vld [vmem:[%s1 + $0x30] sm:$0xff]
  %v26 = vld [vmem:[%s1 + $0x38] sm:$0xff]
  %v27 = vld [vmem:[%s1 + $0x40] sm:$0xff]
  %v28 = vld [vmem:[%s1 + $0x48] sm:$0xff]
  %v29 = vld [vmem:[%s1 + $0x50] sm:$0xff]
  %v30 = vld [vmem:[%s1 + $0x58] sm:$0xff]
  %v31 = vld [vmem:[%s1 + $0x60] sm:$0xff]
  %v32 = vld [vmem:[%s1 + $0x68] sm:$0xff]
  %v33 = vld [vmem:[%s1 + $0x70] sm:$0xff]
  %v34 = vld [vmem:[%s1 + $0x78] sm:$0xff]
  %v35 = vld [vmem:[%s1 + $0x80] sm:$0xff]
  %v36 = vld [vmem:[%s1 + $0x88] sm:$0xff]
  %v37 = vld [vmem:[%s1 + $0x90] sm:$0xff]
  %v38 = vld [vmem:[%s1 + $0x98] sm:$0xff]
  %v39 = vld [vmem:[%s1 + $0xa0] sm:$0xff]
  %v40 = vld [vmem:[%s1 + $0xa8] sm:$0xff]
  %v41 = vld [vmem:[%s1 + $0xb0] sm:$0xff]
  %v42 = vld [vmem:[%s1 + $0xb8] sm:$0xff]
  %v43 = vld [vmem:[%s1 + $0xc0] sm:$0xff]
  %v44 = vld [vmem:[%s1 + $0xc8] sm:$0xff]
  %v45 = vld [vmem:[%s1 + $0xd0] sm:$0xff]
  %v46 = vld [vmem:[%s1 + $0xd8] sm:$0xff]
  %v47 = vld [vmem:[%s1 + $0xe0] sm:$0xff]
  %v48 = vld [vmem:[%s1 + $0xe8] sm:$0xff]
  %v49 = vld [vmem:[%s1 + $0xf0] sm:$0xff]
  %v50 = vld [vmem:[%s1 + $0xf8] sm:$0xff]
  %v51 = vld [vmem:[%s1 + $0x100] sm:$0xff]
  %v52 = vld [vmem:[%s1 + $0x108] sm:$0xff]
  %v53 = vld [vmem:[%s1 + $0x110] sm:$0xff]
  %v54 = vld [vmem:[%s1 + $0x118] sm:$0xff]
  %v55 = vld [vmem:[%s1 + $0x120] sm:$0xff]
  %v56 = vld [vmem:[%s1 + $0x128] sm:$0xff]
  %v57 = vld [vmem:[%s1 + $0x130] sm:$0xff]
  %v58 = vld [vmem:[%s1 + $0x138] sm:$0xff]
  %v59 = vld [vmem:[%s1 + $0x140] sm:$0xff]
  %v60 = vld [vmem:[%s1 + $0x148] sm:$0xff]
  %v61 = vld [vmem:[%s1 + $0x150] sm:$0xff]
  %v62 = vld [vmem:[%s1 + $0x158] sm:$0xff]
  %v63 = vld [vmem:[%s1 + $0x160] sm:$0xff]
  %v64 = vld [vmem:[%s1 + $0x168] sm:$0xff]
  %v65 = vld [vmem:[%s1 + $0x170] sm:$0xff]
  %v66 = vld [vmem:[%s1 + $0x178] sm:$0xff]
  %v67 = vld [vmem:[%s1 + $0x180] sm:$0xff]
  %v68 = vld [vmem:[%s1 + $0x188] sm:$0xff]
  %v69 = vld [vmem:[%s1 + $0x190] sm:$0xff]
  %v70 = vld [vmem:[%s1 + $0x198] sm:$0xff]
  %v71 = vld [vmem:[%s1 + $0x1a0] sm:$0xff]
  %v72 = vld [vmem:[%s1 + $0x1a8] sm:$0xff]
  %v73 = vld [vmem:[%s1 + $0x1b0] sm:$0xff]
  %v74 = vld [vmem:[%s1 + $0x1b8] sm:$0xff]
  %v75 = vld [vmem:[%s1 + $0x1c0] sm:$0xff]
  %v76 = vld [vmem:[%s1 + $0x1c8] sm:$0xff]
  %v77 = vld [vmem:[%s1 + $0x1d0] sm:$0xff]
  %v78 = vld [vmem:[%s1 + $0x1d8] sm:$0xff]
  %v79 = vld [vmem:[%s1 + $0x1e0] sm:$0xff]
  %v80 = vld [vmem:[%s1 + $0x1e8] sm:$0xff]
  %v81 = vld [vmem:[%s1 + $0x1f0] sm:$0xff]
  %v82 = vld [vmem:[%s1 + $0x1f8] sm:$0xff]
  %v83 = vld [vmem:[%s1 + $0x200] sm:$0xff]
  %v84 = vld [vmem:[%s1 + $0x208] sm:$0xff]
  %v85 = vld [vmem:[%s1 + $0x210] sm:$0xff]
  %v86 = vld [vmem:[%s1 + $0x218] sm:$0xff]
  %v87 = vld [vmem:[%s1 + $0x220] sm:$0xff]
  %v88 = vld [vmem:[%s1 + $0x228] sm:$0xff]
  %v89 = vld [vmem:[%s1 + $0x230] sm:$0xff]
  %v90 = vld [vmem:[%s1 + $0x238] sm:$0xff]
  %v91 = vld [vmem:[%s1 + $0x240] sm:$0xff]
  %v92 = vld [vmem:[%s1 + $0x248] sm:$0xff]
  %v93 = vld [vmem:[%s1 + $0x250] sm:$0xff]
  %v94 = vld [vmem:[%s1 + $0x258] sm:$0xff]
  %v95 = vld [vmem:[%s1 + $0x260] sm:$0xff]
  %v96 = vld [vmem:[%s1 + $0x268] sm:$0xff]
  %v97 = vld [vmem:[%s1 + $0x270] sm:$0xff]
  %v98 = vld [vmem:[%s1 + $0x278] sm:$0xff]
  %v99 = vld [vmem:[%s1 + $0x280] sm:$0xff]
  %v100 = vld [vmem:[%s1 + $0x288] sm:$0xff]
  %v101 = vld [vmem:[%s1 + $0x290] sm:$0xff]
  %v102 = vld [vmem:[%s1 + $0x298] sm:$0xff]
  %v103 = vld [vmem:[%s1 + $0x2a0] sm:$0xff]
  %v104 = vld [vmem:[%s1 + $0x2a8] sm:$0xff]
  %v105 = vld [vmem:[%s1 + $0x2b0] sm:$0xff]
  %v106 = vld [vmem:[%s1 + $0x2b8] sm:$0xff]
  %v107 = vld [vmem:[%s1 + $0x2c0] sm:$0xff]
  %v108 = vld [vmem:[%s1 + $0x2c8] sm:$0xff]
  %v109 = vld [vmem:[%s1 + $0x2d0] sm:$0xff]
  %v110 = vld [vmem:[%s1 + $0x2d8] sm:$0xff]
  %v111 = vld [vmem:[%s1 + $0x2e0] sm:$0xff]
  %v112 = vld [vmem:[%s1 + $0x2e8] sm:$0xff]
  %v113 = vld [vmem:[%s1 + $0x2f0] sm:$0xff]
  %v114 = vld [vmem:[%s1 + $0x2f8] sm:$0xff]
  %v115 = vld [vmem:[%s1 + $0x300] sm:$0xff]
  %v116 = vld [vmem:[%s1 + $0x308] sm:$0xff]
  %v117 = vld [vmem:[%s1 + $0x310] sm:$0xff]
  %v118 = vld [vmem:[%s1 + $0x318] sm:$0xff]
  %v119 = vld [vmem:[%s1 + $0x320] sm:$0xff]
  %v120 = vld [vmem:[%s1 + $0x328] sm:$0xff]
  %v121 = vld [vmem:[%s1 + $0x330] sm:$0xff]
  %v122 = vld [vmem:[%s1 + $0x338] sm:$0xff]
  %v123 = vld [vmem:[%s1 + $0x340] sm:$0xff]
  %v124 = vld [vmem:[%s1 + $0x348] sm:$0xff]
  %v125 = vld [vmem:[%s1 + $0x350] sm:$0xff]
  %v126 = vld [vmem:[%s1 + $0x358] sm:$0xff]
  %v127 = vld [vmem:[%s1 + $0x360] sm:$0xff]
  %v128 = vld [vmem:[%s1 + $0x368] sm:$0xff]
  %v129 = vld [vmem:[%s1 + $0x370] sm:$0xff]
  %v130 = vld [vmem:[%s1 + $0x378] sm:$0xff]
  %v131 = vld [vmem:[%s1 + $0x380] sm:$0xff]
  %v132 = vld [vmem:[%s1 + $0x388] sm:$0xff]
  %v133 = vld [vmem:[%s1 + $0x390] sm:$0xff]
  %v134 = vld [vmem:[%s1 + $0x398] sm:$0xff]
  %v135 = vld [vmem:[%s1 + $0x3a0] sm:$0xff]
  %v136 = vld [vmem:[%s1 + $0x3a8] sm:$0xff]
  %v137 = vld [vmem:[%s1 + $0x3b0] sm:$0xff]
  %v138 = vld [vmem:[%s1 + $0x3b8] sm:$0xff]
  %v139 = vld [vmem:[%s1 + $0x3c0] sm:$0xff]
  %v140 = vld [vmem:[%s1 + $0x3c8] sm:$0xff]
  %v141 = vld [vmem:[%s1 + $0x3d0] sm:$0xff]
  %v142 = vld [vmem:[%s1 + $0x3d8] sm:$0xff]
  %v143 = vld [vmem:[%s1 + $0x3e0] sm:$0xff]
  %v144 = vld [vmem:[%s1 + $0x3e8] sm:$0xff]
  %v145 = vld [vmem:[%s1 + $0x3f0] sm:$0xff]
  %v146 = vld [vmem:[%s1 + $0x3f8] sm:$0xff]
  %147 = vmatpush.msra.mxu0 %v34
  %148 = vmatpush.msra.mxu0 %v33
  %149 = vmatpush.msra.mxu0 %v32
  %150 = vmatpush.msra.mxu0 %v31
  %151 = vmatpush.msra.mxu0 %v30
  %152 = vmatpush.msra.mxu0 %v29
  %153 = vmatpush.msra.mxu0 %v28
  %154 = vmatpush.msra.mxu0 %v27
  %155 = vmatpush.msra.mxu0 %v26
  %156 = vmatpush.msra.mxu0 %v25
  %157 = vmatpush.msra.mxu0 %v24
  %158 = vmatpush.msra.mxu0 %v23
  %159 = vmatpush.msra.mxu0 %v22
  %160 = vmatpush.msra.mxu0 %v21
  %161 = vmatpush.msra.mxu0 %v20
  %162 = vmatpush.msra.mxu0 %v19
  %163 = vmatmul.f32.gmra.mxu0 %v11
  %v164 = vpop.f32.mrf.mxu0
  %v165 = vadd.f32 0.0, %v164
  %166 = vdwg.mxu0
  %167 = vmatpush.msra.mxu0 %v50
  %168 = vmatpush.msra.mxu0 %v49
  %169 = vmatpush.msra.mxu0 %v48
  %170 = vmatpush.msra.mxu0 %v47
  %171 = vmatpush.msra.mxu0 %v46
  %172 = vmatpush.msra.mxu0 %v45
  %173 = vmatpush.msra.mxu0 %v44
  %174 = vmatpush.msra.mxu0 %v43
  %175 = vmatpush.msra.mxu0 %v42
  %176 = vmatpush.msra.mxu0 %v41
  %177 = vmatpush.msra.mxu0 %v40
  %178 = vmatpush.msra.mxu0 %v39
  %179 = vmatpush.msra.mxu0 %v38
  %180 = vmatpush.msra.mxu0 %v37
  %181 = vmatpush.msra.mxu0 %v36
  %182 = vmatpush.msra.mxu0 %v35
  %183 = vmatmul.f32.gmra.mxu0 %v12
  %v184 = vpop.f32.mrf.mxu0
  %v185 = vadd.f32 %v165, %v184
  %186 = vdwg.mxu0
  %187 = vmatpush.msra.mxu0 %v66
  %188 = vmatpush.msra.mxu0 %v65
  %189 = vmatpush.msra.mxu0 %v64
  %190 = vmatpush.msra.mxu0 %v63
  %191 = vmatpush.msra.mxu0 %v62
  %192 = vmatpush.msra.mxu0 %v61
  %193 = vmatpush.msra.mxu0 %v60
  %194 = vmatpush.msra.mxu0 %v59
  %195 = vmatpush.msra.mxu0 %v58
  %196 = vmatpush.msra.mxu0 %v57
  %197 = vmatpush.msra.mxu0 %v56
  %198 = vmatpush.msra.mxu0 %v55
  %199 = vmatpush.msra.mxu0 %v54
  %200 = vmatpush.msra.mxu0 %v53
  %201 = vmatpush.msra.mxu0 %v52
  %202 = vmatpush.msra.mxu0 %v51
  %203 = vmatmul.f32.gmra.mxu0 %v13
  %v204 = vpop.f32.mrf.mxu0
  %v205 = vadd.f32 %v185, %v204
  %206 = vdwg.mxu0
  %207 = vmatpush.msra.mxu0 %v82
  %208 = vmatpush.msra.mxu0 %v81
  %209 = vmatpush.msra.mxu0 %v80
  %210 = vmatpush.msra.mxu0 %v79
  %211 = vmatpush.msra.mxu0 %v78
  %212 = vmatpush.msra.mxu0 %v77
  %213 = vmatpush.msra.mxu0 %v76
  %214 = vmatpush.msra.mxu0 %v75
  %215 = vmatpush.msra.mxu0 %v74
  %216 = vmatpush.msra.mxu0 %v73
  %217 = vmatpush.msra.mxu0 %v72
  %218 = vmatpush.msra.mxu0 %v71
  %219 = vmatpush.msra.mxu0 %v70
  %220 = vmatpush.msra.mxu0 %v69
  %221 = vmatpush.msra.mxu0 %v68
  %222 = vmatpush.msra.mxu0 %v67
  %223 = vmatmul.f32.gmra.mxu0 %v14
  %v224 = vpop.f32.mrf.mxu0
  %v225 = vadd.f32 %v205, %v224
  %226 = vdwg.mxu0
  %227 = vmatpush.msra.mxu0 %v98
  %228 = vmatpush.msra.mxu0 %v97
  %229 = vmatpush.msra.mxu0 %v96
  %230 = vmatpush.msra.mxu0 %v95
  %231 = vmatpush.msra.mxu0 %v94
  %232 = vmatpush.msra.mxu0 %v93
  %233 = vmatpush.msra.mxu0 %v92
  %234 = vmatpush.msra.mxu0 %v91
  %235 = vmatpush.msra.mxu0 %v90
  %236 = vmatpush.msra.mxu0 %v89
  %237 = vmatpush.msra.mxu0 %v88
  %238 = vmatpush.msra.mxu0 %v87
  %239 = vmatpush.msra.mxu0 %v86
  %240 = vmatpush.msra.mxu0 %v85
  %241 = vmatpush.msra.mxu0 %v84
  %242 = vmatpush.msra.mxu0 %v83
  %243 = vmatmul.f32.gmra.mxu0 %v15
  %v244 = vpop.f32.mrf.mxu0
  %v245 = vadd.f32 %v225, %v244
  %246 = vdwg.mxu0
  %247 = vmatpush.msra.mxu0 %v114
  %248 = vmatpush.msra.mxu0 %v113
  %249 = vmatpush.msra.mxu0 %v112
  %250 = vmatpush.msra.mxu0 %v111
  %251 = vmatpush.msra.mxu0 %v110
  %252 = vmatpush.msra.mxu0 %v109
  %253 = vmatpush.msra.mxu0 %v108
  %254 = vmatpush.msra.mxu0 %v107
  %255 = vmatpush.msra.mxu0 %v106
  %256 = vmatpush.msra.mxu0 %v105
  %257 = vmatpush.msra.mxu0 %v104
  %258 = vmatpush.msra.mxu0 %v103
  %259 = vmatpush.msra.mxu0 %v102
  %260 = vmatpush.msra.mxu0 %v101
  %261 = vmatpush.msra.mxu0 %v100
  %262 = vmatpush.msra.mxu0 %v99
  %263 = vmatmul.f32.gmra.mxu0 %v16
  %v264 = vpop.f32.mrf.mxu0
  %v265 = vadd.f32 %v245, %v264
  %266 = vdwg.mxu0
  %267 = vmatpush.msra.mxu0 %v130
  %268 = vmatpush.msra.mxu0 %v129
  %269 = vmatpush.msra.mxu0 %v128
  %270 = vmatpush.msra.mxu0 %v127
  %271 = vmatpush.msra.mxu0 %v126
  %272 = vmatpush.msra.mxu0 %v125
  %273 = vmatpush.msra.mxu0 %v124
  %274 = vmatpush.msra.mxu0 %v123
  %275 = vmatpush.msra.mxu0 %v122
  %276 = vmatpush.msra.mxu0 %v121
  %277 = vmatpush.msra.mxu0 %v120
  %278 = vmatpush.msra.mxu0 %v119
  %279 = vmatpush.msra.mxu0 %v118
  %280 = vmatpush.msra.mxu0 %v117
  %281 = vmatpush.msra.mxu0 %v116
  %282 = vmatpush.msra.mxu0 %v115
  %283 = vmatmul.f32.gmra.mxu0 %v17
  %v284 = vpop.f32.mrf.mxu0
  %v285 = vadd.f32 %v265, %v284
  %286 = vdwg.mxu0
  %287 = vmatpush.msra.mxu0 %v146
  %288 = vmatpush.msra.mxu0 %v145
  %289 = vmatpush.msra.mxu0 %v144
  %290 = vmatpush.msra.mxu0 %v143
  %291 = vmatpush.msra.mxu0 %v142
  %292 = vmatpush.msra.mxu0 %v141
  %293 = vmatpush.msra.mxu0 %v140
  %294 = vmatpush.msra.mxu0 %v139
  %295 = vmatpush.msra.mxu0 %v138
  %296 = vmatpush.msra.mxu0 %v137
  %297 = vmatpush.msra.mxu0 %v136
  %298 = vmatpush.msra.mxu0 %v135
  %299 = vmatpush.msra.mxu0 %v134
  %300 = vmatpush.msra.mxu0 %v133
  %301 = vmatpush.msra.mxu0 %v132
  %302 = vmatpush.msra.mxu0 %v131
  %303 = vmatmul.f32.gmra.mxu0 %v18
  %v304 = vpop.f32.mrf.mxu0
  %v305 = vadd.f32 %v285, %v304
  %306 = vdwg.mxu0
  %307 = vst [vmem:[%s2] sm:$0xff] %v305
  // Predicated region
  $region10: #{discriminator_forward.9} parent=0 // pred_check
    _
  $region11: #{discriminator_forward.9} parent=0 // pred_check_branch
    %309 = sbr.rel (0) target = $region13
  $region12: #{discriminator_forward.9} parent=0 // pred_region
    _
  $region13: #{discriminator_forward.9} parent=0 // pred_fallthru
    _
  // Predicated region
  $region14: #{discriminator_forward.9} parent=0 // pred_check
    _
  $region15: #{discriminator_forward.9} parent=0 // pred_check_branch
    %311 = sbr.rel (0) target = $region17
  $region16: #{discriminator_forward.9} parent=0 // pred_region
    _
  $region17: #{discriminator_forward.9} parent=0 // pred_fallthru
    _

</llo_original>
